<compile_context>
chip_gen: v7x
topology: tpu7x:2x2x1
jax: 0.10.0
libtpu: 0.0.40
codegen_flags: <defaults>
</compile_context>

<pallas_src>
import numpy as np
import jax
import jax.numpy as jnp
from jax.experimental import pallas as pl
from jax.experimental.pallas import tpu as pltpu

_MIB = 1024 * 1024


# ---------------- parameter construction (plain numpy / JAX glue) -----------

def dct_mat(size):
    m = [[(np.sqrt(1.0 / size) if i == 0 else np.sqrt(2.0 / size))
          * np.cos((j + 0.5) * np.pi * i / size)
          for j in range(size)] for i in range(size)]
    return np.asarray(m, dtype=np.float32)


def create_filter(img_size, diagonal):
    f = np.triu(np.ones((img_size, img_size), dtype=np.float32), k=diagonal)
    return np.fliplr(f).copy()


# ---------------- Pallas kernel ---------------------------------------------

def fad_kernel(x_ref, d_ref, dt_ref, dl_ref, dtl_ref, fs_ref, y_ref):
    x = x_ref[0]            # (TB, S, S) slab of channel slices
    d = d_ref[...]          # (S, S)   DCT matrix D
    dt = dt_ref[...]        # (S, S)   D^T
    dl = dl_ref[...]        # (TB, S, S)    D replicated (batched-matmul LHS)
    dtl = dtl_ref[...]      # (2*TB, S, S)  D^T replicated
    fs = fs_ref[...]        # (2, S, S) precomputed [low, high] filters (f32)
    TB, S, _ = x.shape
    cd = d.dtype            # compute dtype (f32 by default, optional bf16)
    f32 = jnp.float32

    # 1) u[b] = x[b] @ D^T  -> ONE 2-D MXU matmul, M = TB*S, natural operand order.
    u = jnp.dot(x.reshape(TB * S, S), dt,
                preferred_element_type=f32).reshape(TB, S, S)

    # 2) xf[b] = D @ u[b]   -> batched MXU matmul in canonical (bij,bjk->bik)
    #    form: LHS is the pre-replicated D (no in-kernel broadcast / transpose).
    xf = jnp.einsum('bij,bjk->bik', dl, u.astype(cd),
                    preferred_element_type=f32)

    # 3) Filter both bands at once -> fused (2*TB, S, S) stack (low, then high).
    w = (fs[:, None, :, :] * xf[None, :, :, :]).reshape(2 * TB, S, S).astype(cd)

    # 4) z[p] = D^T @ w[p]  -> ONE batched matmul over the fused 2*TB stack.
    z = jnp.einsum('bij,bjk->bik', dtl, w, preferred_element_type=f32)

    # 5) y[p] = z[p] @ D    -> ONE 2-D MXU matmul, M = 2*TB*S.
    y = jnp.dot(z.reshape(2 * TB * S, S).astype(cd), d,
                preferred_element_type=f32).reshape(2, TB, S, S)

    # Write straight into the (B, 2, C, S, S) output: slot 0 = low, 1 = high.
    y_ref[0, 0] = y[0].astype(y_ref.dtype)
    y_ref[0, 1] = y[1].astype(y_ref.dtype)


# ---------------- tiling / VMEM budgeting ------------------------------------

def _vmem_budget_bytes():
    """Per-generation scoped-VMEM budget (conservative, leaves headroom)."""
    try:
        kind = jax.devices()[0].device_kind.lower()
    except Exception:
        kind = ""
    if "v5" in kind or "v6" in kind:
        return 96 * _MIB          # 128 MiB physical VMEM on v5e / v6e
    return 48 * _MIB              # v7x has only 64 MiB physical; unknown: be safe


def _vmem_need_bytes(tb, S, itemsize=4):
    """Rough live-VMEM model for one grid step (worst case)."""
    blk = 2 * tb * S * S + 2 * (2 * tb * S * S)   # double-buffered x block + out block
    inv = 2 * (4 * S * S + 3 * tb * S * S)        # d, dt, fs(2) + dl(tb) + dtl(2tb)
    tmp = 8 * tb * S * S                          # u, xf, w, z, y live temporaries
    return (blk + inv + tmp) * itemsize


def _pick_tb(B, C, S, budget, tb_cap=16):
    """Largest divisor of C (<= tb_cap) whose working set fits the VMEM budget."""
    tb = 1
    for cand in range(1, min(C, tb_cap) + 1):
        if C % cand == 0 and _vmem_need_bytes(cand, S) <= budget:
            tb = cand
    # keep >= 2 total grid steps so both v7x TensorCores get work
    while tb > 1 and B * (C // tb) < 2:
        tb -= 1
        while C % tb:
            tb -= 1
    return tb


# ---------------- wrapper ----------------------------------------------------

def fnet_forward(x, d, base_l, learn_l, base_h, learn_h, tb=None,
                 compute_dtype=jnp.float32):
    """x: (B, C, S, S) float32 -> (B, 2C, S, S) float32.

    compute_dtype=jnp.bfloat16 feeds the MXU bf16 operands (~3x throughput,
    f32 accumulation) at the cost of ~1e-3 absolute error; default f32 keeps
    the tight reference tolerance.
    """
    B, C, S, _ = x.shape
    budget = _vmem_budget_bytes()
    if tb is None:
        tb = _pick_tb(B, C, S, budget)
    assert C % tb == 0

    # Grid-invariant filter math hoisted out of the kernel (done once).
    fl = base_l + 2.0 * jax.nn.sigmoid(learn_l) - 1.0
    fh = base_h + 2.0 * jax.nn.sigmoid(learn_h) - 1.0
    fs = jnp.stack([fl, fh], axis=0).astype(jnp.float32)         # (2, S, S)

    cd = compute_dtype
    d_c = d.astype(cd)                                           # (S, S)
    dt_c = jnp.transpose(d).astype(cd)                           # (S, S)
    dl = jnp.broadcast_to(d_c[None], (tb, S, S))                 # LHS for D @ (.)
    dtl = jnp.broadcast_to(dt_c[None], (2 * tb, S, S))           # LHS for D^T @ (.)
    x_c = x.astype(cd)

    cost = pl.CostEstimate(flops=12 * B * C * S ** 3,
                           transcendentals=0,
                           bytes_accessed=3 * B * C * S * S * 4)

    def run(single_buffer_invariants):
        def inv(shape):
            idx = lambda b, c: (0,) * len(shape)
            if single_buffer_invariants:
                return pl.BlockSpec(shape, idx, pipeline_mode=pl.Buffered(1))
            return pl.BlockSpec(shape, idx)

        return pl.pallas_call(
            fad_kernel,
            out_shape=jax.ShapeDtypeStruct((B, 2, C, S, S), jnp.float32),
            grid=(B, C // tb),
            in_specs=[pl.BlockSpec((1, tb, S, S), lambda b, c: (b, c, 0, 0)),
                      inv((S, S)),            # D
                      inv((S, S)),            # D^T
                      inv((tb, S, S)),        # D replicated
                      inv((2 * tb, S, S)),    # D^T replicated
                      inv((2, S, S))],        # stacked filters
            out_specs=pl.BlockSpec((1, 2, tb, S, S),
                                   lambda b, c: (b, 0, c, 0, 0)),
            compiler_params=pltpu.CompilerParams(
                dimension_semantics=("parallel", "parallel"),
                vmem_limit_bytes=int(budget)),
            cost_estimate=cost,
        )(x_c, d_c, dt_c, dl, dtl, fs)

    try:
        y = run(True)            # single-buffer the grid-invariant operands
    except Exception:
        y = run(False)           # fall back to default double-buffering

    # (B, 2, C, S, S) -> (B, 2C, S, S): contiguous merge of axes 1,2 (free),
    # matches torch.cat([y_low, y_high], dim=1) ordering.
    return y.reshape(B, 2 * C, S, S)


# ---------------- test -------------------------------------------------------

if __name__ == "__main__":
    S = 16          # img_size
    diagonal = 2
    B, C = 2, 4

    key = jax.random.PRNGKey(0)
    kx, kl, kh = jax.random.split(key, 3)

    x = jax.random.normal(kx, (B, C, S, S), dtype=jnp.float32)

    d = jnp.asarray(dct_mat(S))

    # LFilter base uses `diagonal`; HFilter base hardcodes diagonal=2.
    base_l = jnp.asarray(create_filter(S, diagonal))
    base_h = jnp.asarray(create_filter(S, 2))
    # learnable params ~ Normal(0, 0.1), deterministic via PRNGKey(0)
    learn_l = 0.1 * jax.random.normal(kl, (S, S), dtype=jnp.float32)
    learn_h = 0.1 * jax.random.normal(kh, (S, S), dtype=jnp.float32)

    out = fnet_forward(x, d, base_l, learn_l, base_h, learn_h)
    out = jax.block_until_ready(out)

    # pure-JAX reference for correctness
    dt = d.T
    fl = base_l + 2.0 * jax.nn.sigmoid(learn_l) - 1.0
    fh = base_h + 2.0 * jax.nn.sigmoid(learn_h) - 1.0
    xf = jnp.einsum('ij,bcjk,kl->bcil', d, x, dt)
    y_low = jnp.einsum('ij,bcjk,kl->bcil', dt, xf * fl, d)
    y_high = jnp.einsum('ij,bcjk,kl->bcil', dt, xf * fh, d)
    r = jnp.concatenate([y_low, y_high], axis=1)

    assert out.shape == (B, 2 * C, S, S), out.shape
    err = float(jnp.max(jnp.abs(out - r)))
    assert jnp.allclose(out, r, atol=2e-4, rtol=2e-4), err
    print("KERNEL_OK")
</pallas_src>

<mosaic_0001>
module attributes {stable_mosaic.version = 11 : i64} {
  func.func @fad_kernel(%arg0: i32, %arg1: i32, %arg2: memref<1x4x16x16xf32, #tpu.memory_space<vmem>>, %arg3: memref<16x16xf32, #tpu.memory_space<vmem>>, %arg4: memref<16x16xf32, #tpu.memory_space<vmem>>, %arg5: memref<4x16x16xf32, #tpu.memory_space<vmem>>, %arg6: memref<8x16x16xf32, #tpu.memory_space<vmem>>, %arg7: memref<2x16x16xf32, #tpu.memory_space<vmem>>, %arg8: memref<1x2x4x16x16xf32, #tpu.memory_space<vmem>>) attributes {dimension_semantics = [#tpu.dimension_semantics<parallel>, #tpu.dimension_semantics<parallel>], iteration_bounds = array<i64: 2, 1>, scalar_prefetch = 0 : i64, scratch_operands = 0 : i64, tpu.core_type = #tpu.core_type<tc>, window_params = [{transform_indices = @transform_0, window_bounds = array<i64: 1, 4, 16, 16>}, {pipeline_mode = #tpu.pipeline_mode<synchronous>, transform_indices = @transform_1, window_bounds = array<i64: 16, 16>}, {pipeline_mode = #tpu.pipeline_mode<synchronous>, transform_indices = @transform_2, window_bounds = array<i64: 16, 16>}, {pipeline_mode = #tpu.pipeline_mode<synchronous>, transform_indices = @transform_3, window_bounds = array<i64: 4, 16, 16>}, {pipeline_mode = #tpu.pipeline_mode<synchronous>, transform_indices = @transform_4, window_bounds = array<i64: 8, 16, 16>}, {pipeline_mode = #tpu.pipeline_mode<synchronous>, transform_indices = @transform_5, window_bounds = array<i64: 2, 16, 16>}, {transform_indices = @transform_6, window_bounds = array<i64: 1, 2, 4, 16, 16>}]} {
    %c0 = arith.constant 0 : index
    %c0_0 = arith.constant 0 : index
    %c0_1 = arith.constant 0 : index
    %c0_2 = arith.constant 0 : index
    %0 = vector.load %arg2[%c0, %c0_0, %c0_1, %c0_2] : memref<1x4x16x16xf32, #tpu.memory_space<vmem>>, vector<1x4x16x16xf32>
    %1 = vector.shape_cast %0 : vector<1x4x16x16xf32> to vector<4x16x16xf32>
    %c0_3 = arith.constant 0 : index
    %c0_4 = arith.constant 0 : index
    %2 = vector.load %arg3[%c0_3, %c0_4] : memref<16x16xf32, #tpu.memory_space<vmem>>, vector<16x16xf32>
    %c0_5 = arith.constant 0 : index
    %c0_6 = arith.constant 0 : index
    %3 = vector.load %arg4[%c0_5, %c0_6] : memref<16x16xf32, #tpu.memory_space<vmem>>, vector<16x16xf32>
    %c0_7 = arith.constant 0 : index
    %c0_8 = arith.constant 0 : index
    %c0_9 = arith.constant 0 : index
    %4 = vector.load %arg5[%c0_7, %c0_8, %c0_9] : memref<4x16x16xf32, #tpu.memory_space<vmem>>, vector<4x16x16xf32>
    %c0_10 = arith.constant 0 : index
    %c0_11 = arith.constant 0 : index
    %c0_12 = arith.constant 0 : index
    %5 = vector.load %arg6[%c0_10, %c0_11, %c0_12] : memref<8x16x16xf32, #tpu.memory_space<vmem>>, vector<8x16x16xf32>
    %c0_13 = arith.constant 0 : index
    %c0_14 = arith.constant 0 : index
    %c0_15 = arith.constant 0 : index
    %6 = vector.load %arg7[%c0_13, %c0_14, %c0_15] : memref<2x16x16xf32, #tpu.memory_space<vmem>>, vector<2x16x16xf32>
    %7 = vector.shape_cast %1 : vector<4x16x16xf32> to vector<64x16xf32>
    %cst = arith.constant dense<0.000000e+00> : vector<64x16xf32>
    %8 = tpu.matmul %7, %3, %cst {dimension_numbers = #tpu.dot_dimension_numbers<[1], [0], [0], [1], [0, 0, 1, 1], [], []>} : vector<64x16xf32>, vector<16x16xf32>, vector<64x16xf32> -> vector<64x16xf32>
    %9 = vector.shape_cast %8 : vector<64x16xf32> to vector<4x16x16xf32>
    "tpu.trace_start"() <{level = 10 : i32, message = "bij,bjk->bik"}> : () -> ()
    %cst_16 = arith.constant dense<0.000000e+00> : vector<4x16x16xf32>
    %10 = tpu.matmul %4, %9, %cst_16 {dimension_numbers = #tpu.dot_dimension_numbers<[2], [1], [1], [2], [0, 0, 0, 1, 1, 2], [0], [0]>} : vector<4x16x16xf32>, vector<4x16x16xf32>, vector<4x16x16xf32> -> vector<4x16x16xf32>
    "tpu.trace_stop"() : () -> ()
    %11 = vector.shape_cast %6 : vector<2x16x16xf32> to vector<2x1x16x16xf32>
    %12 = vector.shape_cast %10 : vector<4x16x16xf32> to vector<1x4x16x16xf32>
    %13 = vector.broadcast %11 : vector<2x1x16x16xf32> to vector<2x4x16x16xf32>
    %14 = vector.broadcast %12 : vector<1x4x16x16xf32> to vector<2x4x16x16xf32>
    %15 = arith.mulf %13, %14 : vector<2x4x16x16xf32>
    %16 = vector.shape_cast %15 : vector<2x4x16x16xf32> to vector<8x16x16xf32>
    "tpu.trace_start"() <{level = 10 : i32, message = "bij,bjk->bik"}> : () -> ()
    %cst_17 = arith.constant dense<0.000000e+00> : vector<8x16x16xf32>
    %17 = tpu.matmul %5, %16, %cst_17 {dimension_numbers = #tpu.dot_dimension_numbers<[2], [1], [1], [2], [0, 0, 0, 1, 1, 2], [0], [0]>} : vector<8x16x16xf32>, vector<8x16x16xf32>, vector<8x16x16xf32> -> vector<8x16x16xf32>
    "tpu.trace_stop"() : () -> ()
    %18 = vector.shape_cast %17 : vector<8x16x16xf32> to vector<128x16xf32>
    %cst_18 = arith.constant dense<0.000000e+00> : vector<128x16xf32>
    %19 = tpu.matmul %18, %2, %cst_18 {dimension_numbers = #tpu.dot_dimension_numbers<[1], [0], [0], [1], [0, 0, 1, 1], [], []>} : vector<128x16xf32>, vector<16x16xf32>, vector<128x16xf32> -> vector<128x16xf32>
    %20 = vector.shape_cast %19 : vector<128x16xf32> to vector<2x4x16x16xf32>
    %21 = vector.extract_strided_slice %20 {offsets = [0, 0, 0, 0], sizes = [1, 4, 16, 16], strides = [1, 1, 1, 1]} : vector<2x4x16x16xf32> to vector<1x4x16x16xf32>
    %22 = vector.shape_cast %21 : vector<1x4x16x16xf32> to vector<4x16x16xf32>
    %c0_19 = arith.constant 0 : index
    %c0_20 = arith.constant 0 : index
    %c0_21 = arith.constant 0 : index
    %c0_22 = arith.constant 0 : index
    %c0_23 = arith.constant 0 : index
    %23 = vector.load %arg8[%c0_19, %c0_20, %c0_21, %c0_22, %c0_23] : memref<1x2x4x16x16xf32, #tpu.memory_space<vmem>>, vector<1x1x4x16x16xf32>
    %24 = vector.shape_cast %23 : vector<1x1x4x16x16xf32> to vector<4x16x16xf32>
    %25 = vector.shape_cast %22 : vector<4x16x16xf32> to vector<1x1x4x16x16xf32>
    tpu.vector_store %arg8[%c0_19, %c0_20, %c0_21, %c0_22, %c0_23], %25 {strides = array<i32>} : memref<1x2x4x16x16xf32, #tpu.memory_space<vmem>>, vector<1x1x4x16x16xf32>,
    %26 = vector.extract_strided_slice %20 {offsets = [1, 0, 0, 0], sizes = [1, 4, 16, 16], strides = [1, 1, 1, 1]} : vector<2x4x16x16xf32> to vector<1x4x16x16xf32>
    %27 = vector.shape_cast %26 : vector<1x4x16x16xf32> to vector<4x16x16xf32>
    %c0_24 = arith.constant 0 : index
    %c1 = arith.constant 1 : index
    %c0_25 = arith.constant 0 : index
    %c0_26 = arith.constant 0 : index
    %c0_27 = arith.constant 0 : index
    %28 = vector.load %arg8[%c0_24, %c1, %c0_25, %c0_26, %c0_27] : memref<1x2x4x16x16xf32, #tpu.memory_space<vmem>>, vector<1x1x4x16x16xf32>
    %29 = vector.shape_cast %28 : vector<1x1x4x16x16xf32> to vector<4x16x16xf32>
    %30 = vector.shape_cast %27 : vector<4x16x16xf32> to vector<1x1x4x16x16xf32>
    tpu.vector_store %arg8[%c0_24, %c1, %c0_25, %c0_26, %c0_27], %30 {strides = array<i32>} : memref<1x2x4x16x16xf32, #tpu.memory_space<vmem>>, vector<1x1x4x16x16xf32>,
    return
  }
  func.func @transform_0(%arg0: i32, %arg1: i32) -> (i32, i32, i32, i32) {
    %c0_i32 = arith.constant 0 : i32
    %c0_i32_0 = arith.constant 0 : i32
    %c0_i32_1 = arith.constant 0 : i32
    return %arg0, %arg1, %c0_i32, %c0_i32_0 : i32, i32, i32, i32
  }
  func.func @transform_1(%arg0: i32, %arg1: i32) -> (i32, i32) {
    %c0_i32 = arith.constant 0 : i32
    %c0_i32_0 = arith.constant 0 : i32
    %c0_i32_1 = arith.constant 0 : i32
    return %c0_i32, %c0_i32_0 : i32, i32
  }
  func.func @transform_2(%arg0: i32, %arg1: i32) -> (i32, i32) {
    %c0_i32 = arith.constant 0 : i32
    %c0_i32_0 = arith.constant 0 : i32
    %c0_i32_1 = arith.constant 0 : i32
    return %c0_i32, %c0_i32_0 : i32, i32
  }
  func.func @transform_3(%arg0: i32, %arg1: i32) -> (i32, i32, i32) {
    %c0_i32 = arith.constant 0 : i32
    %c0_i32_0 = arith.constant 0 : i32
    %c0_i32_1 = arith.constant 0 : i32
    %c0_i32_2 = arith.constant 0 : i32
    return %c0_i32, %c0_i32_0, %c0_i32_1 : i32, i32, i32
  }
  func.func @transform_4(%arg0: i32, %arg1: i32) -> (i32, i32, i32) {
    %c0_i32 = arith.constant 0 : i32
    %c0_i32_0 = arith.constant 0 : i32
    %c0_i32_1 = arith.constant 0 : i32
    %c0_i32_2 = arith.constant 0 : i32
    return %c0_i32, %c0_i32_0, %c0_i32_1 : i32, i32, i32
  }
  func.func @transform_5(%arg0: i32, %arg1: i32) -> (i32, i32, i32) {
    %c0_i32 = arith.constant 0 : i32
    %c0_i32_0 = arith.constant 0 : i32
    %c0_i32_1 = arith.constant 0 : i32
    %c0_i32_2 = arith.constant 0 : i32
    return %c0_i32, %c0_i32_0, %c0_i32_1 : i32, i32, i32
  }
  func.func @transform_6(%arg0: i32, %arg1: i32) -> (i32, i32, i32, i32, i32) {
    %c0_i32 = arith.constant 0 : i32
    %c0_i32_0 = arith.constant 0 : i32
    %c0_i32_1 = arith.constant 0 : i32
    %c0_i32_2 = arith.constant 0 : i32
    return %arg0, %c0_i32, %arg1, %c0_i32_0, %c0_i32_1 : i32, i32, i32, i32, i32
  }
}

module attributes {stable_mosaic.version = 11 : i64} {
  func.func @fad_kernel(%arg0: i32, %arg1: i32, %arg2: memref<1x4x16x16xf32, #tpu.memory_space<vmem>>, %arg3: memref<16x16xf32, #tpu.memory_space<vmem>>, %arg4: memref<16x16xf32, #tpu.memory_space<vmem>>, %arg5: memref<4x16x16xf32, #tpu.memory_space<vmem>>, %arg6: memref<8x16x16xf32, #tpu.memory_space<vmem>>, %arg7: memref<2x16x16xf32, #tpu.memory_space<vmem>>, %arg8: memref<1x2x4x16x16xf32, #tpu.memory_space<vmem>>) attributes {dimension_semantics = [#tpu.dimension_semantics<parallel>, #tpu.dimension_semantics<parallel>], iteration_bounds = array<i64: 2, 1>, scalar_prefetch = 0 : i64, scratch_operands = 0 : i64, tpu.core_type = #tpu.core_type<tc>, window_params = [{transform_indices = @transform_0, window_bounds = array<i64: 1, 4, 16, 16>}, {pipeline_mode = #tpu.pipeline_mode<synchronous>, transform_indices = @transform_1, window_bounds = array<i64: 16, 16>}, {pipeline_mode = #tpu.pipeline_mode<synchronous>, transform_indices = @transform_2, window_bounds = array<i64: 16, 16>}, {pipeline_mode = #tpu.pipeline_mode<synchronous>, transform_indices = @transform_3, window_bounds = array<i64: 4, 16, 16>}, {pipeline_mode = #tpu.pipeline_mode<synchronous>, transform_indices = @transform_4, window_bounds = array<i64: 8, 16, 16>}, {pipeline_mode = #tpu.pipeline_mode<synchronous>, transform_indices = @transform_5, window_bounds = array<i64: 2, 16, 16>}, {transform_indices = @transform_6, window_bounds = array<i64: 1, 2, 4, 16, 16>}]} {
    %c0 = arith.constant 0 : index
    %c0_0 = arith.constant 0 : index
    %c0_1 = arith.constant 0 : index
    %c0_2 = arith.constant 0 : index
    %0 = vector.load %arg2[%c0, %c0_0, %c0_1, %c0_2] : memref<1x4x16x16xf32, #tpu.memory_space<vmem>>, vector<1x4x16x16xf32>
    %1 = vector.shape_cast %0 : vector<1x4x16x16xf32> to vector<4x16x16xf32>
    %c0_3 = arith.constant 0 : index
    %c0_4 = arith.constant 0 : index
    %2 = vector.load %arg3[%c0_3, %c0_4] : memref<16x16xf32, #tpu.memory_space<vmem>>, vector<16x16xf32>
    %c0_5 = arith.constant 0 : index
    %c0_6 = arith.constant 0 : index
    %3 = vector.load %arg4[%c0_5, %c0_6] : memref<16x16xf32, #tpu.memory_space<vmem>>, vector<16x16xf32>
    %c0_7 = arith.constant 0 : index
    %c0_8 = arith.constant 0 : index
    %c0_9 = arith.constant 0 : index
    %4 = vector.load %arg5[%c0_7, %c0_8, %c0_9] : memref<4x16x16xf32, #tpu.memory_space<vmem>>, vector<4x16x16xf32>
    %c0_10 = arith.constant 0 : index
    %c0_11 = arith.constant 0 : index
    %c0_12 = arith.constant 0 : index
    %5 = vector.load %arg6[%c0_10, %c0_11, %c0_12] : memref<8x16x16xf32, #tpu.memory_space<vmem>>, vector<8x16x16xf32>
    %c0_13 = arith.constant 0 : index
    %c0_14 = arith.constant 0 : index
    %c0_15 = arith.constant 0 : index
    %6 = vector.load %arg7[%c0_13, %c0_14, %c0_15] : memref<2x16x16xf32, #tpu.memory_space<vmem>>, vector<2x16x16xf32>
    %7 = vector.shape_cast %1 : vector<4x16x16xf32> to vector<64x16xf32>
    %cst = arith.constant dense<0.000000e+00> : vector<64x16xf32>
    %8 = tpu.matmul %7, %3, %cst {dimension_numbers = #tpu.dot_dimension_numbers<[1], [0], [0], [1], [0, 0, 1, 1], [], []>} : vector<64x16xf32>, vector<16x16xf32>, vector<64x16xf32> -> vector<64x16xf32>
    %9 = vector.shape_cast %8 : vector<64x16xf32> to vector<4x16x16xf32>
    "tpu.trace_start"() <{level = 10 : i32, message = "bij,bjk->bik"}> : () -> ()
    %cst_16 = arith.constant dense<0.000000e+00> : vector<4x16x16xf32>
    %10 = tpu.matmul %4, %9, %cst_16 {dimension_numbers = #tpu.dot_dimension_numbers<[2], [1], [1], [2], [0, 0, 0, 1, 1, 2], [0], [0]>} : vector<4x16x16xf32>, vector<4x16x16xf32>, vector<4x16x16xf32> -> vector<4x16x16xf32>
    "tpu.trace_stop"() : () -> ()
    %11 = vector.shape_cast %6 : vector<2x16x16xf32> to vector<2x1x16x16xf32>
    %12 = vector.shape_cast %10 : vector<4x16x16xf32> to vector<1x4x16x16xf32>
    %13 = vector.broadcast %11 : vector<2x1x16x16xf32> to vector<2x4x16x16xf32>
    %14 = vector.broadcast %12 : vector<1x4x16x16xf32> to vector<2x4x16x16xf32>
    %15 = arith.mulf %13, %14 : vector<2x4x16x16xf32>
    %16 = vector.shape_cast %15 : vector<2x4x16x16xf32> to vector<8x16x16xf32>
    "tpu.trace_start"() <{level = 10 : i32, message = "bij,bjk->bik"}> : () -> ()
    %cst_17 = arith.constant dense<0.000000e+00> : vector<8x16x16xf32>
    %17 = tpu.matmul %5, %16, %cst_17 {dimension_numbers = #tpu.dot_dimension_numbers<[2], [1], [1], [2], [0, 0, 0, 1, 1, 2], [0], [0]>} : vector<8x16x16xf32>, vector<8x16x16xf32>, vector<8x16x16xf32> -> vector<8x16x16xf32>
    "tpu.trace_stop"() : () -> ()
    %18 = vector.shape_cast %17 : vector<8x16x16xf32> to vector<128x16xf32>
    %cst_18 = arith.constant dense<0.000000e+00> : vector<128x16xf32>
    %19 = tpu.matmul %18, %2, %cst_18 {dimension_numbers = #tpu.dot_dimension_numbers<[1], [0], [0], [1], [0, 0, 1, 1], [], []>} : vector<128x16xf32>, vector<16x16xf32>, vector<128x16xf32> -> vector<128x16xf32>
    %20 = vector.shape_cast %19 : vector<128x16xf32> to vector<2x4x16x16xf32>
    %21 = vector.extract_strided_slice %20 {offsets = [0, 0, 0, 0], sizes = [1, 4, 16, 16], strides = [1, 1, 1, 1]} : vector<2x4x16x16xf32> to vector<1x4x16x16xf32>
    %22 = vector.shape_cast %21 : vector<1x4x16x16xf32> to vector<4x16x16xf32>
    %c0_19 = arith.constant 0 : index
    %c0_20 = arith.constant 0 : index
    %c0_21 = arith.constant 0 : index
    %c0_22 = arith.constant 0 : index
    %c0_23 = arith.constant 0 : index
    %23 = vector.load %arg8[%c0_19, %c0_20, %c0_21, %c0_22, %c0_23] : memref<1x2x4x16x16xf32, #tpu.memory_space<vmem>>, vector<1x1x4x16x16xf32>
    %24 = vector.shape_cast %23 : vector<1x1x4x16x16xf32> to vector<4x16x16xf32>
    %25 = vector.shape_cast %22 : vector<4x16x16xf32> to vector<1x1x4x16x16xf32>
    tpu.vector_store %arg8[%c0_19, %c0_20, %c0_21, %c0_22, %c0_23], %25 {strides = array<i32>} : memref<1x2x4x16x16xf32, #tpu.memory_space<vmem>>, vector<1x1x4x16x16xf32>,
    %26 = vector.extract_strided_slice %20 {offsets = [1, 0, 0, 0], sizes = [1, 4, 16, 16], strides = [1, 1, 1, 1]} : vector<2x4x16x16xf32> to vector<1x4x16x16xf32>
    %27 = vector.shape_cast %26 : vector<1x4x16x16xf32> to vector<4x16x16xf32>
    %c0_24 = arith.constant 0 : index
    %c1 = arith.constant 1 : index
    %c0_25 = arith.constant 0 : index
    %c0_26 = arith.constant 0 : index
    %c0_27 = arith.constant 0 : index
    %28 = vector.load %arg8[%c0_24, %c1, %c0_25, %c0_26, %c0_27] : memref<1x2x4x16x16xf32, #tpu.memory_space<vmem>>, vector<1x1x4x16x16xf32>
    %29 = vector.shape_cast %28 : vector<1x1x4x16x16xf32> to vector<4x16x16xf32>
    %30 = vector.shape_cast %27 : vector<4x16x16xf32> to vector<1x1x4x16x16xf32>
    tpu.vector_store %arg8[%c0_24, %c1, %c0_25, %c0_26, %c0_27], %30 {strides = array<i32>} : memref<1x2x4x16x16xf32, #tpu.memory_space<vmem>>, vector<1x1x4x16x16xf32>,
    return
  }
  func.func @transform_0(%arg0: i32, %arg1: i32) -> (i32, i32, i32, i32) {
    %c0_i32 = arith.constant 0 : i32
    %c0_i32_0 = arith.constant 0 : i32
    %c0_i32_1 = arith.constant 0 : i32
    return %arg0, %arg1, %c0_i32, %c0_i32_0 : i32, i32, i32, i32
  }
  func.func @transform_1(%arg0: i32, %arg1: i32) -> (i32, i32) {
    %c0_i32 = arith.constant 0 : i32
    %c0_i32_0 = arith.constant 0 : i32
    %c0_i32_1 = arith.constant 0 : i32
    return %c0_i32, %c0_i32_0 : i32, i32
  }
  func.func @transform_2(%arg0: i32, %arg1: i32) -> (i32, i32) {
    %c0_i32 = arith.constant 0 : i32
    %c0_i32_0 = arith.constant 0 : i32
    %c0_i32_1 = arith.constant 0 : i32
    return %c0_i32, %c0_i32_0 : i32, i32
  }
  func.func @transform_3(%arg0: i32, %arg1: i32) -> (i32, i32, i32) {
    %c0_i32 = arith.constant 0 : i32
    %c0_i32_0 = arith.constant 0 : i32
    %c0_i32_1 = arith.constant 0 : i32
    %c0_i32_2 = arith.constant 0 : i32
    return %c0_i32, %c0_i32_0, %c0_i32_1 : i32, i32, i32
  }
  func.func @transform_4(%arg0: i32, %arg1: i32) -> (i32, i32, i32) {
    %c0_i32 = arith.constant 0 : i32
    %c0_i32_0 = arith.constant 0 : i32
    %c0_i32_1 = arith.constant 0 : i32
    %c0_i32_2 = arith.constant 0 : i32
    return %c0_i32, %c0_i32_0, %c0_i32_1 : i32, i32, i32
  }
  func.func @transform_5(%arg0: i32, %arg1: i32) -> (i32, i32, i32) {
    %c0_i32 = arith.constant 0 : i32
    %c0_i32_0 = arith.constant 0 : i32
    %c0_i32_1 = arith.constant 0 : i32
    %c0_i32_2 = arith.constant 0 : i32
    return %c0_i32, %c0_i32_0, %c0_i32_1 : i32, i32, i32
  }
  func.func @transform_6(%arg0: i32, %arg1: i32) -> (i32, i32, i32, i32, i32) {
    %c0_i32 = arith.constant 0 : i32
    %c0_i32_0 = arith.constant 0 : i32
    %c0_i32_1 = arith.constant 0 : i32
    %c0_i32_2 = arith.constant 0 : i32
    return %arg0, %c0_i32, %arg1, %c0_i32_0, %c0_i32_1 : i32, i32, i32, i32, i32
  }
}

</mosaic_0001>

<llo_original>
// kernel: tpu_custom_call.1
$region0: #{tpu_custom_call.1}
  #allocation0 [shape = 'u32[]', space=smem, size = 0x4, offset = 0x4, fixed_abs, tag = 'smem constant byte address 0x4 - core index']
  #allocation1 [shape = 'u32[144,128]{1,0:T(1,128)}', space=vmem, size = 0x12000, scoped, tag = 'internal scratch']
  %s0 = inlined_call_operand.hbm [shape: f32[2,4,16,16], index: 0, kind: input, shape index: {}]
  %s1 = inlined_call_operand.hbm [shape: f32[16,16], index: 1, kind: input, shape index: {}]
  %s2 = inlined_call_operand.hbm [shape: f32[16,16], index: 2, kind: input, shape index: {}]
  %s3 = inlined_call_operand.hbm [shape: f32[4,16,16], index: 3, kind: input, shape index: {}]
  %s4 = inlined_call_operand.hbm [shape: f32[8,16,16], index: 4, kind: input, shape index: {}]
  %s5 = inlined_call_operand.hbm [shape: f32[2,16,16], index: 5, kind: input, shape index: {}]
  %s6 = inlined_call_operand.hbm [shape: f32[2,2,4,16,16], index: 6, kind: output, shape index: {}]
  %s7 = sld [smem:[#allocation0]]
  $region81: #{tpu_custom_call.1} parent=0
    _
  %s9 = ssub.s32 1, %s7
  %s10 = scalar_select 0, %s9, %s7
  $region1: #{tpu_custom_call.1} parent=0
    #allocation2 [shape = 'u8[65536]{0}', space=vmem, size = 0x10000, scoped, tag = 'input window, operand 0']
    #allocation3 [shape = 's32[2]{0}', space=sflag, size = 0x8, scoped, tag = 'scoped memory for tpu_custom_call.1']
    #allocation4 [shape = 's32[2]{0}', space=sflag, size = 0x8, scoped, tag = 'scoped memory for tpu_custom_call.1']
    #allocation5 [shape = 'u8[8192]{0}', space=vmem, size = 0x2000, scoped, tag = 'input window, operand 1, single buffered']
    #allocation6 [shape = 's32[1]{0}', space=sflag, size = 0x4, scoped, tag = 'scoped memory for tpu_custom_call.1']
    #allocation7 [shape = 'u8[8192]{0}', space=vmem, size = 0x2000, scoped, tag = 'input window, operand 2, single buffered']
    #allocation8 [shape = 'u8[32768]{0}', space=vmem, size = 0x8000, scoped, tag = 'input window, operand 3, single buffered']
    #allocation9 [shape = 's32[1]{0}', space=sflag, size = 0x4, scoped, tag = 'scoped memory for tpu_custom_call.1']
    #allocation10 [shape = 'u8[65536]{0}', space=vmem, size = 0x10000, scoped, tag = 'input window, operand 4, single buffered']
    #allocation11 [shape = 'u8[16384]{0}', space=vmem, size = 0x4000, scoped, tag = 'input window, operand 5, single buffered']
    #allocation12 [shape = 's32[1]{0}', space=sflag, size = 0x4, scoped, tag = 'scoped memory for tpu_custom_call.1']
    #allocation13 [shape = 'u8[131072]{0}', space=vmem, size = 0x20000, scoped, tag = 'output window, operand 0']
    %11 = vsyncpa [#allocation3], 0
    %s12 = scalar_lea.sflag [#allocation3], 1
    %13 = vsyncpa %s12, 0
    %14 = vsyncpa [#allocation6], 0
    %15 = vsyncpa [#allocation9], 0
    %16 = vsyncpa [#allocation12], 0
    %17 = vsyncpa [#allocation4], 0
    %s18 = scalar_lea.sflag [#allocation4], 1
    %19 = vsyncpa %s18, 0
    loop: start=0, step=1, limit=4
    $region2: #{tpu_custom_call.1} parent=1 // loop_pre_header
      _
    $region3: #{tpu_custom_call.1} parent=1 // loop_header
      %s21 = sphi 0, %s25
      %p22 = scmp.ge.s32.totalorder %s21, 4
      %s28 = sphi 0, %s40
      %s29 = sphi 0, %s36
      %s30 = sphi 0, %s28
      %s31 = sphi 0, %s29
      %s32 = sphi 0, %s30
      %s33 = sphi 0, %s31
      %s45 = sphi 0, %s47
      %s48 = sphi 0, %s45
      %s49 = sphi 0, %s48
      %s65 = sphi 0, %s49
      %s69 = sphi 0, %s69
      %s71 = sphi 0, %s69
      %s72 = sphi 0, %s71
      %s86 = sphi 0, %s72
      %s90 = sphi 0, %s90
      %s92 = sphi 0, %s90
      %s93 = sphi 0, %s92
      %s107 = sphi 0, %s93
      %s111 = sphi 0, %s111
      %s113 = sphi 0, %s111
      %s114 = sphi 0, %s113
      %s128 = sphi 0, %s114
      %s132 = sphi 0, %s132
      %s134 = sphi 0, %s132
      %s135 = sphi 0, %s134
      %s149 = sphi 0, %s135
      %s153 = sphi 0, %s153
      %s155 = sphi 0, %s153
      %s156 = sphi 0, %s155
      %s170 = sphi 0, %s156
      %s178 = sphi 0, %s180
      %s181 = sphi 0, %s178
      %s182 = sphi 0, %s181
      %s198 = sphi 0, %s182
    $region4: #{tpu_custom_call.1} parent=1 // loop_header_branch
      %24 = sbr.rel (%p22) target = $region8
    $region5: #{tpu_custom_call.1} parent=1 // loop_body
      %s26 = ssub.s32 %s21, 1
      %s27 = ssub.s32 %s21, 2
      %s34 = sadd.s32 1, %s29
      %p35 = scmp.ge.s32.totalorder %s34, 1
      %s36 = scalar_select %p35, 0, %s34
      %s37 = sadd.s32 1, %s28
      %s38 = scalar_select %p35, %s37, %s28
      %p39 = scmp.ge.s32.totalorder %s38, 2
      %s40 = scalar_select %p39, 0, %s38
      %s41 = ssub.s32 %s28, %s40
      %s42 = ssub.s32 %s29, %s36
      %s43 = sor.u32 %s41, %s42
      %p44 = scmp.eq.s32.totalorder %s43, 0
      %s46 = sadd.s32 %s45, 1
      %s47 = scalar_select %p44, %s45, %s46
      %p50 = pneg %p44
      %p51 = scmp.eq.s32.totalorder %s21, 1
      %p52 = por %p50, %p51
      %p53 = scmp.ne.s32.totalorder %s45, %s48
      %p54 = scmp.eq.s32.totalorder %s21, 0
      %p55 = por %p53, %p54
      %p56 = scmp.ne.s32.totalorder %s45, %s48
      %p57 = scmp.eq.s32.totalorder %s26, 1
      %p58 = por %p56, %p57
      %p59 = scmp.ne.s32.totalorder %s48, %s49
      %p60 = scmp.eq.s32.totalorder %s26, 0
      %p61 = por %p59, %p60
      %p62 = scmp.ne.s32.totalorder %s48, %s49
      %p63 = scmp.eq.s32.totalorder %s27, 1
      %p64 = por %p62, %p63
      %p66 = scmp.ne.s32.totalorder %s49, %s65
      %p67 = scmp.eq.s32.totalorder %s27, 0
      %p68 = por %p66, %p67
      %s70 = sadd.s32 %s69, 1
      %p73 = scmp.eq.s32.totalorder %s21, 1
      %p74 = scmp.ne.s32.totalorder %s69, %s71
      %p75 = scmp.eq.s32.totalorder %s21, 0
      %p76 = por %p74, %p75
      %p77 = scmp.ne.s32.totalorder %s69, %s71
      %p78 = scmp.eq.s32.totalorder %s26, 1
      %p79 = por %p77, %p78
      %p80 = scmp.ne.s32.totalorder %s71, %s72
      %p81 = scmp.eq.s32.totalorder %s26, 0
      %p82 = por %p80, %p81
      %p83 = scmp.ne.s32.totalorder %s71, %s72
      %p84 = scmp.eq.s32.totalorder %s27, 1
      %p85 = por %p83, %p84
      %p87 = scmp.ne.s32.totalorder %s72, %s86
      %p88 = scmp.eq.s32.totalorder %s27, 0
      %p89 = por %p87, %p88
      %s91 = sadd.s32 %s90, 1
      %p94 = scmp.eq.s32.totalorder %s21, 1
      %p95 = scmp.ne.s32.totalorder %s90, %s92
      %p96 = scmp.eq.s32.totalorder %s21, 0
      %p97 = por %p95, %p96
      %p98 = scmp.ne.s32.totalorder %s90, %s92
      %p99 = scmp.eq.s32.totalorder %s26, 1
      %p100 = por %p98, %p99
      %p101 = scmp.ne.s32.totalorder %s92, %s93
      %p102 = scmp.eq.s32.totalorder %s26, 0
      %p103 = por %p101, %p102
      %p104 = scmp.ne.s32.totalorder %s92, %s93
      %p105 = scmp.eq.s32.totalorder %s27, 1
      %p106 = por %p104, %p105
      %p108 = scmp.ne.s32.totalorder %s93, %s107
      %p109 = scmp.eq.s32.totalorder %s27, 0
      %p110 = por %p108, %p109
      %s112 = sadd.s32 %s111, 1
      %p115 = scmp.eq.s32.totalorder %s21, 1
      %p116 = scmp.ne.s32.totalorder %s111, %s113
      %p117 = scmp.eq.s32.totalorder %s21, 0
      %p118 = por %p116, %p117
      %p119 = scmp.ne.s32.totalorder %s111, %s113
      %p120 = scmp.eq.s32.totalorder %s26, 1
      %p121 = por %p119, %p120
      %p122 = scmp.ne.s32.totalorder %s113, %s114
      %p123 = scmp.eq.s32.totalorder %s26, 0
      %p124 = por %p122, %p123
      %p125 = scmp.ne.s32.totalorder %s113, %s114
      %p126 = scmp.eq.s32.totalorder %s27, 1
      %p127 = por %p125, %p126
      %p129 = scmp.ne.s32.totalorder %s114, %s128
      %p130 = scmp.eq.s32.totalorder %s27, 0
      %p131 = por %p129, %p130
      %s133 = sadd.s32 %s132, 1
      %p136 = scmp.eq.s32.totalorder %s21, 1
      %p137 = scmp.ne.s32.totalorder %s132, %s134
      %p138 = scmp.eq.s32.totalorder %s21, 0
      %p139 = por %p137, %p138
      %p140 = scmp.ne.s32.totalorder %s132, %s134
      %p141 = scmp.eq.s32.totalorder %s26, 1
      %p142 = por %p140, %p141
      %p143 = scmp.ne.s32.totalorder %s134, %s135
      %p144 = scmp.eq.s32.totalorder %s26, 0
      %p145 = por %p143, %p144
      %p146 = scmp.ne.s32.totalorder %s134, %s135
      %p147 = scmp.eq.s32.totalorder %s27, 1
      %p148 = por %p146, %p147
      %p150 = scmp.ne.s32.totalorder %s135, %s149
      %p151 = scmp.eq.s32.totalorder %s27, 0
      %p152 = por %p150, %p151
      %s154 = sadd.s32 %s153, 1
      %p157 = scmp.eq.s32.totalorder %s21, 1
      %p158 = scmp.ne.s32.totalorder %s153, %s155
      %p159 = scmp.eq.s32.totalorder %s21, 0
      %p160 = por %p158, %p159
      %p161 = scmp.ne.s32.totalorder %s153, %s155
      %p162 = scmp.eq.s32.totalorder %s26, 1
      %p163 = por %p161, %p162
      %p164 = scmp.ne.s32.totalorder %s155, %s156
      %p165 = scmp.eq.s32.totalorder %s26, 0
      %p166 = por %p164, %p165
      %p167 = scmp.ne.s32.totalorder %s155, %s156
      %p168 = scmp.eq.s32.totalorder %s27, 1
      %p169 = por %p167, %p168
      %p171 = scmp.ne.s32.totalorder %s156, %s170
      %p172 = scmp.eq.s32.totalorder %s27, 0
      %p173 = por %p171, %p172
      %s174 = ssub.s32 %s28, %s40
      %s175 = ssub.s32 %s29, %s36
      %s176 = sor.u32 %s174, %s175
      %p177 = scmp.eq.s32.totalorder %s176, 0
      %s179 = sadd.s32 %s178, 1
      %s180 = scalar_select %p177, %s178, %s179
      %p183 = pneg %p177
      %p184 = scmp.eq.s32.totalorder %s21, 1
      %p185 = por %p183, %p184
      %p186 = scmp.ne.s32.totalorder %s178, %s181
      %p187 = scmp.eq.s32.totalorder %s21, 0
      %p188 = por %p186, %p187
      %p189 = scmp.ne.s32.totalorder %s178, %s181
      %p190 = scmp.eq.s32.totalorder %s26, 1
      %p191 = por %p189, %p190
      %p192 = scmp.ne.s32.totalorder %s181, %s182
      %p193 = scmp.eq.s32.totalorder %s26, 0
      %p194 = por %p192, %p193
      %p195 = scmp.ne.s32.totalorder %s181, %s182
      %p196 = scmp.eq.s32.totalorder %s27, 1
      %p197 = por %p195, %p196
      %p199 = scmp.ne.s32.totalorder %s182, %s198
      %p200 = scmp.eq.s32.totalorder %s27, 0
      %p201 = por %p199, %p200
      %p202 = scmp.le.s32.totalorder 1, %s21
      %p203 = scmp.lt.s32.totalorder %s21, 3
      %p204 = pnand %p202, %p203
      %p205 = pneg %p204
      // Predicated region
      $region9: #{tpu_custom_call.1} parent=5 // pred_check
        _
      $region10: #{tpu_custom_call.1} parent=5 // pred_check_branch
        %207 = sbr.rel (%p204) target = $region12
      $region11: #{tpu_custom_call.1} parent=5 // pred_region
        %s208 = ssub.s32 %s21, 1
        // Predicated region
        $region13: #{tpu_custom_call.1} parent=11 // pred_check
          %p209 = pneg %p82
        $region14: #{tpu_custom_call.1} parent=11 // pred_check_branch
          %211 = sbr.rel (%p209) target = $region16
        $region15: #{tpu_custom_call.1} parent=11 // pred_region
          %s213 = ssub.s32 256, 256
          %214 = vsyncadd [#allocation6], %s213
          %s215 = sshll.u32 [#allocation5], 4
          %s216 = int_to_ptr.vmem [resolvable:$true] %s215
          %221 = dma.hbm_to_vmem [thread:$0]  %s1, 256, %s216, [#allocation6], 128, 128, 8
        $region16: #{tpu_custom_call.1} parent=11 // pred_fallthru
          _
        // Predicated region
        $region17: #{tpu_custom_call.1} parent=11 // pred_check
          %p222 = pneg %p103
        $region18: #{tpu_custom_call.1} parent=11 // pred_check_branch
          %224 = sbr.rel (%p222) target = $region20
        $region19: #{tpu_custom_call.1} parent=11 // pred_region
          %s226 = ssub.s32 256, 256
          %227 = vsyncadd [#allocation6], %s226
          %s228 = sshll.u32 [#allocation7], 4
          %s229 = int_to_ptr.vmem [resolvable:$true] %s228
          %234 = dma.hbm_to_vmem [thread:$0]  %s2, 256, %s229, [#allocation6], 128, 128, 8
        $region20: #{tpu_custom_call.1} parent=11 // pred_fallthru
          _
        // Predicated region
        $region21: #{tpu_custom_call.1} parent=11 // pred_check
          %p235 = pneg %p124
        $region22: #{tpu_custom_call.1} parent=11 // pred_check_branch
          %237 = sbr.rel (%p235) target = $region24
        $region23: #{tpu_custom_call.1} parent=11 // pred_region
          %s239 = ssub.s32 1024, 1024
          %240 = vsyncadd [#allocation9], %s239
          %s241 = sshll.u32 [#allocation8], 4
          %s242 = int_to_ptr.vmem [resolvable:$true] %s241
          %247 = dma.hbm_to_vmem [thread:$0]  %s3, 1024, %s242, [#allocation9], 128, 128, 8
        $region24: #{tpu_custom_call.1} parent=11 // pred_fallthru
          _
        // Predicated region
        $region25: #{tpu_custom_call.1} parent=11 // pred_check
          %p248 = pneg %p145
        $region26: #{tpu_custom_call.1} parent=11 // pred_check_branch
          %250 = sbr.rel (%p248) target = $region28
        $region27: #{tpu_custom_call.1} parent=11 // pred_region
          %s252 = ssub.s32 2048, 2048
          %253 = vsyncadd [#allocation9], %s252
          %s254 = sshll.u32 [#allocation10], 4
          %s255 = int_to_ptr.vmem [resolvable:$true] %s254
          %260 = dma.hbm_to_vmem [thread:$0]  %s4, 2048, %s255, [#allocation9], 128, 128, 8
        $region28: #{tpu_custom_call.1} parent=11 // pred_fallthru
          _
        // Predicated region
        $region29: #{tpu_custom_call.1} parent=11 // pred_check
          %p261 = pneg %p166
        $region30: #{tpu_custom_call.1} parent=11 // pred_check_branch
          %263 = sbr.rel (%p261) target = $region32
        $region31: #{tpu_custom_call.1} parent=11 // pred_region
          %s265 = ssub.s32 512, 512
          %266 = vsyncadd [#allocation12], %s265
          %s267 = sshll.u32 [#allocation11], 4
          %s268 = int_to_ptr.vmem [resolvable:$true] %s267
          %273 = dma.hbm_to_vmem [thread:$0]  %s5, 512, %s268, [#allocation12], 128, 128, 8
        $region32: #{tpu_custom_call.1} parent=11 // pred_fallthru
          _
      $region12: #{tpu_custom_call.1} parent=5 // pred_fallthru
        _
      %p274 = scmp.lt.s32.totalorder %s21, 2
      // Predicated region
      $region33: #{tpu_custom_call.1} parent=5 // pred_check
        %p275 = pneg %p274
      $region34: #{tpu_custom_call.1} parent=5 // pred_check_branch
        %277 = sbr.rel (%p275) target = $region36
      $region35: #{tpu_custom_call.1} parent=5 // pred_region
        // Predicated region
        $region37: #{tpu_custom_call.1} parent=35 // pred_check
          %p278 = pneg %p55
        $region38: #{tpu_custom_call.1} parent=35 // pred_check_branch
          %280 = sbr.rel (%p278) target = $region40
        $region39: #{tpu_custom_call.1} parent=35 // pred_region
          %s281 = sand.u32 %s45, 1
          %s282 = scalar_lea.sflag [#allocation3], %s281
          %s283 = sand.u32 %s45, 1
          %s284 = smul.addr %s283, 64
          %s285 = scalar_lea.vmem [#allocation2], %s284
          %s286 = smul.u32 4, %s29
          %s288 = ssub.s32 1024, 1024
          %289 = vsyncadd %s282, %s288
          %s290 = smul.addr %s286, 2
          %s291 = smul.addr %s28, 8
          %s292 = sadd.s32 %s290, %s291
          %s293 = smul.addr %s292, 128
          %s294 = scalar_lea.hbm %s0, %s293
          %s295 = sshll.u32 %s285, 4
          %s296 = int_to_ptr.vmem [resolvable:$true] %s295
          %301 = dma.hbm_to_vmem [thread:$0]  %s294, 1024, %s296, %s282, 128, 128, 8
        $region40: #{tpu_custom_call.1} parent=35 // pred_fallthru
          _
      $region36: #{tpu_custom_call.1} parent=5 // pred_fallthru
        _
      %p302 = scmp.le.s32.totalorder 1, %s21
      %p303 = scmp.lt.s32.totalorder %s21, 3
      %p304 = pnand %p302, %p303
      %p305 = pneg %p304
      // Predicated region
      $region41: #{tpu_custom_call.1} parent=5 // pred_check
        _
      $region42: #{tpu_custom_call.1} parent=5 // pred_check_branch
        %307 = sbr.rel (%p304) target = $region44
      $region43: #{tpu_custom_call.1} parent=5 // pred_region
        %s308 = ssub.s32 %s21, 1
        %s309 = sand.u32 %s48, 1
        %s310 = scalar_lea.sflag [#allocation3], %s309
        %s311 = sand.u32 %s48, 1
        %s312 = smul.addr %s311, 64
        %s313 = scalar_lea.vmem [#allocation2], %s312
        // Predicated region
        $region45: #{tpu_custom_call.1} parent=43 // pred_check
          %p314 = pneg %p61
        $region46: #{tpu_custom_call.1} parent=43 // pred_check_branch
          %316 = sbr.rel (%p314) target = $region48
        $region47: #{tpu_custom_call.1} parent=43 // pred_region
          %317 = dma.done %s310, 1024
        $region48: #{tpu_custom_call.1} parent=43 // pred_fallthru
          _
        // Predicated region
        $region49: #{tpu_custom_call.1} parent=43 // pred_check
          %p318 = pneg %p82
        $region50: #{tpu_custom_call.1} parent=43 // pred_check_branch
          %320 = sbr.rel (%p318) target = $region52
        $region51: #{tpu_custom_call.1} parent=43 // pred_region
          %321 = dma.done [#allocation6], 256
        $region52: #{tpu_custom_call.1} parent=43 // pred_fallthru
          _
        // Predicated region
        $region53: #{tpu_custom_call.1} parent=43 // pred_check
          %p322 = pneg %p103
        $region54: #{tpu_custom_call.1} parent=43 // pred_check_branch
          %324 = sbr.rel (%p322) target = $region56
        $region55: #{tpu_custom_call.1} parent=43 // pred_region
          %325 = dma.done [#allocation6], 256
        $region56: #{tpu_custom_call.1} parent=43 // pred_fallthru
          _
        // Predicated region
        $region57: #{tpu_custom_call.1} parent=43 // pred_check
          %p326 = pneg %p124
        $region58: #{tpu_custom_call.1} parent=43 // pred_check_branch
          %328 = sbr.rel (%p326) target = $region60
        $region59: #{tpu_custom_call.1} parent=43 // pred_region
          %329 = dma.done [#allocation9], 1024
        $region60: #{tpu_custom_call.1} parent=43 // pred_fallthru
          _
        // Predicated region
        $region61: #{tpu_custom_call.1} parent=43 // pred_check
          %p330 = pneg %p145
        $region62: #{tpu_custom_call.1} parent=43 // pred_check_branch
          %332 = sbr.rel (%p330) target = $region64
        $region63: #{tpu_custom_call.1} parent=43 // pred_region
          %333 = dma.done [#allocation9], 2048
        $region64: #{tpu_custom_call.1} parent=43 // pred_fallthru
          _
        // Predicated region
        $region65: #{tpu_custom_call.1} parent=43 // pred_check
          %p334 = pneg %p166
        $region66: #{tpu_custom_call.1} parent=43 // pred_check_branch
          %336 = sbr.rel (%p334) target = $region68
        $region67: #{tpu_custom_call.1} parent=43 // pred_region
          %337 = dma.done [#allocation12], 512
        $region68: #{tpu_custom_call.1} parent=43 // pred_fallthru
          _
        %s338 = sand.u32 %s48, 1
        %s339 = scalar_lea.sflag [#allocation3], %s338
        %s340 = sand.u32 %s48, 1
        %s341 = smul.addr %s340, 64
        %s342 = scalar_lea.vmem [#allocation2], %s341
        %p343 = pneg %p61
        %p344 = pneg %p58
        %p345 = pneg %p82
        %p346 = pneg %p79
        %p347 = pneg %p103
        %p348 = pneg %p100
        %p349 = pneg %p124
        %p350 = pneg %p121
        %p351 = pneg %p145
        %p352 = pneg %p142
        %p353 = pneg %p166
        %p354 = pneg %p163
        %p355 = pneg %p194
        %p356 = pneg %p191
        %s357 = sand.u32 %s181, 1
        %s358 = scalar_lea.sflag [#allocation4], %s357
        %s359 = sand.u32 %s181, 1
        %s360 = smul.addr %s359, 128
        %s361 = scalar_lea.vmem [#allocation13], %s360
        %s362 = smul.u32 4, %s31
        %s363 = smul.u32 4, %s31
        %v364 = vld [vmem:[%s313] sm:$0xff]
        %v365 = vld [vmem:[%s313 + $0x8] sm:$0xff]
        %v366 = vld [vmem:[%s313 + $0x10] sm:$0xff]
        %v367 = vld [vmem:[%s313 + $0x18] sm:$0xff]
        %v368 = vld [vmem:[%s313 + $0x20] sm:$0xff]
        %v369 = vld [vmem:[%s313 + $0x28] sm:$0xff]
        %v370 = vld [vmem:[%s313 + $0x30] sm:$0xff]
        %v371 = vld [vmem:[%s313 + $0x38] sm:$0xff]
        %v372 = vld [vmem:[#allocation5] sm:$0xff]
        %v373 = vld [vmem:[#allocation5 + $0x8] sm:$0xff]
        %v374 = vld [vmem:[#allocation7] sm:$0xff]
        %v375 = vld [vmem:[#allocation7 + $0x8] sm:$0xff]
        %v376 = vld [vmem:[#allocation8] sm:$0xff]
        %v377 = vld [vmem:[#allocation8 + $0x8] sm:$0xff]
        %v378 = vld [vmem:[#allocation8 + $0x10] sm:$0xff]
        %v379 = vld [vmem:[#allocation8 + $0x18] sm:$0xff]
        %v380 = vld [vmem:[#allocation8 + $0x20] sm:$0xff]
        %v381 = vld [vmem:[#allocation8 + $0x28] sm:$0xff]
        %v382 = vld [vmem:[#allocation8 + $0x30] sm:$0xff]
        %v383 = vld [vmem:[#allocation8 + $0x38] sm:$0xff]
        %v384 = vld [vmem:[#allocation10] sm:$0xff]
        %v385 = vld [vmem:[#allocation10 + $0x8] sm:$0xff]
        %v386 = vld [vmem:[#allocation10 + $0x10] sm:$0xff]
        %v387 = vld [vmem:[#allocation10 + $0x18] sm:$0xff]
        %v388 = vld [vmem:[#allocation10 + $0x20] sm:$0xff]
        %v389 = vld [vmem:[#allocation10 + $0x28] sm:$0xff]
        %v390 = vld [vmem:[#allocation10 + $0x30] sm:$0xff]
        %v391 = vld [vmem:[#allocation10 + $0x38] sm:$0xff]
        %v392 = vld [vmem:[#allocation10 + $0x40] sm:$0xff]
        %v393 = vld [vmem:[#allocation10 + $0x48] sm:$0xff]
        %v394 = vld [vmem:[#allocation10 + $0x50] sm:$0xff]
        %v395 = vld [vmem:[#allocation10 + $0x58] sm:$0xff]
        %v396 = vld [vmem:[#allocation10 + $0x60] sm:$0xff]
        %v397 = vld [vmem:[#allocation10 + $0x68] sm:$0xff]
        %v398 = vld [vmem:[#allocation10 + $0x70] sm:$0xff]
        %v399 = vld [vmem:[#allocation10 + $0x78] sm:$0xff]
        %v400 = vld [vmem:[#allocation11] sm:$0xff]
        %v401 = vld [vmem:[#allocation11 + $0x8] sm:$0xff]
        %v402 = vld [vmem:[#allocation11 + $0x10] sm:$0xff]
        %v403 = vld [vmem:[#allocation11 + $0x18] sm:$0xff]
        %vm404 = vcmask 130048
        %v406 = vsel %vm404, %v364, 0
        %v409 = vsel %vm404, %v365, 0
        %v412 = vsel %vm404, %v366, 0
        %v415 = vsel %vm404, %v367, 0
        %v418 = vsel %vm404, %v368, 0
        %v421 = vsel %vm404, %v369, 0
        %v424 = vsel %vm404, %v370, 0
        %v427 = vsel %vm404, %v371, 0
        %429 = vmatprep.subr.mxu0 0.0
        %430 = vmatpush1.msra.mxu0 %v374
        %431 = vmatprep.subr.mxu0 0.0
        %432 = vmatpush1.msra.mxu0 %v375
        %433 = vmatprep.subr.mxu0 0.0
        %434 = vmatpush1.msra.mxu0 0.0
        %435 = vmatprep.subr.mxu0 0.0
        %436 = vmatpush1.msra.mxu0 0.0
        %437 = vmatprep.subr.mxu0 0.0
        %438 = vmatpush1.msra.mxu0 0.0
        %439 = vmatprep.subr.mxu0 0.0
        %440 = vmatpush1.msra.mxu0 0.0
        %441 = vmatprep.subr.mxu0 0.0
        %442 = vmatpush1.msra.mxu0 0.0
        %443 = vmatprep.subr.mxu0 0.0
        %444 = vmatpush1.msra.mxu0 0.0
        %445 = vmatprep.subr.mxu0 0.0
        %446 = vmatpush1.msra.mxu0 0.0
        %447 = vmatprep.subr.mxu0 0.0
        %448 = vmatpush1.msra.mxu0 0.0
        %449 = vmatprep.subr.mxu0 0.0
        %450 = vmatpush1.msra.mxu0 0.0
        %451 = vmatprep.subr.mxu0 0.0
        %452 = vmatpush1.msra.mxu0 0.0
        %453 = vmatprep.subr.mxu0 0.0
        %454 = vmatpush1.msra.mxu0 0.0
        %455 = vmatprep.subr.mxu0 0.0
        %456 = vmatpush1.msra.mxu0 0.0
        %457 = vmatprep.subr.mxu0 0.0
        %458 = vmatpush1.msra.mxu0 0.0
        %459 = vmatprep.subr.mxu0 0.0
        %460 = vmatpush1.msra.mxu0 0.0
        %461 = vmatprep.subr.mxu0 0.0
        %462 = vmatpush1.msra.mxu0 0.0
        %463 = vmatprep.subr.mxu0 0.0
        %464 = vmatpush1.msra.mxu0 0.0
        %465 = vmatprep.subr.mxu0 0.0
        %466 = vmatpush1.msra.mxu0 0.0
        %467 = vmatprep.subr.mxu0 0.0
        %468 = vmatpush1.msra.mxu0 0.0
        %469 = vmatprep.subr.mxu0 0.0
        %470 = vmatpush1.msra.mxu0 0.0
        %471 = vmatprep.subr.mxu0 0.0
        %472 = vmatpush1.msra.mxu0 0.0
        %473 = vmatprep.subr.mxu0 0.0
        %474 = vmatpush1.msra.mxu0 0.0
        %475 = vmatprep.subr.mxu0 0.0
        %476 = vmatpush1.msra.mxu0 0.0
        %477 = vmatprep.subr.mxu0 0.0
        %478 = vmatpush1.msra.mxu0 0.0
        %479 = vmatprep.subr.mxu0 0.0
        %480 = vmatpush1.msra.mxu0 0.0
        %481 = vmatprep.subr.mxu0 0.0
        %482 = vmatpush1.msra.mxu0 0.0
        %483 = vmatprep.subr.mxu0 0.0
        %484 = vmatpush1.msra.mxu0 0.0
        %485 = vmatprep.subr.mxu0 0.0
        %486 = vmatpush1.msra.mxu0 0.0
        %487 = vmatprep.subr.mxu0 0.0
        %488 = vmatpush1.msra.mxu0 0.0
        %489 = vmatprep.subr.mxu0 0.0
        %490 = vmatpush1.msra.mxu0 0.0
        %491 = vmatprep.subr.mxu0 0.0
        %492 = vmatpush1.msra.mxu0 0.0
        %493 = vmatprep.mubr.f32.mxu0 0.0
        %494 = vmatmul.mubr.f32.gmra.mrb[0].mxu0 %v406
        %v495 = vpop.f32.mrb[0].mxu0
        %v496 = vadd.f32 0.0, %v495
        %v497 = vpop.f32.mrb[0].mxu0
        %498 = vmatprep.mubr.f32.mxu0 0.0
        %499 = vmatmul.mubr.f32.gmra.mrb[0].mxu0 %v409
        %v500 = vpop.f32.mrb[0].mxu0
        %v501 = vadd.f32 0.0, %v500
        %v502 = vpop.f32.mrb[0].mxu0
        %503 = vmatprep.mubr.f32.mxu0 0.0
        %504 = vmatmul.mubr.f32.gmra.mrb[0].mxu0 %v412
        %v505 = vpop.f32.mrb[0].mxu0
        %v506 = vadd.f32 0.0, %v505
        %v507 = vpop.f32.mrb[0].mxu0
        %508 = vmatprep.mubr.f32.mxu0 0.0
        %509 = vmatmul.mubr.f32.gmra.mrb[0].mxu0 %v415
        %v510 = vpop.f32.mrb[0].mxu0
        %v511 = vadd.f32 0.0, %v510
        %v512 = vpop.f32.mrb[0].mxu0
        %513 = vmatprep.mubr.f32.mxu0 0.0
        %514 = vmatmul.mubr.f32.gmra.mrb[0].mxu0 %v418
        %v515 = vpop.f32.mrb[0].mxu0
        %v516 = vadd.f32 0.0, %v515
        %v517 = vpop.f32.mrb[0].mxu0
        %518 = vmatprep.mubr.f32.mxu0 0.0
        %519 = vmatmul.mubr.f32.gmra.mrb[0].mxu0 %v421
        %v520 = vpop.f32.mrb[0].mxu0
        %v521 = vadd.f32 0.0, %v520
        %v522 = vpop.f32.mrb[0].mxu0
        %523 = vmatprep.mubr.f32.mxu0 0.0
        %524 = vmatmul.mubr.f32.gmra.mrb[0].mxu0 %v424
        %v525 = vpop.f32.mrb[0].mxu0
        %v526 = vadd.f32 0.0, %v525
        %v527 = vpop.f32.mrb[0].mxu0
        %528 = vmatprep.mubr.f32.mxu0 0.0
        %529 = vmatmul.mubr.f32.gmra.mrb[0].mxu0 %v427
        %v530 = vpop.f32.mrb[0].mxu0
        %v531 = vadd.f32 0.0, %v530
        %v532 = vpop.f32.mrb[0].mxu0
        %533 = vdwg.mxu0
        %v535 = vsel %vm404, %v376, 0
        %v538 = vsel %vm404, %v377, 0
        %540 = vmatprep.subr.mxu0 0.0
        %541 = vmatpush1.msra.mxu0 %v496
        %542 = vmatprep.subr.mxu0 0.0
        %543 = vmatpush1.msra.mxu0 %v501
        %544 = vmatprep.subr.mxu0 0.0
        %545 = vmatpush1.msra.mxu0 0.0
        %546 = vmatprep.subr.mxu0 0.0
        %547 = vmatpush1.msra.mxu0 0.0
        %548 = vmatprep.subr.mxu0 0.0
        %549 = vmatpush1.msra.mxu0 0.0
        %550 = vmatprep.subr.mxu0 0.0
        %551 = vmatpush1.msra.mxu0 0.0
        %552 = vmatprep.subr.mxu0 0.0
        %553 = vmatpush1.msra.mxu0 0.0
        %554 = vmatprep.subr.mxu0 0.0
        %555 = vmatpush1.msra.mxu0 0.0
        %556 = vmatprep.subr.mxu0 0.0
        %557 = vmatpush1.msra.mxu0 0.0
        %558 = vmatprep.subr.mxu0 0.0
        %559 = vmatpush1.msra.mxu0 0.0
        %560 = vmatprep.subr.mxu0 0.0
        %561 = vmatpush1.msra.mxu0 0.0
        %562 = vmatprep.subr.mxu0 0.0
        %563 = vmatpush1.msra.mxu0 0.0
        %564 = vmatprep.subr.mxu0 0.0
        %565 = vmatpush1.msra.mxu0 0.0
        %566 = vmatprep.subr.mxu0 0.0
        %567 = vmatpush1.msra.mxu0 0.0
        %568 = vmatprep.subr.mxu0 0.0
        %569 = vmatpush1.msra.mxu0 0.0
        %570 = vmatprep.subr.mxu0 0.0
        %571 = vmatpush1.msra.mxu0 0.0
        %572 = vmatprep.subr.mxu0 0.0
        %573 = vmatpush1.msra.mxu0 0.0
        %574 = vmatprep.subr.mxu0 0.0
        %575 = vmatpush1.msra.mxu0 0.0
        %576 = vmatprep.subr.mxu0 0.0
        %577 = vmatpush1.msra.mxu0 0.0
        %578 = vmatprep.subr.mxu0 0.0
        %579 = vmatpush1.msra.mxu0 0.0
        %580 = vmatprep.subr.mxu0 0.0
        %581 = vmatpush1.msra.mxu0 0.0
        %582 = vmatprep.subr.mxu0 0.0
        %583 = vmatpush1.msra.mxu0 0.0
        %584 = vmatprep.subr.mxu0 0.0
        %585 = vmatpush1.msra.mxu0 0.0
        %586 = vmatprep.subr.mxu0 0.0
        %587 = vmatpush1.msra.mxu0 0.0
        %588 = vmatprep.subr.mxu0 0.0
        %589 = vmatpush1.msra.mxu0 0.0
        %590 = vmatprep.subr.mxu0 0.0
        %591 = vmatpush1.msra.mxu0 0.0
        %592 = vmatprep.subr.mxu0 0.0
        %593 = vmatpush1.msra.mxu0 0.0
        %594 = vmatprep.subr.mxu0 0.0
        %595 = vmatpush1.msra.mxu0 0.0
        %596 = vmatprep.subr.mxu0 0.0
        %597 = vmatpush1.msra.mxu0 0.0
        %598 = vmatprep.subr.mxu0 0.0
        %599 = vmatpush1.msra.mxu0 0.0
        %600 = vmatprep.subr.mxu0 0.0
        %601 = vmatpush1.msra.mxu0 0.0
        %602 = vmatprep.subr.mxu0 0.0
        %603 = vmatpush1.msra.mxu0 0.0
        %604 = vmatprep.mubr.f32.mxu0 0.0
        %605 = vmatmul.mubr.f32.gmra.mrb[0].mxu0 %v535
        %v606 = vpop.f32.mrb[0].mxu0
        %v607 = vadd.f32 0.0, %v606
        %v608 = vpop.f32.mrb[0].mxu0
        %609 = vmatprep.mubr.f32.mxu0 0.0
        %610 = vmatmul.mubr.f32.gmra.mrb[0].mxu0 %v538
        %v611 = vpop.f32.mrb[0].mxu0
        %v612 = vadd.f32 0.0, %v611
        %v613 = vpop.f32.mrb[0].mxu0
        %614 = vdwg.mxu0
        %v616 = vsel %vm404, %v378, 0
        %v619 = vsel %vm404, %v379, 0
        %621 = vmatprep.subr.mxu0 0.0
        %622 = vmatpush1.msra.mxu0 %v506
        %623 = vmatprep.subr.mxu0 0.0
        %624 = vmatpush1.msra.mxu0 %v511
        %625 = vmatprep.subr.mxu0 0.0
        %626 = vmatpush1.msra.mxu0 0.0
        %627 = vmatprep.subr.mxu0 0.0
        %628 = vmatpush1.msra.mxu0 0.0
        %629 = vmatprep.subr.mxu0 0.0
        %630 = vmatpush1.msra.mxu0 0.0
        %631 = vmatprep.subr.mxu0 0.0
        %632 = vmatpush1.msra.mxu0 0.0
        %633 = vmatprep.subr.mxu0 0.0
        %634 = vmatpush1.msra.mxu0 0.0
        %635 = vmatprep.subr.mxu0 0.0
        %636 = vmatpush1.msra.mxu0 0.0
        %637 = vmatprep.subr.mxu0 0.0
        %638 = vmatpush1.msra.mxu0 0.0
        %639 = vmatprep.subr.mxu0 0.0
        %640 = vmatpush1.msra.mxu0 0.0
        %641 = vmatprep.subr.mxu0 0.0
        %642 = vmatpush1.msra.mxu0 0.0
        %643 = vmatprep.subr.mxu0 0.0
        %644 = vmatpush1.msra.mxu0 0.0
        %645 = vmatprep.subr.mxu0 0.0
        %646 = vmatpush1.msra.mxu0 0.0
        %647 = vmatprep.subr.mxu0 0.0
        %648 = vmatpush1.msra.mxu0 0.0
        %649 = vmatprep.subr.mxu0 0.0
        %650 = vmatpush1.msra.mxu0 0.0
        %651 = vmatprep.subr.mxu0 0.0
        %652 = vmatpush1.msra.mxu0 0.0
        %653 = vmatprep.subr.mxu0 0.0
        %654 = vmatpush1.msra.mxu0 0.0
        %655 = vmatprep.subr.mxu0 0.0
        %656 = vmatpush1.msra.mxu0 0.0
        %657 = vmatprep.subr.mxu0 0.0
        %658 = vmatpush1.msra.mxu0 0.0
        %659 = vmatprep.subr.mxu0 0.0
        %660 = vmatpush1.msra.mxu0 0.0
        %661 = vmatprep.subr.mxu0 0.0
        %662 = vmatpush1.msra.mxu0 0.0
        %663 = vmatprep.subr.mxu0 0.0
        %664 = vmatpush1.msra.mxu0 0.0
        %665 = vmatprep.subr.mxu0 0.0
        %666 = vmatpush1.msra.mxu0 0.0
        %667 = vmatprep.subr.mxu0 0.0
        %668 = vmatpush1.msra.mxu0 0.0
        %669 = vmatprep.subr.mxu0 0.0
        %670 = vmatpush1.msra.mxu0 0.0
        %671 = vmatprep.subr.mxu0 0.0
        %672 = vmatpush1.msra.mxu0 0.0
        %673 = vmatprep.subr.mxu0 0.0
        %674 = vmatpush1.msra.mxu0 0.0
        %675 = vmatprep.subr.mxu0 0.0
        %676 = vmatpush1.msra.mxu0 0.0
        %677 = vmatprep.subr.mxu0 0.0
        %678 = vmatpush1.msra.mxu0 0.0
        %679 = vmatprep.subr.mxu0 0.0
        %680 = vmatpush1.msra.mxu0 0.0
        %681 = vmatprep.subr.mxu0 0.0
        %682 = vmatpush1.msra.mxu0 0.0
        %683 = vmatprep.subr.mxu0 0.0
        %684 = vmatpush1.msra.mxu0 0.0
        %685 = vmatprep.mubr.f32.mxu0 0.0
        %686 = vmatmul.mubr.f32.gmra.mrb[0].mxu0 %v616
        %v687 = vpop.f32.mrb[0].mxu0
        %v688 = vadd.f32 0.0, %v687
        %v689 = vpop.f32.mrb[0].mxu0
        %690 = vmatprep.mubr.f32.mxu0 0.0
        %691 = vmatmul.mubr.f32.gmra.mrb[0].mxu0 %v619
        %v692 = vpop.f32.mrb[0].mxu0
        %v693 = vadd.f32 0.0, %v692
        %v694 = vpop.f32.mrb[0].mxu0
        %695 = vdwg.mxu0
        %v697 = vsel %vm404, %v380, 0
        %v700 = vsel %vm404, %v381, 0
        %702 = vmatprep.subr.mxu0 0.0
        %703 = vmatpush1.msra.mxu0 %v516
        %704 = vmatprep.subr.mxu0 0.0
        %705 = vmatpush1.msra.mxu0 %v521
        %706 = vmatprep.subr.mxu0 0.0
        %707 = vmatpush1.msra.mxu0 0.0
        %708 = vmatprep.subr.mxu0 0.0
        %709 = vmatpush1.msra.mxu0 0.0
        %710 = vmatprep.subr.mxu0 0.0
        %711 = vmatpush1.msra.mxu0 0.0
        %712 = vmatprep.subr.mxu0 0.0
        %713 = vmatpush1.msra.mxu0 0.0
        %714 = vmatprep.subr.mxu0 0.0
        %715 = vmatpush1.msra.mxu0 0.0
        %716 = vmatprep.subr.mxu0 0.0
        %717 = vmatpush1.msra.mxu0 0.0
        %718 = vmatprep.subr.mxu0 0.0
        %719 = vmatpush1.msra.mxu0 0.0
        %720 = vmatprep.subr.mxu0 0.0
        %721 = vmatpush1.msra.mxu0 0.0
        %722 = vmatprep.subr.mxu0 0.0
        %723 = vmatpush1.msra.mxu0 0.0
        %724 = vmatprep.subr.mxu0 0.0
        %725 = vmatpush1.msra.mxu0 0.0
        %726 = vmatprep.subr.mxu0 0.0
        %727 = vmatpush1.msra.mxu0 0.0
        %728 = vmatprep.subr.mxu0 0.0
        %729 = vmatpush1.msra.mxu0 0.0
        %730 = vmatprep.subr.mxu0 0.0
        %731 = vmatpush1.msra.mxu0 0.0
        %732 = vmatprep.subr.mxu0 0.0
        %733 = vmatpush1.msra.mxu0 0.0
        %734 = vmatprep.subr.mxu0 0.0
        %735 = vmatpush1.msra.mxu0 0.0
        %736 = vmatprep.subr.mxu0 0.0
        %737 = vmatpush1.msra.mxu0 0.0
        %738 = vmatprep.subr.mxu0 0.0
        %739 = vmatpush1.msra.mxu0 0.0
        %740 = vmatprep.subr.mxu0 0.0
        %741 = vmatpush1.msra.mxu0 0.0
        %742 = vmatprep.subr.mxu0 0.0
        %743 = vmatpush1.msra.mxu0 0.0
        %744 = vmatprep.subr.mxu0 0.0
        %745 = vmatpush1.msra.mxu0 0.0
        %746 = vmatprep.subr.mxu0 0.0
        %747 = vmatpush1.msra.mxu0 0.0
        %748 = vmatprep.subr.mxu0 0.0
        %749 = vmatpush1.msra.mxu0 0.0
        %750 = vmatprep.subr.mxu0 0.0
        %751 = vmatpush1.msra.mxu0 0.0
        %752 = vmatprep.subr.mxu0 0.0
        %753 = vmatpush1.msra.mxu0 0.0
        %754 = vmatprep.subr.mxu0 0.0
        %755 = vmatpush1.msra.mxu0 0.0
        %756 = vmatprep.subr.mxu0 0.0
        %757 = vmatpush1.msra.mxu0 0.0
        %758 = vmatprep.subr.mxu0 0.0
        %759 = vmatpush1.msra.mxu0 0.0
        %760 = vmatprep.subr.mxu0 0.0
        %761 = vmatpush1.msra.mxu0 0.0
        %762 = vmatprep.subr.mxu0 0.0
        %763 = vmatpush1.msra.mxu0 0.0
        %764 = vmatprep.subr.mxu0 0.0
        %765 = vmatpush1.msra.mxu0 0.0
        %766 = vmatprep.mubr.f32.mxu0 0.0
        %767 = vmatmul.mubr.f32.gmra.mrb[0].mxu0 %v697
        %v768 = vpop.f32.mrb[0].mxu0
        %v769 = vadd.f32 0.0, %v768
        %v770 = vpop.f32.mrb[0].mxu0
        %771 = vmatprep.mubr.f32.mxu0 0.0
        %772 = vmatmul.mubr.f32.gmra.mrb[0].mxu0 %v700
        %v773 = vpop.f32.mrb[0].mxu0
        %v774 = vadd.f32 0.0, %v773
        %v775 = vpop.f32.mrb[0].mxu0
        %776 = vdwg.mxu0
        %v778 = vsel %vm404, %v382, 0
        %v781 = vsel %vm404, %v383, 0
        %783 = vmatprep.subr.mxu0 0.0
        %784 = vmatpush1.msra.mxu0 %v526
        %785 = vmatprep.subr.mxu0 0.0
        %786 = vmatpush1.msra.mxu0 %v531
        %787 = vmatprep.subr.mxu0 0.0
        %788 = vmatpush1.msra.mxu0 0.0
        %789 = vmatprep.subr.mxu0 0.0
        %790 = vmatpush1.msra.mxu0 0.0
        %791 = vmatprep.subr.mxu0 0.0
        %792 = vmatpush1.msra.mxu0 0.0
        %793 = vmatprep.subr.mxu0 0.0
        %794 = vmatpush1.msra.mxu0 0.0
        %795 = vmatprep.subr.mxu0 0.0
        %796 = vmatpush1.msra.mxu0 0.0
        %797 = vmatprep.subr.mxu0 0.0
        %798 = vmatpush1.msra.mxu0 0.0
        %799 = vmatprep.subr.mxu0 0.0
        %800 = vmatpush1.msra.mxu0 0.0
        %801 = vmatprep.subr.mxu0 0.0
        %802 = vmatpush1.msra.mxu0 0.0
        %803 = vmatprep.subr.mxu0 0.0
        %804 = vmatpush1.msra.mxu0 0.0
        %805 = vmatprep.subr.mxu0 0.0
        %806 = vmatpush1.msra.mxu0 0.0
        %807 = vmatprep.subr.mxu0 0.0
        %808 = vmatpush1.msra.mxu0 0.0
        %809 = vmatprep.subr.mxu0 0.0
        %810 = vmatpush1.msra.mxu0 0.0
        %811 = vmatprep.subr.mxu0 0.0
        %812 = vmatpush1.msra.mxu0 0.0
        %813 = vmatprep.subr.mxu0 0.0
        %814 = vmatpush1.msra.mxu0 0.0
        %815 = vmatprep.subr.mxu0 0.0
        %816 = vmatpush1.msra.mxu0 0.0
        %817 = vmatprep.subr.mxu0 0.0
        %818 = vmatpush1.msra.mxu0 0.0
        %819 = vmatprep.subr.mxu0 0.0
        %820 = vmatpush1.msra.mxu0 0.0
        %821 = vmatprep.subr.mxu0 0.0
        %822 = vmatpush1.msra.mxu0 0.0
        %823 = vmatprep.subr.mxu0 0.0
        %824 = vmatpush1.msra.mxu0 0.0
        %825 = vmatprep.subr.mxu0 0.0
        %826 = vmatpush1.msra.mxu0 0.0
        %827 = vmatprep.subr.mxu0 0.0
        %828 = vmatpush1.msra.mxu0 0.0
        %829 = vmatprep.subr.mxu0 0.0
        %830 = vmatpush1.msra.mxu0 0.0
        %831 = vmatprep.subr.mxu0 0.0
        %832 = vmatpush1.msra.mxu0 0.0
        %833 = vmatprep.subr.mxu0 0.0
        %834 = vmatpush1.msra.mxu0 0.0
        %835 = vmatprep.subr.mxu0 0.0
        %836 = vmatpush1.msra.mxu0 0.0
        %837 = vmatprep.subr.mxu0 0.0
        %838 = vmatpush1.msra.mxu0 0.0
        %839 = vmatprep.subr.mxu0 0.0
        %840 = vmatpush1.msra.mxu0 0.0
        %841 = vmatprep.subr.mxu0 0.0
        %842 = vmatpush1.msra.mxu0 0.0
        %843 = vmatprep.subr.mxu0 0.0
        %844 = vmatpush1.msra.mxu0 0.0
        %845 = vmatprep.subr.mxu0 0.0
        %846 = vmatpush1.msra.mxu0 0.0
        %847 = vmatprep.mubr.f32.mxu0 0.0
        %848 = vmatmul.mubr.f32.gmra.mrb[0].mxu0 %v778
        %v849 = vpop.f32.mrb[0].mxu0
        %v850 = vadd.f32 0.0, %v849
        %v851 = vpop.f32.mrb[0].mxu0
        %852 = vmatprep.mubr.f32.mxu0 0.0
        %853 = vmatmul.mubr.f32.gmra.mrb[0].mxu0 %v781
        %v854 = vpop.f32.mrb[0].mxu0
        %v855 = vadd.f32 0.0, %v854
        %v856 = vpop.f32.mrb[0].mxu0
        %857 = vdwg.mxu0
        %v858 = vmul.f32 %v400, %v607
        %v859 = vmul.f32 %v401, %v612
        %v860 = vmul.f32 %v400, %v688
        %v861 = vmul.f32 %v401, %v693
        %v862 = vmul.f32 %v400, %v769
        %v863 = vmul.f32 %v401, %v774
        %v864 = vmul.f32 %v400, %v850
        %v865 = vmul.f32 %v401, %v855
        %v866 = vmul.f32 %v402, %v607
        %v867 = vmul.f32 %v403, %v612
        %v868 = vmul.f32 %v402, %v688
        %v869 = vmul.f32 %v403, %v693
        %v870 = vmul.f32 %v402, %v769
        %v871 = vmul.f32 %v403, %v774
        %v872 = vmul.f32 %v402, %v850
        %v873 = vmul.f32 %v403, %v855
        %v875 = vsel %vm404, %v384, 0
        %v878 = vsel %vm404, %v385, 0
        %880 = vmatprep.subr.mxu0 0.0
        %881 = vmatpush1.msra.mxu0 %v858
        %882 = vmatprep.subr.mxu0 0.0
        %883 = vmatpush1.msra.mxu0 %v859
        %884 = vmatprep.subr.mxu0 0.0
        %885 = vmatpush1.msra.mxu0 0.0
        %886 = vmatprep.subr.mxu0 0.0
        %887 = vmatpush1.msra.mxu0 0.0
        %888 = vmatprep.subr.mxu0 0.0
        %889 = vmatpush1.msra.mxu0 0.0
        %890 = vmatprep.subr.mxu0 0.0
        %891 = vmatpush1.msra.mxu0 0.0
        %892 = vmatprep.subr.mxu0 0.0
        %893 = vmatpush1.msra.mxu0 0.0
        %894 = vmatprep.subr.mxu0 0.0
        %895 = vmatpush1.msra.mxu0 0.0
        %896 = vmatprep.subr.mxu0 0.0
        %897 = vmatpush1.msra.mxu0 0.0
        %898 = vmatprep.subr.mxu0 0.0
        %899 = vmatpush1.msra.mxu0 0.0
        %900 = vmatprep.subr.mxu0 0.0
        %901 = vmatpush1.msra.mxu0 0.0
        %902 = vmatprep.subr.mxu0 0.0
        %903 = vmatpush1.msra.mxu0 0.0
        %904 = vmatprep.subr.mxu0 0.0
        %905 = vmatpush1.msra.mxu0 0.0
        %906 = vmatprep.subr.mxu0 0.0
        %907 = vmatpush1.msra.mxu0 0.0
        %908 = vmatprep.subr.mxu0 0.0
        %909 = vmatpush1.msra.mxu0 0.0
        %910 = vmatprep.subr.mxu0 0.0
        %911 = vmatpush1.msra.mxu0 0.0
        %912 = vmatprep.subr.mxu0 0.0
        %913 = vmatpush1.msra.mxu0 0.0
        %914 = vmatprep.subr.mxu0 0.0
        %915 = vmatpush1.msra.mxu0 0.0
        %916 = vmatprep.subr.mxu0 0.0
        %917 = vmatpush1.msra.mxu0 0.0
        %918 = vmatprep.subr.mxu0 0.0
        %919 = vmatpush1.msra.mxu0 0.0
        %920 = vmatprep.subr.mxu0 0.0
        %921 = vmatpush1.msra.mxu0 0.0
        %922 = vmatprep.subr.mxu0 0.0
        %923 = vmatpush1.msra.mxu0 0.0
        %924 = vmatprep.subr.mxu0 0.0
        %925 = vmatpush1.msra.mxu0 0.0
        %926 = vmatprep.subr.mxu0 0.0
        %927 = vmatpush1.msra.mxu0 0.0
        %928 = vmatprep.subr.mxu0 0.0
        %929 = vmatpush1.msra.mxu0 0.0
        %930 = vmatprep.subr.mxu0 0.0
        %931 = vmatpush1.msra.mxu0 0.0
        %932 = vmatprep.subr.mxu0 0.0
        %933 = vmatpush1.msra.mxu0 0.0
        %934 = vmatprep.subr.mxu0 0.0
        %935 = vmatpush1.msra.mxu0 0.0
        %936 = vmatprep.subr.mxu0 0.0
        %937 = vmatpush1.msra.mxu0 0.0
        %938 = vmatprep.subr.mxu0 0.0
        %939 = vmatpush1.msra.mxu0 0.0
        %940 = vmatprep.subr.mxu0 0.0
        %941 = vmatpush1.msra.mxu0 0.0
        %942 = vmatprep.subr.mxu0 0.0
        %943 = vmatpush1.msra.mxu0 0.0
        %944 = vmatprep.mubr.f32.mxu0 0.0
        %945 = vmatmul.mubr.f32.gmra.mrb[0].mxu0 %v875
        %v946 = vpop.f32.mrb[0].mxu0
        %v947 = vadd.f32 0.0, %v946
        %v948 = vpop.f32.mrb[0].mxu0
        %949 = vmatprep.mubr.f32.mxu0 0.0
        %950 = vmatmul.mubr.f32.gmra.mrb[0].mxu0 %v878
        %v951 = vpop.f32.mrb[0].mxu0
        %v952 = vadd.f32 0.0, %v951
        %v953 = vpop.f32.mrb[0].mxu0
        %954 = vdwg.mxu0
        %v956 = vsel %vm404, %v386, 0
        %v959 = vsel %vm404, %v387, 0
        %961 = vmatprep.subr.mxu0 0.0
        %962 = vmatpush1.msra.mxu0 %v860
        %963 = vmatprep.subr.mxu0 0.0
        %964 = vmatpush1.msra.mxu0 %v861
        %965 = vmatprep.subr.mxu0 0.0
        %966 = vmatpush1.msra.mxu0 0.0
        %967 = vmatprep.subr.mxu0 0.0
        %968 = vmatpush1.msra.mxu0 0.0
        %969 = vmatprep.subr.mxu0 0.0
        %970 = vmatpush1.msra.mxu0 0.0
        %971 = vmatprep.subr.mxu0 0.0
        %972 = vmatpush1.msra.mxu0 0.0
        %973 = vmatprep.subr.mxu0 0.0
        %974 = vmatpush1.msra.mxu0 0.0
        %975 = vmatprep.subr.mxu0 0.0
        %976 = vmatpush1.msra.mxu0 0.0
        %977 = vmatprep.subr.mxu0 0.0
        %978 = vmatpush1.msra.mxu0 0.0
        %979 = vmatprep.subr.mxu0 0.0
        %980 = vmatpush1.msra.mxu0 0.0
        %981 = vmatprep.subr.mxu0 0.0
        %982 = vmatpush1.msra.mxu0 0.0
        %983 = vmatprep.subr.mxu0 0.0
        %984 = vmatpush1.msra.mxu0 0.0
        %985 = vmatprep.subr.mxu0 0.0
        %986 = vmatpush1.msra.mxu0 0.0
        %987 = vmatprep.subr.mxu0 0.0
        %988 = vmatpush1.msra.mxu0 0.0
        %989 = vmatprep.subr.mxu0 0.0
        %990 = vmatpush1.msra.mxu0 0.0
        %991 = vmatprep.subr.mxu0 0.0
        %992 = vmatpush1.msra.mxu0 0.0
        %993 = vmatprep.subr.mxu0 0.0
        %994 = vmatpush1.msra.mxu0 0.0
        %995 = vmatprep.subr.mxu0 0.0
        %996 = vmatpush1.msra.mxu0 0.0
        %997 = vmatprep.subr.mxu0 0.0
        %998 = vmatpush1.msra.mxu0 0.0
        %999 = vmatprep.subr.mxu0 0.0
        %1000 = vmatpush1.msra.mxu0 0.0
        %1001 = vmatprep.subr.mxu0 0.0
        %1002 = vmatpush1.msra.mxu0 0.0
        %1003 = vmatprep.subr.mxu0 0.0
        %1004 = vmatpush1.msra.mxu0 0.0
        %1005 = vmatprep.subr.mxu0 0.0
        %1006 = vmatpush1.msra.mxu0 0.0
        %1007 = vmatprep.subr.mxu0 0.0
        %1008 = vmatpush1.msra.mxu0 0.0
        %1009 = vmatprep.subr.mxu0 0.0
        %1010 = vmatpush1.msra.mxu0 0.0
        %1011 = vmatprep.subr.mxu0 0.0
        %1012 = vmatpush1.msra.mxu0 0.0
        %1013 = vmatprep.subr.mxu0 0.0
        %1014 = vmatpush1.msra.mxu0 0.0
        %1015 = vmatprep.subr.mxu0 0.0
        %1016 = vmatpush1.msra.mxu0 0.0
        %1017 = vmatprep.subr.mxu0 0.0
        %1018 = vmatpush1.msra.mxu0 0.0
        %1019 = vmatprep.subr.mxu0 0.0
        %1020 = vmatpush1.msra.mxu0 0.0
        %1021 = vmatprep.subr.mxu0 0.0
        %1022 = vmatpush1.msra.mxu0 0.0
        %1023 = vmatprep.subr.mxu0 0.0
        %1024 = vmatpush1.msra.mxu0 0.0
        %1025 = vmatprep.mubr.f32.mxu0 0.0
        %1026 = vmatmul.mubr.f32.gmra.mrb[0].mxu0 %v956
        %v1027 = vpop.f32.mrb[0].mxu0
        %v1028 = vadd.f32 0.0, %v1027
        %v1029 = vpop.f32.mrb[0].mxu0
        %1030 = vmatprep.mubr.f32.mxu0 0.0
        %1031 = vmatmul.mubr.f32.gmra.mrb[0].mxu0 %v959
        %v1032 = vpop.f32.mrb[0].mxu0
        %v1033 = vadd.f32 0.0, %v1032
        %v1034 = vpop.f32.mrb[0].mxu0
        %1035 = vdwg.mxu0
        %v1037 = vsel %vm404, %v388, 0
        %v1040 = vsel %vm404, %v389, 0
        %1042 = vmatprep.subr.mxu0 0.0
        %1043 = vmatpush1.msra.mxu0 %v862
        %1044 = vmatprep.subr.mxu0 0.0
        %1045 = vmatpush1.msra.mxu0 %v863
        %1046 = vmatprep.subr.mxu0 0.0
        %1047 = vmatpush1.msra.mxu0 0.0
        %1048 = vmatprep.subr.mxu0 0.0
        %1049 = vmatpush1.msra.mxu0 0.0
        %1050 = vmatprep.subr.mxu0 0.0
        %1051 = vmatpush1.msra.mxu0 0.0
        %1052 = vmatprep.subr.mxu0 0.0
        %1053 = vmatpush1.msra.mxu0 0.0
        %1054 = vmatprep.subr.mxu0 0.0
        %1055 = vmatpush1.msra.mxu0 0.0
        %1056 = vmatprep.subr.mxu0 0.0
        %1057 = vmatpush1.msra.mxu0 0.0
        %1058 = vmatprep.subr.mxu0 0.0
        %1059 = vmatpush1.msra.mxu0 0.0
        %1060 = vmatprep.subr.mxu0 0.0
        %1061 = vmatpush1.msra.mxu0 0.0
        %1062 = vmatprep.subr.mxu0 0.0
        %1063 = vmatpush1.msra.mxu0 0.0
        %1064 = vmatprep.subr.mxu0 0.0
        %1065 = vmatpush1.msra.mxu0 0.0
        %1066 = vmatprep.subr.mxu0 0.0
        %1067 = vmatpush1.msra.mxu0 0.0
        %1068 = vmatprep.subr.mxu0 0.0
        %1069 = vmatpush1.msra.mxu0 0.0
        %1070 = vmatprep.subr.mxu0 0.0
        %1071 = vmatpush1.msra.mxu0 0.0
        %1072 = vmatprep.subr.mxu0 0.0
        %1073 = vmatpush1.msra.mxu0 0.0
        %1074 = vmatprep.subr.mxu0 0.0
        %1075 = vmatpush1.msra.mxu0 0.0
        %1076 = vmatprep.subr.mxu0 0.0
        %1077 = vmatpush1.msra.mxu0 0.0
        %1078 = vmatprep.subr.mxu0 0.0
        %1079 = vmatpush1.msra.mxu0 0.0
        %1080 = vmatprep.subr.mxu0 0.0
        %1081 = vmatpush1.msra.mxu0 0.0
        %1082 = vmatprep.subr.mxu0 0.0
        %1083 = vmatpush1.msra.mxu0 0.0
        %1084 = vmatprep.subr.mxu0 0.0
        %1085 = vmatpush1.msra.mxu0 0.0
        %1086 = vmatprep.subr.mxu0 0.0
        %1087 = vmatpush1.msra.mxu0 0.0
        %1088 = vmatprep.subr.mxu0 0.0
        %1089 = vmatpush1.msra.mxu0 0.0
        %1090 = vmatprep.subr.mxu0 0.0
        %1091 = vmatpush1.msra.mxu0 0.0
        %1092 = vmatprep.subr.mxu0 0.0
        %1093 = vmatpush1.msra.mxu0 0.0
        %1094 = vmatprep.subr.mxu0 0.0
        %1095 = vmatpush1.msra.mxu0 0.0
        %1096 = vmatprep.subr.mxu0 0.0
        %1097 = vmatpush1.msra.mxu0 0.0
        %1098 = vmatprep.subr.mxu0 0.0
        %1099 = vmatpush1.msra.mxu0 0.0
        %1100 = vmatprep.subr.mxu0 0.0
        %1101 = vmatpush1.msra.mxu0 0.0
        %1102 = vmatprep.subr.mxu0 0.0
        %1103 = vmatpush1.msra.mxu0 0.0
        %1104 = vmatprep.subr.mxu0 0.0
        %1105 = vmatpush1.msra.mxu0 0.0
        %1106 = vmatprep.mubr.f32.mxu0 0.0
        %1107 = vmatmul.mubr.f32.gmra.mrb[0].mxu0 %v1037
        %v1108 = vpop.f32.mrb[0].mxu0
        %v1109 = vadd.f32 0.0, %v1108
        %v1110 = vpop.f32.mrb[0].mxu0
        %1111 = vmatprep.mubr.f32.mxu0 0.0
        %1112 = vmatmul.mubr.f32.gmra.mrb[0].mxu0 %v1040
        %v1113 = vpop.f32.mrb[0].mxu0
        %v1114 = vadd.f32 0.0, %v1113
        %v1115 = vpop.f32.mrb[0].mxu0
        %1116 = vdwg.mxu0
        %v1118 = vsel %vm404, %v390, 0
        %v1121 = vsel %vm404, %v391, 0
        %1123 = vmatprep.subr.mxu0 0.0
        %1124 = vmatpush1.msra.mxu0 %v864
        %1125 = vmatprep.subr.mxu0 0.0
        %1126 = vmatpush1.msra.mxu0 %v865
        %1127 = vmatprep.subr.mxu0 0.0
        %1128 = vmatpush1.msra.mxu0 0.0
        %1129 = vmatprep.subr.mxu0 0.0
        %1130 = vmatpush1.msra.mxu0 0.0
        %1131 = vmatprep.subr.mxu0 0.0
        %1132 = vmatpush1.msra.mxu0 0.0
        %1133 = vmatprep.subr.mxu0 0.0
        %1134 = vmatpush1.msra.mxu0 0.0
        %1135 = vmatprep.subr.mxu0 0.0
        %1136 = vmatpush1.msra.mxu0 0.0
        %1137 = vmatprep.subr.mxu0 0.0
        %1138 = vmatpush1.msra.mxu0 0.0
        %1139 = vmatprep.subr.mxu0 0.0
        %1140 = vmatpush1.msra.mxu0 0.0
        %1141 = vmatprep.subr.mxu0 0.0
        %1142 = vmatpush1.msra.mxu0 0.0
        %1143 = vmatprep.subr.mxu0 0.0
        %1144 = vmatpush1.msra.mxu0 0.0
        %1145 = vmatprep.subr.mxu0 0.0
        %1146 = vmatpush1.msra.mxu0 0.0
        %1147 = vmatprep.subr.mxu0 0.0
        %1148 = vmatpush1.msra.mxu0 0.0
        %1149 = vmatprep.subr.mxu0 0.0
        %1150 = vmatpush1.msra.mxu0 0.0
        %1151 = vmatprep.subr.mxu0 0.0
        %1152 = vmatpush1.msra.mxu0 0.0
        %1153 = vmatprep.subr.mxu0 0.0
        %1154 = vmatpush1.msra.mxu0 0.0
        %1155 = vmatprep.subr.mxu0 0.0
        %1156 = vmatpush1.msra.mxu0 0.0
        %1157 = vmatprep.subr.mxu0 0.0
        %1158 = vmatpush1.msra.mxu0 0.0
        %1159 = vmatprep.subr.mxu0 0.0
        %1160 = vmatpush1.msra.mxu0 0.0
        %1161 = vmatprep.subr.mxu0 0.0
        %1162 = vmatpush1.msra.mxu0 0.0
        %1163 = vmatprep.subr.mxu0 0.0
        %1164 = vmatpush1.msra.mxu0 0.0
        %1165 = vmatprep.subr.mxu0 0.0
        %1166 = vmatpush1.msra.mxu0 0.0
        %1167 = vmatprep.subr.mxu0 0.0
        %1168 = vmatpush1.msra.mxu0 0.0
        %1169 = vmatprep.subr.mxu0 0.0
        %1170 = vmatpush1.msra.mxu0 0.0
        %1171 = vmatprep.subr.mxu0 0.0
        %1172 = vmatpush1.msra.mxu0 0.0
        %1173 = vmatprep.subr.mxu0 0.0
        %1174 = vmatpush1.msra.mxu0 0.0
        %1175 = vmatprep.subr.mxu0 0.0
        %1176 = vmatpush1.msra.mxu0 0.0
        %1177 = vmatprep.subr.mxu0 0.0
        %1178 = vmatpush1.msra.mxu0 0.0
        %1179 = vmatprep.subr.mxu0 0.0
        %1180 = vmatpush1.msra.mxu0 0.0
        %1181 = vmatprep.subr.mxu0 0.0
        %1182 = vmatpush1.msra.mxu0 0.0
        %1183 = vmatprep.subr.mxu0 0.0
        %1184 = vmatpush1.msra.mxu0 0.0
        %1185 = vmatprep.subr.mxu0 0.0
        %1186 = vmatpush1.msra.mxu0 0.0
        %1187 = vmatprep.mubr.f32.mxu0 0.0
        %1188 = vmatmul.mubr.f32.gmra.mrb[0].mxu0 %v1118
        %v1189 = vpop.f32.mrb[0].mxu0
        %v1190 = vadd.f32 0.0, %v1189
        %v1191 = vpop.f32.mrb[0].mxu0
        %1192 = vmatprep.mubr.f32.mxu0 0.0
        %1193 = vmatmul.mubr.f32.gmra.mrb[0].mxu0 %v1121
        %v1194 = vpop.f32.mrb[0].mxu0
        %v1195 = vadd.f32 0.0, %v1194
        %v1196 = vpop.f32.mrb[0].mxu0
        %1197 = vdwg.mxu0
        %v1199 = vsel %vm404, %v392, 0
        %v1202 = vsel %vm404, %v393, 0
        %1204 = vmatprep.subr.mxu0 0.0
        %1205 = vmatpush1.msra.mxu0 %v866
        %1206 = vmatprep.subr.mxu0 0.0
        %1207 = vmatpush1.msra.mxu0 %v867
        %1208 = vmatprep.subr.mxu0 0.0
        %1209 = vmatpush1.msra.mxu0 0.0
        %1210 = vmatprep.subr.mxu0 0.0
        %1211 = vmatpush1.msra.mxu0 0.0
        %1212 = vmatprep.subr.mxu0 0.0
        %1213 = vmatpush1.msra.mxu0 0.0
        %1214 = vmatprep.subr.mxu0 0.0
        %1215 = vmatpush1.msra.mxu0 0.0
        %1216 = vmatprep.subr.mxu0 0.0
        %1217 = vmatpush1.msra.mxu0 0.0
        %1218 = vmatprep.subr.mxu0 0.0
        %1219 = vmatpush1.msra.mxu0 0.0
        %1220 = vmatprep.subr.mxu0 0.0
        %1221 = vmatpush1.msra.mxu0 0.0
        %1222 = vmatprep.subr.mxu0 0.0
        %1223 = vmatpush1.msra.mxu0 0.0
        %1224 = vmatprep.subr.mxu0 0.0
        %1225 = vmatpush1.msra.mxu0 0.0
        %1226 = vmatprep.subr.mxu0 0.0
        %1227 = vmatpush1.msra.mxu0 0.0
        %1228 = vmatprep.subr.mxu0 0.0
        %1229 = vmatpush1.msra.mxu0 0.0
        %1230 = vmatprep.subr.mxu0 0.0
        %1231 = vmatpush1.msra.mxu0 0.0
        %1232 = vmatprep.subr.mxu0 0.0
        %1233 = vmatpush1.msra.mxu0 0.0
        %1234 = vmatprep.subr.mxu0 0.0
        %1235 = vmatpush1.msra.mxu0 0.0
        %1236 = vmatprep.subr.mxu0 0.0
        %1237 = vmatpush1.msra.mxu0 0.0
        %1238 = vmatprep.subr.mxu0 0.0
        %1239 = vmatpush1.msra.mxu0 0.0
        %1240 = vmatprep.subr.mxu0 0.0
        %1241 = vmatpush1.msra.mxu0 0.0
        %1242 = vmatprep.subr.mxu0 0.0
        %1243 = vmatpush1.msra.mxu0 0.0
        %1244 = vmatprep.subr.mxu0 0.0
        %1245 = vmatpush1.msra.mxu0 0.0
        %1246 = vmatprep.subr.mxu0 0.0
        %1247 = vmatpush1.msra.mxu0 0.0
        %1248 = vmatprep.subr.mxu0 0.0
        %1249 = vmatpush1.msra.mxu0 0.0
        %1250 = vmatprep.subr.mxu0 0.0
        %1251 = vmatpush1.msra.mxu0 0.0
        %1252 = vmatprep.subr.mxu0 0.0
        %1253 = vmatpush1.msra.mxu0 0.0
        %1254 = vmatprep.subr.mxu0 0.0
        %1255 = vmatpush1.msra.mxu0 0.0
        %1256 = vmatprep.subr.mxu0 0.0
        %1257 = vmatpush1.msra.mxu0 0.0
        %1258 = vmatprep.subr.mxu0 0.0
        %1259 = vmatpush1.msra.mxu0 0.0
        %1260 = vmatprep.subr.mxu0 0.0
        %1261 = vmatpush1.msra.mxu0 0.0
        %1262 = vmatprep.subr.mxu0 0.0
        %1263 = vmatpush1.msra.mxu0 0.0
        %1264 = vmatprep.subr.mxu0 0.0
        %1265 = vmatpush1.msra.mxu0 0.0
        %1266 = vmatprep.subr.mxu0 0.0
        %1267 = vmatpush1.msra.mxu0 0.0
        %1268 = vmatprep.mubr.f32.mxu0 0.0
        %1269 = vmatmul.mubr.f32.gmra.mrb[0].mxu0 %v1199
        %v1270 = vpop.f32.mrb[0].mxu0
        %v1271 = vadd.f32 0.0, %v1270
        %v1272 = vpop.f32.mrb[0].mxu0
        %1273 = vmatprep.mubr.f32.mxu0 0.0
        %1274 = vmatmul.mubr.f32.gmra.mrb[0].mxu0 %v1202
        %v1275 = vpop.f32.mrb[0].mxu0
        %v1276 = vadd.f32 0.0, %v1275
        %v1277 = vpop.f32.mrb[0].mxu0
        %1278 = vdwg.mxu0
        %v1280 = vsel %vm404, %v394, 0
        %v1283 = vsel %vm404, %v395, 0
        %1285 = vmatprep.subr.mxu0 0.0
        %1286 = vmatpush1.msra.mxu0 %v868
        %1287 = vmatprep.subr.mxu0 0.0
        %1288 = vmatpush1.msra.mxu0 %v869
        %1289 = vmatprep.subr.mxu0 0.0
        %1290 = vmatpush1.msra.mxu0 0.0
        %1291 = vmatprep.subr.mxu0 0.0
        %1292 = vmatpush1.msra.mxu0 0.0
        %1293 = vmatprep.subr.mxu0 0.0
        %1294 = vmatpush1.msra.mxu0 0.0
        %1295 = vmatprep.subr.mxu0 0.0
        %1296 = vmatpush1.msra.mxu0 0.0
        %1297 = vmatprep.subr.mxu0 0.0
        %1298 = vmatpush1.msra.mxu0 0.0
        %1299 = vmatprep.subr.mxu0 0.0
        %1300 = vmatpush1.msra.mxu0 0.0
        %1301 = vmatprep.subr.mxu0 0.0
        %1302 = vmatpush1.msra.mxu0 0.0
        %1303 = vmatprep.subr.mxu0 0.0
        %1304 = vmatpush1.msra.mxu0 0.0
        %1305 = vmatprep.subr.mxu0 0.0
        %1306 = vmatpush1.msra.mxu0 0.0
        %1307 = vmatprep.subr.mxu0 0.0
        %1308 = vmatpush1.msra.mxu0 0.0
        %1309 = vmatprep.subr.mxu0 0.0
        %1310 = vmatpush1.msra.mxu0 0.0
        %1311 = vmatprep.subr.mxu0 0.0
        %1312 = vmatpush1.msra.mxu0 0.0
        %1313 = vmatprep.subr.mxu0 0.0
        %1314 = vmatpush1.msra.mxu0 0.0
        %1315 = vmatprep.subr.mxu0 0.0
        %1316 = vmatpush1.msra.mxu0 0.0
        %1317 = vmatprep.subr.mxu0 0.0
        %1318 = vmatpush1.msra.mxu0 0.0
        %1319 = vmatprep.subr.mxu0 0.0
        %1320 = vmatpush1.msra.mxu0 0.0
        %1321 = vmatprep.subr.mxu0 0.0
        %1322 = vmatpush1.msra.mxu0 0.0
        %1323 = vmatprep.subr.mxu0 0.0
        %1324 = vmatpush1.msra.mxu0 0.0
        %1325 = vmatprep.subr.mxu0 0.0
        %1326 = vmatpush1.msra.mxu0 0.0
        %1327 = vmatprep.subr.mxu0 0.0
        %1328 = vmatpush1.msra.mxu0 0.0
        %1329 = vmatprep.subr.mxu0 0.0
        %1330 = vmatpush1.msra.mxu0 0.0
        %1331 = vmatprep.subr.mxu0 0.0
        %1332 = vmatpush1.msra.mxu0 0.0
        %1333 = vmatprep.subr.mxu0 0.0
        %1334 = vmatpush1.msra.mxu0 0.0
        %1335 = vmatprep.subr.mxu0 0.0
        %1336 = vmatpush1.msra.mxu0 0.0
        %1337 = vmatprep.subr.mxu0 0.0
        %1338 = vmatpush1.msra.mxu0 0.0
        %1339 = vmatprep.subr.mxu0 0.0
        %1340 = vmatpush1.msra.mxu0 0.0
        %1341 = vmatprep.subr.mxu0 0.0
        %1342 = vmatpush1.msra.mxu0 0.0
        %1343 = vmatprep.subr.mxu0 0.0
        %1344 = vmatpush1.msra.mxu0 0.0
        %1345 = vmatprep.subr.mxu0 0.0
        %1346 = vmatpush1.msra.mxu0 0.0
        %1347 = vmatprep.subr.mxu0 0.0
        %1348 = vmatpush1.msra.mxu0 0.0
        %1349 = vmatprep.mubr.f32.mxu0 0.0
        %1350 = vmatmul.mubr.f32.gmra.mrb[0].mxu0 %v1280
        %v1351 = vpop.f32.mrb[0].mxu0
        %v1352 = vadd.f32 0.0, %v1351
        %v1353 = vpop.f32.mrb[0].mxu0
        %1354 = vmatprep.mubr.f32.mxu0 0.0
        %1355 = vmatmul.mubr.f32.gmra.mrb[0].mxu0 %v1283
        %v1356 = vpop.f32.mrb[0].mxu0
        %v1357 = vadd.f32 0.0, %v1356
        %v1358 = vpop.f32.mrb[0].mxu0
        %1359 = vdwg.mxu0
        %v1361 = vsel %vm404, %v396, 0
        %v1364 = vsel %vm404, %v397, 0
        %1366 = vmatprep.subr.mxu0 0.0
        %1367 = vmatpush1.msra.mxu0 %v870
        %1368 = vmatprep.subr.mxu0 0.0
        %1369 = vmatpush1.msra.mxu0 %v871
        %1370 = vmatprep.subr.mxu0 0.0
        %1371 = vmatpush1.msra.mxu0 0.0
        %1372 = vmatprep.subr.mxu0 0.0
        %1373 = vmatpush1.msra.mxu0 0.0
        %1374 = vmatprep.subr.mxu0 0.0
        %1375 = vmatpush1.msra.mxu0 0.0
        %1376 = vmatprep.subr.mxu0 0.0
        %1377 = vmatpush1.msra.mxu0 0.0
        %1378 = vmatprep.subr.mxu0 0.0
        %1379 = vmatpush1.msra.mxu0 0.0
        %1380 = vmatprep.subr.mxu0 0.0
        %1381 = vmatpush1.msra.mxu0 0.0
        %1382 = vmatprep.subr.mxu0 0.0
        %1383 = vmatpush1.msra.mxu0 0.0
        %1384 = vmatprep.subr.mxu0 0.0
        %1385 = vmatpush1.msra.mxu0 0.0
        %1386 = vmatprep.subr.mxu0 0.0
        %1387 = vmatpush1.msra.mxu0 0.0
        %1388 = vmatprep.subr.mxu0 0.0
        %1389 = vmatpush1.msra.mxu0 0.0
        %1390 = vmatprep.subr.mxu0 0.0
        %1391 = vmatpush1.msra.mxu0 0.0
        %1392 = vmatprep.subr.mxu0 0.0
        %1393 = vmatpush1.msra.mxu0 0.0
        %1394 = vmatprep.subr.mxu0 0.0
        %1395 = vmatpush1.msra.mxu0 0.0
        %1396 = vmatprep.subr.mxu0 0.0
        %1397 = vmatpush1.msra.mxu0 0.0
        %1398 = vmatprep.subr.mxu0 0.0
        %1399 = vmatpush1.msra.mxu0 0.0
        %1400 = vmatprep.subr.mxu0 0.0
        %1401 = vmatpush1.msra.mxu0 0.0
        %1402 = vmatprep.subr.mxu0 0.0
        %1403 = vmatpush1.msra.mxu0 0.0
        %1404 = vmatprep.subr.mxu0 0.0
        %1405 = vmatpush1.msra.mxu0 0.0
        %1406 = vmatprep.subr.mxu0 0.0
        %1407 = vmatpush1.msra.mxu0 0.0
        %1408 = vmatprep.subr.mxu0 0.0
        %1409 = vmatpush1.msra.mxu0 0.0
        %1410 = vmatprep.subr.mxu0 0.0
        %1411 = vmatpush1.msra.mxu0 0.0
        %1412 = vmatprep.subr.mxu0 0.0
        %1413 = vmatpush1.msra.mxu0 0.0
        %1414 = vmatprep.subr.mxu0 0.0
        %1415 = vmatpush1.msra.mxu0 0.0
        %1416 = vmatprep.subr.mxu0 0.0
        %1417 = vmatpush1.msra.mxu0 0.0
        %1418 = vmatprep.subr.mxu0 0.0
        %1419 = vmatpush1.msra.mxu0 0.0
        %1420 = vmatprep.subr.mxu0 0.0
        %1421 = vmatpush1.msra.mxu0 0.0
        %1422 = vmatprep.subr.mxu0 0.0
        %1423 = vmatpush1.msra.mxu0 0.0
        %1424 = vmatprep.subr.mxu0 0.0
        %1425 = vmatpush1.msra.mxu0 0.0
        %1426 = vmatprep.subr.mxu0 0.0
        %1427 = vmatpush1.msra.mxu0 0.0
        %1428 = vmatprep.subr.mxu0 0.0
        %1429 = vmatpush1.msra.mxu0 0.0
        %1430 = vmatprep.mubr.f32.mxu0 0.0
        %1431 = vmatmul.mubr.f32.gmra.mrb[0].mxu0 %v1361
        %v1432 = vpop.f32.mrb[0].mxu0
        %v1433 = vadd.f32 0.0, %v1432
        %v1434 = vpop.f32.mrb[0].mxu0
        %1435 = vmatprep.mubr.f32.mxu0 0.0
        %1436 = vmatmul.mubr.f32.gmra.mrb[0].mxu0 %v1364
        %v1437 = vpop.f32.mrb[0].mxu0
        %v1438 = vadd.f32 0.0, %v1437
        %v1439 = vpop.f32.mrb[0].mxu0
        %1440 = vdwg.mxu0
        %v1442 = vsel %vm404, %v398, 0
        %v1445 = vsel %vm404, %v399, 0
        %1447 = vmatprep.subr.mxu0 0.0
        %1448 = vmatpush1.msra.mxu0 %v872
        %1449 = vmatprep.subr.mxu0 0.0
        %1450 = vmatpush1.msra.mxu0 %v873
        %1451 = vmatprep.subr.mxu0 0.0
        %1452 = vmatpush1.msra.mxu0 0.0
        %1453 = vmatprep.subr.mxu0 0.0
        %1454 = vmatpush1.msra.mxu0 0.0
        %1455 = vmatprep.subr.mxu0 0.0
        %1456 = vmatpush1.msra.mxu0 0.0
        %1457 = vmatprep.subr.mxu0 0.0
        %1458 = vmatpush1.msra.mxu0 0.0
        %1459 = vmatprep.subr.mxu0 0.0
        %1460 = vmatpush1.msra.mxu0 0.0
        %1461 = vmatprep.subr.mxu0 0.0
        %1462 = vmatpush1.msra.mxu0 0.0
        %1463 = vmatprep.subr.mxu0 0.0
        %1464 = vmatpush1.msra.mxu0 0.0
        %1465 = vmatprep.subr.mxu0 0.0
        %1466 = vmatpush1.msra.mxu0 0.0
        %1467 = vmatprep.subr.mxu0 0.0
        %1468 = vmatpush1.msra.mxu0 0.0
        %1469 = vmatprep.subr.mxu0 0.0
        %1470 = vmatpush1.msra.mxu0 0.0
        %1471 = vmatprep.subr.mxu0 0.0
        %1472 = vmatpush1.msra.mxu0 0.0
        %1473 = vmatprep.subr.mxu0 0.0
        %1474 = vmatpush1.msra.mxu0 0.0
        %1475 = vmatprep.subr.mxu0 0.0
        %1476 = vmatpush1.msra.mxu0 0.0
        %1477 = vmatprep.subr.mxu0 0.0
        %1478 = vmatpush1.msra.mxu0 0.0
        %1479 = vmatprep.subr.mxu0 0.0
        %1480 = vmatpush1.msra.mxu0 0.0
        %1481 = vmatprep.subr.mxu0 0.0
        %1482 = vmatpush1.msra.mxu0 0.0
        %1483 = vmatprep.subr.mxu0 0.0
        %1484 = vmatpush1.msra.mxu0 0.0
        %1485 = vmatprep.subr.mxu0 0.0
        %1486 = vmatpush1.msra.mxu0 0.0
        %1487 = vmatprep.subr.mxu0 0.0
        %1488 = vmatpush1.msra.mxu0 0.0
        %1489 = vmatprep.subr.mxu0 0.0
        %1490 = vmatpush1.msra.mxu0 0.0
        %1491 = vmatprep.subr.mxu0 0.0
        %1492 = vmatpush1.msra.mxu0 0.0
        %1493 = vmatprep.subr.mxu0 0.0
        %1494 = vmatpush1.msra.mxu0 0.0
        %1495 = vmatprep.subr.mxu0 0.0
        %1496 = vmatpush1.msra.mxu0 0.0
        %1497 = vmatprep.subr.mxu0 0.0
        %1498 = vmatpush1.msra.mxu0 0.0
        %1499 = vmatprep.subr.mxu0 0.0
        %1500 = vmatpush1.msra.mxu0 0.0
        %1501 = vmatprep.subr.mxu0 0.0
        %1502 = vmatpush1.msra.mxu0 0.0
        %1503 = vmatprep.subr.mxu0 0.0
        %1504 = vmatpush1.msra.mxu0 0.0
        %1505 = vmatprep.subr.mxu0 0.0
        %1506 = vmatpush1.msra.mxu0 0.0
        %1507 = vmatprep.subr.mxu0 0.0
        %1508 = vmatpush1.msra.mxu0 0.0
        %1509 = vmatprep.subr.mxu0 0.0
        %1510 = vmatpush1.msra.mxu0 0.0
        %1511 = vmatprep.mubr.f32.mxu0 0.0
        %1512 = vmatmul.mubr.f32.gmra.mrb[0].mxu0 %v1442
        %v1513 = vpop.f32.mrb[0].mxu0
        %v1514 = vadd.f32 0.0, %v1513
        %v1515 = vpop.f32.mrb[0].mxu0
        %1516 = vmatprep.mubr.f32.mxu0 0.0
        %1517 = vmatmul.mubr.f32.gmra.mrb[0].mxu0 %v1445
        %v1518 = vpop.f32.mrb[0].mxu0
        %v1519 = vadd.f32 0.0, %v1518
        %v1520 = vpop.f32.mrb[0].mxu0
        %1521 = vdwg.mxu0
        %v1523 = vsel %vm404, %v947, 0
        %v1526 = vsel %vm404, %v952, 0
        %v1529 = vsel %vm404, %v1028, 0
        %v1532 = vsel %vm404, %v1033, 0
        %v1535 = vsel %vm404, %v1109, 0
        %v1538 = vsel %vm404, %v1114, 0
        %v1541 = vsel %vm404, %v1190, 0
        %v1544 = vsel %vm404, %v1195, 0
        %v1547 = vsel %vm404, %v1271, 0
        %v1550 = vsel %vm404, %v1276, 0
        %v1553 = vsel %vm404, %v1352, 0
        %v1556 = vsel %vm404, %v1357, 0
        %v1559 = vsel %vm404, %v1433, 0
        %v1562 = vsel %vm404, %v1438, 0
        %v1565 = vsel %vm404, %v1514, 0
        %v1568 = vsel %vm404, %v1519, 0
        %1570 = vmatprep.subr.mxu0 0.0
        %1571 = vmatpush1.msra.mxu0 %v372
        %1572 = vmatprep.subr.mxu0 0.0
        %1573 = vmatpush1.msra.mxu0 %v373
        %1574 = vmatprep.subr.mxu0 0.0
        %1575 = vmatpush1.msra.mxu0 0.0
        %1576 = vmatprep.subr.mxu0 0.0
        %1577 = vmatpush1.msra.mxu0 0.0
        %1578 = vmatprep.subr.mxu0 0.0
        %1579 = vmatpush1.msra.mxu0 0.0
        %1580 = vmatprep.subr.mxu0 0.0
        %1581 = vmatpush1.msra.mxu0 0.0
        %1582 = vmatprep.subr.mxu0 0.0
        %1583 = vmatpush1.msra.mxu0 0.0
        %1584 = vmatprep.subr.mxu0 0.0
        %1585 = vmatpush1.msra.mxu0 0.0
        %1586 = vmatprep.subr.mxu0 0.0
        %1587 = vmatpush1.msra.mxu0 0.0
        %1588 = vmatprep.subr.mxu0 0.0
        %1589 = vmatpush1.msra.mxu0 0.0
        %1590 = vmatprep.subr.mxu0 0.0
        %1591 = vmatpush1.msra.mxu0 0.0
        %1592 = vmatprep.subr.mxu0 0.0
        %1593 = vmatpush1.msra.mxu0 0.0
        %1594 = vmatprep.subr.mxu0 0.0
        %1595 = vmatpush1.msra.mxu0 0.0
        %1596 = vmatprep.subr.mxu0 0.0
        %1597 = vmatpush1.msra.mxu0 0.0
        %1598 = vmatprep.subr.mxu0 0.0
        %1599 = vmatpush1.msra.mxu0 0.0
        %1600 = vmatprep.subr.mxu0 0.0
        %1601 = vmatpush1.msra.mxu0 0.0
        %1602 = vmatprep.subr.mxu0 0.0
        %1603 = vmatpush1.msra.mxu0 0.0
        %1604 = vmatprep.subr.mxu0 0.0
        %1605 = vmatpush1.msra.mxu0 0.0
        %1606 = vmatprep.subr.mxu0 0.0
        %1607 = vmatpush1.msra.mxu0 0.0
        %1608 = vmatprep.subr.mxu0 0.0
        %1609 = vmatpush1.msra.mxu0 0.0
        %1610 = vmatprep.subr.mxu0 0.0
        %1611 = vmatpush1.msra.mxu0 0.0
        %1612 = vmatprep.subr.mxu0 0.0
        %1613 = vmatpush1.msra.mxu0 0.0
        %1614 = vmatprep.subr.mxu0 0.0
        %1615 = vmatpush1.msra.mxu0 0.0
        %1616 = vmatprep.subr.mxu0 0.0
        %1617 = vmatpush1.msra.mxu0 0.0
        %1618 = vmatprep.subr.mxu0 0.0
        %1619 = vmatpush1.msra.mxu0 0.0
        %1620 = vmatprep.subr.mxu0 0.0
        %1621 = vmatpush1.msra.mxu0 0.0
        %1622 = vmatprep.subr.mxu0 0.0
        %1623 = vmatpush1.msra.mxu0 0.0
        %1624 = vmatprep.subr.mxu0 0.0
        %1625 = vmatpush1.msra.mxu0 0.0
        %1626 = vmatprep.subr.mxu0 0.0
        %1627 = vmatpush1.msra.mxu0 0.0
        %1628 = vmatprep.subr.mxu0 0.0
        %1629 = vmatpush1.msra.mxu0 0.0
        %1630 = vmatprep.subr.mxu0 0.0
        %1631 = vmatpush1.msra.mxu0 0.0
        %1632 = vmatprep.subr.mxu0 0.0
        %1633 = vmatpush1.msra.mxu0 0.0
        %1634 = vmatprep.mubr.f32.mxu0 0.0
        %1635 = vmatmul.mubr.f32.gmra.mrb[0].mxu0 %v1523
        %v1636 = vpop.f32.mrb[0].mxu0
        %v1637 = vadd.f32 0.0, %v1636
        %v1638 = vpop.f32.mrb[0].mxu0
        %1639 = vmatprep.mubr.f32.mxu0 0.0
        %1640 = vmatmul.mubr.f32.gmra.mrb[0].mxu0 %v1526
        %v1641 = vpop.f32.mrb[0].mxu0
        %v1642 = vadd.f32 0.0, %v1641
        %v1643 = vpop.f32.mrb[0].mxu0
        %1644 = vmatprep.mubr.f32.mxu0 0.0
        %1645 = vmatmul.mubr.f32.gmra.mrb[0].mxu0 %v1529
        %v1646 = vpop.f32.mrb[0].mxu0
        %v1647 = vadd.f32 0.0, %v1646
        %v1648 = vpop.f32.mrb[0].mxu0
        %1649 = vmatprep.mubr.f32.mxu0 0.0
        %1650 = vmatmul.mubr.f32.gmra.mrb[0].mxu0 %v1532
        %v1651 = vpop.f32.mrb[0].mxu0
        %v1652 = vadd.f32 0.0, %v1651
        %v1653 = vpop.f32.mrb[0].mxu0
        %1654 = vmatprep.mubr.f32.mxu0 0.0
        %1655 = vmatmul.mubr.f32.gmra.mrb[0].mxu0 %v1535
        %v1656 = vpop.f32.mrb[0].mxu0
        %v1657 = vadd.f32 0.0, %v1656
        %v1658 = vpop.f32.mrb[0].mxu0
        %1659 = vmatprep.mubr.f32.mxu0 0.0
        %1660 = vmatmul.mubr.f32.gmra.mrb[0].mxu0 %v1538
        %v1661 = vpop.f32.mrb[0].mxu0
        %v1662 = vadd.f32 0.0, %v1661
        %v1663 = vpop.f32.mrb[0].mxu0
        %1664 = vmatprep.mubr.f32.mxu0 0.0
        %1665 = vmatmul.mubr.f32.gmra.mrb[0].mxu0 %v1541
        %v1666 = vpop.f32.mrb[0].mxu0
        %v1667 = vadd.f32 0.0, %v1666
        %v1668 = vpop.f32.mrb[0].mxu0
        %1669 = vmatprep.mubr.f32.mxu0 0.0
        %1670 = vmatmul.mubr.f32.gmra.mrb[0].mxu0 %v1544
        %v1671 = vpop.f32.mrb[0].mxu0
        %v1672 = vadd.f32 0.0, %v1671
        %v1673 = vpop.f32.mrb[0].mxu0
        %1674 = vmatprep.mubr.f32.mxu0 0.0
        %1675 = vmatmul.mubr.f32.gmra.mrb[0].mxu0 %v1547
        %v1676 = vpop.f32.mrb[0].mxu0
        %v1677 = vadd.f32 0.0, %v1676
        %v1678 = vpop.f32.mrb[0].mxu0
        %1679 = vmatprep.mubr.f32.mxu0 0.0
        %1680 = vmatmul.mubr.f32.gmra.mrb[0].mxu0 %v1550
        %v1681 = vpop.f32.mrb[0].mxu0
        %v1682 = vadd.f32 0.0, %v1681
        %v1683 = vpop.f32.mrb[0].mxu0
        %1684 = vmatprep.mubr.f32.mxu0 0.0
        %1685 = vmatmul.mubr.f32.gmra.mrb[0].mxu0 %v1553
        %v1686 = vpop.f32.mrb[0].mxu0
        %v1687 = vadd.f32 0.0, %v1686
        %v1688 = vpop.f32.mrb[0].mxu0
        %1689 = vmatprep.mubr.f32.mxu0 0.0
        %1690 = vmatmul.mubr.f32.gmra.mrb[0].mxu0 %v1556
        %v1691 = vpop.f32.mrb[0].mxu0
        %v1692 = vadd.f32 0.0, %v1691
        %v1693 = vpop.f32.mrb[0].mxu0
        %1694 = vmatprep.mubr.f32.mxu0 0.0
        %1695 = vmatmul.mubr.f32.gmra.mrb[0].mxu0 %v1559
        %v1696 = vpop.f32.mrb[0].mxu0
        %v1697 = vadd.f32 0.0, %v1696
        %v1698 = vpop.f32.mrb[0].mxu0
        %1699 = vmatprep.mubr.f32.mxu0 0.0
        %1700 = vmatmul.mubr.f32.gmra.mrb[0].mxu0 %v1562
        %v1701 = vpop.f32.mrb[0].mxu0
        %v1702 = vadd.f32 0.0, %v1701
        %v1703 = vpop.f32.mrb[0].mxu0
        %1704 = vmatprep.mubr.f32.mxu0 0.0
        %1705 = vmatmul.mubr.f32.gmra.mrb[0].mxu0 %v1565
        %v1706 = vpop.f32.mrb[0].mxu0
        %v1707 = vadd.f32 0.0, %v1706
        %v1708 = vpop.f32.mrb[0].mxu0
        %1709 = vmatprep.mubr.f32.mxu0 0.0
        %1710 = vmatmul.mubr.f32.gmra.mrb[0].mxu0 %v1568
        %v1711 = vpop.f32.mrb[0].mxu0
        %v1712 = vadd.f32 0.0, %v1711
        %v1713 = vpop.f32.mrb[0].mxu0
        %1714 = vdwg.mxu0
        %1715 = vst.msk [vmem:[%s361] sm:$0xff] %vm404, %v1637
        %1716 = vst.msk [vmem:[%s361 + $0x8] sm:$0xff] %vm404, %v1642
        %1717 = vst.msk [vmem:[%s361 + $0x10] sm:$0xff] %vm404, %v1647
        %1718 = vst.msk [vmem:[%s361 + $0x18] sm:$0xff] %vm404, %v1652
        %1719 = vst.msk [vmem:[%s361 + $0x20] sm:$0xff] %vm404, %v1657
        %1720 = vst.msk [vmem:[%s361 + $0x28] sm:$0xff] %vm404, %v1662
        %1721 = vst.msk [vmem:[%s361 + $0x30] sm:$0xff] %vm404, %v1667
        %1722 = vst.msk [vmem:[%s361 + $0x38] sm:$0xff] %vm404, %v1672
        %s1723 = scalar_lea.vmem %s361, 64 [#allocation13]
        %1724 = vst.msk [vmem:[%s1723] sm:$0xff] %vm404, %v1677
        %1725 = vst.msk [vmem:[%s1723 + $0x8] sm:$0xff] %vm404, %v1682
        %1726 = vst.msk [vmem:[%s1723 + $0x10] sm:$0xff] %vm404, %v1687
        %1727 = vst.msk [vmem:[%s1723 + $0x18] sm:$0xff] %vm404, %v1692
        %1728 = vst.msk [vmem:[%s1723 + $0x20] sm:$0xff] %vm404, %v1697
        %1729 = vst.msk [vmem:[%s1723 + $0x28] sm:$0xff] %vm404, %v1702
        %1730 = vst.msk [vmem:[%s1723 + $0x30] sm:$0xff] %vm404, %v1707
        %1731 = vst.msk [vmem:[%s1723 + $0x38] sm:$0xff] %vm404, %v1712
        %s1732 = sand.u32 %s181, 1
        %s1733 = scalar_lea.sflag [#allocation4], %s1732
        %s1734 = sand.u32 %s181, 1
        %s1735 = smul.addr %s1734, 128
        %s1736 = scalar_lea.vmem [#allocation13], %s1735
        // Predicated region
        $region69: #{tpu_custom_call.1} parent=43 // pred_check
          %p1737 = pneg %p191
        $region70: #{tpu_custom_call.1} parent=43 // pred_check_branch
          %1739 = sbr.rel (%p1737) target = $region72
        $region71: #{tpu_custom_call.1} parent=43 // pred_region
          %s1740 = smul.u32 4, %s31
          %s1742 = ssub.s32 2048, 2048
          %1743 = vsyncadd %s1733, %s1742
          %s1744 = smul.addr %s1740, 2
          %s1745 = smul.addr %s30, 16
          %s1746 = sadd.s32 %s1744, %s1745
          %s1747 = smul.addr %s1746, 128
          %s1748 = scalar_lea.hbm %s6, %s1747
          %s1749 = sshll.u32 %s1736, 4
          %s1750 = int_to_ptr.vmem [resolvable:$true] %s1749
          %1755 = dma.vmem_to_hbm [thread:$0]  %s1750, 2048, %s1748, %s1733, 128, 128, 8
        $region72: #{tpu_custom_call.1} parent=43 // pred_fallthru
          _
      $region44: #{tpu_custom_call.1} parent=5 // pred_fallthru
        _
      %p1756 = scmp.le.s32.totalorder 2, %s21
      // Predicated region
      $region73: #{tpu_custom_call.1} parent=5 // pred_check
        %p1757 = pneg %p1756
      $region74: #{tpu_custom_call.1} parent=5 // pred_check_branch
        %1759 = sbr.rel (%p1757) target = $region76
      $region75: #{tpu_custom_call.1} parent=5 // pred_region
        %s1760 = ssub.s32 %s21, 2
        // Predicated region
        $region77: #{tpu_custom_call.1} parent=75 // pred_check
          %p1761 = pneg %p197
        $region78: #{tpu_custom_call.1} parent=75 // pred_check_branch
          %1763 = sbr.rel (%p1761) target = $region80
        $region79: #{tpu_custom_call.1} parent=75 // pred_region
          %s1764 = sand.u32 %s182, 1
          %s1765 = scalar_lea.sflag [#allocation4], %s1764
          %s1766 = sand.u32 %s182, 1
          %s1767 = smul.addr %s1766, 128
          %s1768 = scalar_lea.vmem [#allocation13], %s1767
          %1769 = dma.done %s1765, 2048
        $region80: #{tpu_custom_call.1} parent=75 // pred_fallthru
          _
      $region76: #{tpu_custom_call.1} parent=5 // pred_fallthru
        _
    $region6: #{tpu_custom_call.1} parent=1 // loop_footer
      %s25 = sadd.s32 1, %s21
    $region7: #{tpu_custom_call.1} parent=1 // loop_footer_branch
      %20 = sbr.rel target = $region3
    $region8: #{tpu_custom_call.1} parent=1 // loop_exit
      _
    %1770 = vsyncpa [#allocation3], 1
    %s1771 = scalar_lea.sflag [#allocation3], 1
    %1772 = vsyncpa %s1771, 1
    %1773 = vsyncpa [#allocation6], 1
    %1774 = vsyncpa [#allocation9], 1
    %1775 = vsyncpa [#allocation12], 1
    %1776 = vsyncpa [#allocation4], 1
    %s1777 = scalar_lea.sflag [#allocation4], 1
    %1778 = vsyncpa %s1777, 1

// kernel: tpu_custom_call.1
$region0: #{tpu_custom_call.1}
  #allocation0 [shape = 'u32[]', space=smem, size = 0x4, offset = 0x4, fixed_abs, tag = 'smem constant byte address 0x4 - core index']
  #allocation1 [shape = 'u32[144,128]{1,0:T(1,128)}', space=vmem, size = 0x12000, scoped, tag = 'internal scratch']
  %s0 = inlined_call_operand.hbm [shape: f32[2,4,16,16], index: 0, kind: input, shape index: {}]
  %s1 = inlined_call_operand.hbm [shape: f32[16,16], index: 1, kind: input, shape index: {}]
  %s2 = inlined_call_operand.hbm [shape: f32[16,16], index: 2, kind: input, shape index: {}]
  %s3 = inlined_call_operand.hbm [shape: f32[4,16,16], index: 3, kind: input, shape index: {}]
  %s4 = inlined_call_operand.hbm [shape: f32[8,16,16], index: 4, kind: input, shape index: {}]
  %s5 = inlined_call_operand.hbm [shape: f32[2,16,16], index: 5, kind: input, shape index: {}]
  %s6 = inlined_call_operand.hbm [shape: f32[2,2,4,16,16], index: 6, kind: output, shape index: {}]
  %s7 = sld [smem:[#allocation0]]
  $region81: #{tpu_custom_call.1} parent=0
    _
  %s9 = ssub.s32 1, %s7
  %s10 = scalar_select 0, %s9, %s7
  $region1: #{tpu_custom_call.1} parent=0
    #allocation2 [shape = 'u8[65536]{0}', space=vmem, size = 0x10000, scoped, tag = 'input window, operand 0']
    #allocation3 [shape = 's32[2]{0}', space=sflag, size = 0x8, scoped, tag = 'scoped memory for tpu_custom_call.1']
    #allocation4 [shape = 's32[2]{0}', space=sflag, size = 0x8, scoped, tag = 'scoped memory for tpu_custom_call.1']
    #allocation5 [shape = 'u8[8192]{0}', space=vmem, size = 0x2000, scoped, tag = 'input window, operand 1, single buffered']
    #allocation6 [shape = 's32[1]{0}', space=sflag, size = 0x4, scoped, tag = 'scoped memory for tpu_custom_call.1']
    #allocation7 [shape = 'u8[8192]{0}', space=vmem, size = 0x2000, scoped, tag = 'input window, operand 2, single buffered']
    #allocation8 [shape = 'u8[32768]{0}', space=vmem, size = 0x8000, scoped, tag = 'input window, operand 3, single buffered']
    #allocation9 [shape = 's32[1]{0}', space=sflag, size = 0x4, scoped, tag = 'scoped memory for tpu_custom_call.1']
    #allocation10 [shape = 'u8[65536]{0}', space=vmem, size = 0x10000, scoped, tag = 'input window, operand 4, single buffered']
    #allocation11 [shape = 'u8[16384]{0}', space=vmem, size = 0x4000, scoped, tag = 'input window, operand 5, single buffered']
    #allocation12 [shape = 's32[1]{0}', space=sflag, size = 0x4, scoped, tag = 'scoped memory for tpu_custom_call.1']
    #allocation13 [shape = 'u8[131072]{0}', space=vmem, size = 0x20000, scoped, tag = 'output window, operand 0']
    %11 = vsyncpa [#allocation3], 0
    %s12 = scalar_lea.sflag [#allocation3], 1
    %13 = vsyncpa %s12, 0
    %14 = vsyncpa [#allocation6], 0
    %15 = vsyncpa [#allocation9], 0
    %16 = vsyncpa [#allocation12], 0
    %17 = vsyncpa [#allocation4], 0
    %s18 = scalar_lea.sflag [#allocation4], 1
    %19 = vsyncpa %s18, 0
    loop: start=0, step=1, limit=4
    $region2: #{tpu_custom_call.1} parent=1 // loop_pre_header
      _
    $region3: #{tpu_custom_call.1} parent=1 // loop_header
      %s21 = sphi 0, %s25
      %p22 = scmp.ge.s32.totalorder %s21, 4
      %s28 = sphi 0, %s40
      %s29 = sphi 0, %s36
      %s30 = sphi 0, %s28
      %s31 = sphi 0, %s29
      %s32 = sphi 0, %s30
      %s33 = sphi 0, %s31
      %s45 = sphi 0, %s47
      %s48 = sphi 0, %s45
      %s49 = sphi 0, %s48
      %s65 = sphi 0, %s49
      %s69 = sphi 0, %s69
      %s71 = sphi 0, %s69
      %s72 = sphi 0, %s71
      %s86 = sphi 0, %s72
      %s90 = sphi 0, %s90
      %s92 = sphi 0, %s90
      %s93 = sphi 0, %s92
      %s107 = sphi 0, %s93
      %s111 = sphi 0, %s111
      %s113 = sphi 0, %s111
      %s114 = sphi 0, %s113
      %s128 = sphi 0, %s114
      %s132 = sphi 0, %s132
      %s134 = sphi 0, %s132
      %s135 = sphi 0, %s134
      %s149 = sphi 0, %s135
      %s153 = sphi 0, %s153
      %s155 = sphi 0, %s153
      %s156 = sphi 0, %s155
      %s170 = sphi 0, %s156
      %s178 = sphi 0, %s180
      %s181 = sphi 0, %s178
      %s182 = sphi 0, %s181
      %s198 = sphi 0, %s182
    $region4: #{tpu_custom_call.1} parent=1 // loop_header_branch
      %24 = sbr.rel (%p22) target = $region8
    $region5: #{tpu_custom_call.1} parent=1 // loop_body
      %s26 = ssub.s32 %s21, 1
      %s27 = ssub.s32 %s21, 2
      %s34 = sadd.s32 1, %s29
      %p35 = scmp.ge.s32.totalorder %s34, 1
      %s36 = scalar_select %p35, 0, %s34
      %s37 = sadd.s32 1, %s28
      %s38 = scalar_select %p35, %s37, %s28
      %p39 = scmp.ge.s32.totalorder %s38, 2
      %s40 = scalar_select %p39, 0, %s38
      %s41 = ssub.s32 %s28, %s40
      %s42 = ssub.s32 %s29, %s36
      %s43 = sor.u32 %s41, %s42
      %p44 = scmp.eq.s32.totalorder %s43, 0
      %s46 = sadd.s32 %s45, 1
      %s47 = scalar_select %p44, %s45, %s46
      %p50 = pneg %p44
      %p51 = scmp.eq.s32.totalorder %s21, 1
      %p52 = por %p50, %p51
      %p53 = scmp.ne.s32.totalorder %s45, %s48
      %p54 = scmp.eq.s32.totalorder %s21, 0
      %p55 = por %p53, %p54
      %p56 = scmp.ne.s32.totalorder %s45, %s48
      %p57 = scmp.eq.s32.totalorder %s26, 1
      %p58 = por %p56, %p57
      %p59 = scmp.ne.s32.totalorder %s48, %s49
      %p60 = scmp.eq.s32.totalorder %s26, 0
      %p61 = por %p59, %p60
      %p62 = scmp.ne.s32.totalorder %s48, %s49
      %p63 = scmp.eq.s32.totalorder %s27, 1
      %p64 = por %p62, %p63
      %p66 = scmp.ne.s32.totalorder %s49, %s65
      %p67 = scmp.eq.s32.totalorder %s27, 0
      %p68 = por %p66, %p67
      %s70 = sadd.s32 %s69, 1
      %p73 = scmp.eq.s32.totalorder %s21, 1
      %p74 = scmp.ne.s32.totalorder %s69, %s71
      %p75 = scmp.eq.s32.totalorder %s21, 0
      %p76 = por %p74, %p75
      %p77 = scmp.ne.s32.totalorder %s69, %s71
      %p78 = scmp.eq.s32.totalorder %s26, 1
      %p79 = por %p77, %p78
      %p80 = scmp.ne.s32.totalorder %s71, %s72
      %p81 = scmp.eq.s32.totalorder %s26, 0
      %p82 = por %p80, %p81
      %p83 = scmp.ne.s32.totalorder %s71, %s72
      %p84 = scmp.eq.s32.totalorder %s27, 1
      %p85 = por %p83, %p84
      %p87 = scmp.ne.s32.totalorder %s72, %s86
      %p88 = scmp.eq.s32.totalorder %s27, 0
      %p89 = por %p87, %p88
      %s91 = sadd.s32 %s90, 1
      %p94 = scmp.eq.s32.totalorder %s21, 1
      %p95 = scmp.ne.s32.totalorder %s90, %s92
      %p96 = scmp.eq.s32.totalorder %s21, 0
      %p97 = por %p95, %p96
      %p98 = scmp.ne.s32.totalorder %s90, %s92
      %p99 = scmp.eq.s32.totalorder %s26, 1
      %p100 = por %p98, %p99
      %p101 = scmp.ne.s32.totalorder %s92, %s93
      %p102 = scmp.eq.s32.totalorder %s26, 0
      %p103 = por %p101, %p102
      %p104 = scmp.ne.s32.totalorder %s92, %s93
      %p105 = scmp.eq.s32.totalorder %s27, 1
      %p106 = por %p104, %p105
      %p108 = scmp.ne.s32.totalorder %s93, %s107
      %p109 = scmp.eq.s32.totalorder %s27, 0
      %p110 = por %p108, %p109
      %s112 = sadd.s32 %s111, 1
      %p115 = scmp.eq.s32.totalorder %s21, 1
      %p116 = scmp.ne.s32.totalorder %s111, %s113
      %p117 = scmp.eq.s32.totalorder %s21, 0
      %p118 = por %p116, %p117
      %p119 = scmp.ne.s32.totalorder %s111, %s113
      %p120 = scmp.eq.s32.totalorder %s26, 1
      %p121 = por %p119, %p120
      %p122 = scmp.ne.s32.totalorder %s113, %s114
      %p123 = scmp.eq.s32.totalorder %s26, 0
      %p124 = por %p122, %p123
      %p125 = scmp.ne.s32.totalorder %s113, %s114
      %p126 = scmp.eq.s32.totalorder %s27, 1
      %p127 = por %p125, %p126
      %p129 = scmp.ne.s32.totalorder %s114, %s128
      %p130 = scmp.eq.s32.totalorder %s27, 0
      %p131 = por %p129, %p130
      %s133 = sadd.s32 %s132, 1
      %p136 = scmp.eq.s32.totalorder %s21, 1
      %p137 = scmp.ne.s32.totalorder %s132, %s134
      %p138 = scmp.eq.s32.totalorder %s21, 0
      %p139 = por %p137, %p138
      %p140 = scmp.ne.s32.totalorder %s132, %s134
      %p141 = scmp.eq.s32.totalorder %s26, 1
      %p142 = por %p140, %p141
      %p143 = scmp.ne.s32.totalorder %s134, %s135
      %p144 = scmp.eq.s32.totalorder %s26, 0
      %p145 = por %p143, %p144
      %p146 = scmp.ne.s32.totalorder %s134, %s135
      %p147 = scmp.eq.s32.totalorder %s27, 1
      %p148 = por %p146, %p147
      %p150 = scmp.ne.s32.totalorder %s135, %s149
      %p151 = scmp.eq.s32.totalorder %s27, 0
      %p152 = por %p150, %p151
      %s154 = sadd.s32 %s153, 1
      %p157 = scmp.eq.s32.totalorder %s21, 1
      %p158 = scmp.ne.s32.totalorder %s153, %s155
      %p159 = scmp.eq.s32.totalorder %s21, 0
      %p160 = por %p158, %p159
      %p161 = scmp.ne.s32.totalorder %s153, %s155
      %p162 = scmp.eq.s32.totalorder %s26, 1
      %p163 = por %p161, %p162
      %p164 = scmp.ne.s32.totalorder %s155, %s156
      %p165 = scmp.eq.s32.totalorder %s26, 0
      %p166 = por %p164, %p165
      %p167 = scmp.ne.s32.totalorder %s155, %s156
      %p168 = scmp.eq.s32.totalorder %s27, 1
      %p169 = por %p167, %p168
      %p171 = scmp.ne.s32.totalorder %s156, %s170
      %p172 = scmp.eq.s32.totalorder %s27, 0
      %p173 = por %p171, %p172
      %s174 = ssub.s32 %s28, %s40
      %s175 = ssub.s32 %s29, %s36
      %s176 = sor.u32 %s174, %s175
      %p177 = scmp.eq.s32.totalorder %s176, 0
      %s179 = sadd.s32 %s178, 1
      %s180 = scalar_select %p177, %s178, %s179
      %p183 = pneg %p177
      %p184 = scmp.eq.s32.totalorder %s21, 1
      %p185 = por %p183, %p184
      %p186 = scmp.ne.s32.totalorder %s178, %s181
      %p187 = scmp.eq.s32.totalorder %s21, 0
      %p188 = por %p186, %p187
      %p189 = scmp.ne.s32.totalorder %s178, %s181
      %p190 = scmp.eq.s32.totalorder %s26, 1
      %p191 = por %p189, %p190
      %p192 = scmp.ne.s32.totalorder %s181, %s182
      %p193 = scmp.eq.s32.totalorder %s26, 0
      %p194 = por %p192, %p193
      %p195 = scmp.ne.s32.totalorder %s181, %s182
      %p196 = scmp.eq.s32.totalorder %s27, 1
      %p197 = por %p195, %p196
      %p199 = scmp.ne.s32.totalorder %s182, %s198
      %p200 = scmp.eq.s32.totalorder %s27, 0
      %p201 = por %p199, %p200
      %p202 = scmp.le.s32.totalorder 1, %s21
      %p203 = scmp.lt.s32.totalorder %s21, 3
      %p204 = pnand %p202, %p203
      %p205 = pneg %p204
      // Predicated region
      $region9: #{tpu_custom_call.1} parent=5 // pred_check
        _
      $region10: #{tpu_custom_call.1} parent=5 // pred_check_branch
        %207 = sbr.rel (%p204) target = $region12
      $region11: #{tpu_custom_call.1} parent=5 // pred_region
        %s208 = ssub.s32 %s21, 1
        // Predicated region
        $region13: #{tpu_custom_call.1} parent=11 // pred_check
          %p209 = pneg %p82
        $region14: #{tpu_custom_call.1} parent=11 // pred_check_branch
          %211 = sbr.rel (%p209) target = $region16
        $region15: #{tpu_custom_call.1} parent=11 // pred_region
          %s213 = ssub.s32 256, 256
          %214 = vsyncadd [#allocation6], %s213
          %s215 = sshll.u32 [#allocation5], 4
          %s216 = int_to_ptr.vmem [resolvable:$true] %s215
          %221 = dma.hbm_to_vmem [thread:$0]  %s1, 256, %s216, [#allocation6], 128, 128, 8
        $region16: #{tpu_custom_call.1} parent=11 // pred_fallthru
          _
        // Predicated region
        $region17: #{tpu_custom_call.1} parent=11 // pred_check
          %p222 = pneg %p103
        $region18: #{tpu_custom_call.1} parent=11 // pred_check_branch
          %224 = sbr.rel (%p222) target = $region20
        $region19: #{tpu_custom_call.1} parent=11 // pred_region
          %s226 = ssub.s32 256, 256
          %227 = vsyncadd [#allocation6], %s226
          %s228 = sshll.u32 [#allocation7], 4
          %s229 = int_to_ptr.vmem [resolvable:$true] %s228
          %234 = dma.hbm_to_vmem [thread:$0]  %s2, 256, %s229, [#allocation6], 128, 128, 8
        $region20: #{tpu_custom_call.1} parent=11 // pred_fallthru
          _
        // Predicated region
        $region21: #{tpu_custom_call.1} parent=11 // pred_check
          %p235 = pneg %p124
        $region22: #{tpu_custom_call.1} parent=11 // pred_check_branch
          %237 = sbr.rel (%p235) target = $region24
        $region23: #{tpu_custom_call.1} parent=11 // pred_region
          %s239 = ssub.s32 1024, 1024
          %240 = vsyncadd [#allocation9], %s239
          %s241 = sshll.u32 [#allocation8], 4
          %s242 = int_to_ptr.vmem [resolvable:$true] %s241
          %247 = dma.hbm_to_vmem [thread:$0]  %s3, 1024, %s242, [#allocation9], 128, 128, 8
        $region24: #{tpu_custom_call.1} parent=11 // pred_fallthru
          _
        // Predicated region
        $region25: #{tpu_custom_call.1} parent=11 // pred_check
          %p248 = pneg %p145
        $region26: #{tpu_custom_call.1} parent=11 // pred_check_branch
          %250 = sbr.rel (%p248) target = $region28
        $region27: #{tpu_custom_call.1} parent=11 // pred_region
          %s252 = ssub.s32 2048, 2048
          %253 = vsyncadd [#allocation9], %s252
          %s254 = sshll.u32 [#allocation10], 4
          %s255 = int_to_ptr.vmem [resolvable:$true] %s254
          %260 = dma.hbm_to_vmem [thread:$0]  %s4, 2048, %s255, [#allocation9], 128, 128, 8
        $region28: #{tpu_custom_call.1} parent=11 // pred_fallthru
          _
        // Predicated region
        $region29: #{tpu_custom_call.1} parent=11 // pred_check
          %p261 = pneg %p166
        $region30: #{tpu_custom_call.1} parent=11 // pred_check_branch
          %263 = sbr.rel (%p261) target = $region32
        $region31: #{tpu_custom_call.1} parent=11 // pred_region
          %s265 = ssub.s32 512, 512
          %266 = vsyncadd [#allocation12], %s265
          %s267 = sshll.u32 [#allocation11], 4
          %s268 = int_to_ptr.vmem [resolvable:$true] %s267
          %273 = dma.hbm_to_vmem [thread:$0]  %s5, 512, %s268, [#allocation12], 128, 128, 8
        $region32: #{tpu_custom_call.1} parent=11 // pred_fallthru
          _
      $region12: #{tpu_custom_call.1} parent=5 // pred_fallthru
        _
      %p274 = scmp.lt.s32.totalorder %s21, 2
      // Predicated region
      $region33: #{tpu_custom_call.1} parent=5 // pred_check
        %p275 = pneg %p274
      $region34: #{tpu_custom_call.1} parent=5 // pred_check_branch
        %277 = sbr.rel (%p275) target = $region36
      $region35: #{tpu_custom_call.1} parent=5 // pred_region
        // Predicated region
        $region37: #{tpu_custom_call.1} parent=35 // pred_check
          %p278 = pneg %p55
        $region38: #{tpu_custom_call.1} parent=35 // pred_check_branch
          %280 = sbr.rel (%p278) target = $region40
        $region39: #{tpu_custom_call.1} parent=35 // pred_region
          %s281 = sand.u32 %s45, 1
          %s282 = scalar_lea.sflag [#allocation3], %s281
          %s283 = sand.u32 %s45, 1
          %s284 = smul.addr %s283, 64
          %s285 = scalar_lea.vmem [#allocation2], %s284
          %s286 = smul.u32 4, %s29
          %s288 = ssub.s32 1024, 1024
          %289 = vsyncadd %s282, %s288
          %s290 = smul.addr %s286, 2
          %s291 = smul.addr %s28, 8
          %s292 = sadd.s32 %s290, %s291
          %s293 = smul.addr %s292, 128
          %s294 = scalar_lea.hbm %s0, %s293
          %s295 = sshll.u32 %s285, 4
          %s296 = int_to_ptr.vmem [resolvable:$true] %s295
          %301 = dma.hbm_to_vmem [thread:$0]  %s294, 1024, %s296, %s282, 128, 128, 8
        $region40: #{tpu_custom_call.1} parent=35 // pred_fallthru
          _
      $region36: #{tpu_custom_call.1} parent=5 // pred_fallthru
        _
      %p302 = scmp.le.s32.totalorder 1, %s21
      %p303 = scmp.lt.s32.totalorder %s21, 3
      %p304 = pnand %p302, %p303
      %p305 = pneg %p304
      // Predicated region
      $region41: #{tpu_custom_call.1} parent=5 // pred_check
        _
      $region42: #{tpu_custom_call.1} parent=5 // pred_check_branch
        %307 = sbr.rel (%p304) target = $region44
      $region43: #{tpu_custom_call.1} parent=5 // pred_region
        %s308 = ssub.s32 %s21, 1
        %s309 = sand.u32 %s48, 1
        %s310 = scalar_lea.sflag [#allocation3], %s309
        %s311 = sand.u32 %s48, 1
        %s312 = smul.addr %s311, 64
        %s313 = scalar_lea.vmem [#allocation2], %s312
        // Predicated region
        $region45: #{tpu_custom_call.1} parent=43 // pred_check
          %p314 = pneg %p61
        $region46: #{tpu_custom_call.1} parent=43 // pred_check_branch
          %316 = sbr.rel (%p314) target = $region48
        $region47: #{tpu_custom_call.1} parent=43 // pred_region
          %317 = dma.done %s310, 1024
        $region48: #{tpu_custom_call.1} parent=43 // pred_fallthru
          _
        // Predicated region
        $region49: #{tpu_custom_call.1} parent=43 // pred_check
          %p318 = pneg %p82
        $region50: #{tpu_custom_call.1} parent=43 // pred_check_branch
          %320 = sbr.rel (%p318) target = $region52
        $region51: #{tpu_custom_call.1} parent=43 // pred_region
          %321 = dma.done [#allocation6], 256
        $region52: #{tpu_custom_call.1} parent=43 // pred_fallthru
          _
        // Predicated region
        $region53: #{tpu_custom_call.1} parent=43 // pred_check
          %p322 = pneg %p103
        $region54: #{tpu_custom_call.1} parent=43 // pred_check_branch
          %324 = sbr.rel (%p322) target = $region56
        $region55: #{tpu_custom_call.1} parent=43 // pred_region
          %325 = dma.done [#allocation6], 256
        $region56: #{tpu_custom_call.1} parent=43 // pred_fallthru
          _
        // Predicated region
        $region57: #{tpu_custom_call.1} parent=43 // pred_check
          %p326 = pneg %p124
        $region58: #{tpu_custom_call.1} parent=43 // pred_check_branch
          %328 = sbr.rel (%p326) target = $region60
        $region59: #{tpu_custom_call.1} parent=43 // pred_region
          %329 = dma.done [#allocation9], 1024
        $region60: #{tpu_custom_call.1} parent=43 // pred_fallthru
          _
        // Predicated region
        $region61: #{tpu_custom_call.1} parent=43 // pred_check
          %p330 = pneg %p145
        $region62: #{tpu_custom_call.1} parent=43 // pred_check_branch
          %332 = sbr.rel (%p330) target = $region64
        $region63: #{tpu_custom_call.1} parent=43 // pred_region
          %333 = dma.done [#allocation9], 2048
        $region64: #{tpu_custom_call.1} parent=43 // pred_fallthru
          _
        // Predicated region
        $region65: #{tpu_custom_call.1} parent=43 // pred_check
          %p334 = pneg %p166
        $region66: #{tpu_custom_call.1} parent=43 // pred_check_branch
          %336 = sbr.rel (%p334) target = $region68
        $region67: #{tpu_custom_call.1} parent=43 // pred_region
          %337 = dma.done [#allocation12], 512
        $region68: #{tpu_custom_call.1} parent=43 // pred_fallthru
          _
        %s338 = sand.u32 %s48, 1
        %s339 = scalar_lea.sflag [#allocation3], %s338
        %s340 = sand.u32 %s48, 1
        %s341 = smul.addr %s340, 64
        %s342 = scalar_lea.vmem [#allocation2], %s341
        %p343 = pneg %p61
        %p344 = pneg %p58
        %p345 = pneg %p82
        %p346 = pneg %p79
        %p347 = pneg %p103
        %p348 = pneg %p100
        %p349 = pneg %p124
        %p350 = pneg %p121
        %p351 = pneg %p145
        %p352 = pneg %p142
        %p353 = pneg %p166
        %p354 = pneg %p163
        %p355 = pneg %p194
        %p356 = pneg %p191
        %s357 = sand.u32 %s181, 1
        %s358 = scalar_lea.sflag [#allocation4], %s357
        %s359 = sand.u32 %s181, 1
        %s360 = smul.addr %s359, 128
        %s361 = scalar_lea.vmem [#allocation13], %s360
        %s362 = smul.u32 4, %s31
        %s363 = smul.u32 4, %s31
        %v364 = vld [vmem:[%s313] sm:$0xff]
        %v365 = vld [vmem:[%s313 + $0x8] sm:$0xff]
        %v366 = vld [vmem:[%s313 + $0x10] sm:$0xff]
        %v367 = vld [vmem:[%s313 + $0x18] sm:$0xff]
        %v368 = vld [vmem:[%s313 + $0x20] sm:$0xff]
        %v369 = vld [vmem:[%s313 + $0x28] sm:$0xff]
        %v370 = vld [vmem:[%s313 + $0x30] sm:$0xff]
        %v371 = vld [vmem:[%s313 + $0x38] sm:$0xff]
        %v372 = vld [vmem:[#allocation5] sm:$0xff]
        %v373 = vld [vmem:[#allocation5 + $0x8] sm:$0xff]
        %v374 = vld [vmem:[#allocation7] sm:$0xff]
        %v375 = vld [vmem:[#allocation7 + $0x8] sm:$0xff]
        %v376 = vld [vmem:[#allocation8] sm:$0xff]
        %v377 = vld [vmem:[#allocation8 + $0x8] sm:$0xff]
        %v378 = vld [vmem:[#allocation8 + $0x10] sm:$0xff]
        %v379 = vld [vmem:[#allocation8 + $0x18] sm:$0xff]
        %v380 = vld [vmem:[#allocation8 + $0x20] sm:$0xff]
        %v381 = vld [vmem:[#allocation8 + $0x28] sm:$0xff]
        %v382 = vld [vmem:[#allocation8 + $0x30] sm:$0xff]
        %v383 = vld [vmem:[#allocation8 + $0x38] sm:$0xff]
        %v384 = vld [vmem:[#allocation10] sm:$0xff]
        %v385 = vld [vmem:[#allocation10 + $0x8] sm:$0xff]
        %v386 = vld [vmem:[#allocation10 + $0x10] sm:$0xff]
        %v387 = vld [vmem:[#allocation10 + $0x18] sm:$0xff]
        %v388 = vld [vmem:[#allocation10 + $0x20] sm:$0xff]
        %v389 = vld [vmem:[#allocation10 + $0x28] sm:$0xff]
        %v390 = vld [vmem:[#allocation10 + $0x30] sm:$0xff]
        %v391 = vld [vmem:[#allocation10 + $0x38] sm:$0xff]
        %v392 = vld [vmem:[#allocation10 + $0x40] sm:$0xff]
        %v393 = vld [vmem:[#allocation10 + $0x48] sm:$0xff]
        %v394 = vld [vmem:[#allocation10 + $0x50] sm:$0xff]
        %v395 = vld [vmem:[#allocation10 + $0x58] sm:$0xff]
        %v396 = vld [vmem:[#allocation10 + $0x60] sm:$0xff]
        %v397 = vld [vmem:[#allocation10 + $0x68] sm:$0xff]
        %v398 = vld [vmem:[#allocation10 + $0x70] sm:$0xff]
        %v399 = vld [vmem:[#allocation10 + $0x78] sm:$0xff]
        %v400 = vld [vmem:[#allocation11] sm:$0xff]
        %v401 = vld [vmem:[#allocation11 + $0x8] sm:$0xff]
        %v402 = vld [vmem:[#allocation11 + $0x10] sm:$0xff]
        %v403 = vld [vmem:[#allocation11 + $0x18] sm:$0xff]
        %vm404 = vcmask 130048
        %v406 = vsel %vm404, %v364, 0
        %v409 = vsel %vm404, %v365, 0
        %v412 = vsel %vm404, %v366, 0
        %v415 = vsel %vm404, %v367, 0
        %v418 = vsel %vm404, %v368, 0
        %v421 = vsel %vm404, %v369, 0
        %v424 = vsel %vm404, %v370, 0
        %v427 = vsel %vm404, %v371, 0
        %429 = vmatprep.subr.mxu0 0.0
        %430 = vmatpush1.msra.mxu0 %v374
        %431 = vmatprep.subr.mxu0 0.0
        %432 = vmatpush1.msra.mxu0 %v375
        %433 = vmatprep.subr.mxu0 0.0
        %434 = vmatpush1.msra.mxu0 0.0
        %435 = vmatprep.subr.mxu0 0.0
        %436 = vmatpush1.msra.mxu0 0.0
        %437 = vmatprep.subr.mxu0 0.0
        %438 = vmatpush1.msra.mxu0 0.0
        %439 = vmatprep.subr.mxu0 0.0
        %440 = vmatpush1.msra.mxu0 0.0
        %441 = vmatprep.subr.mxu0 0.0
        %442 = vmatpush1.msra.mxu0 0.0
        %443 = vmatprep.subr.mxu0 0.0
        %444 = vmatpush1.msra.mxu0 0.0
        %445 = vmatprep.subr.mxu0 0.0
        %446 = vmatpush1.msra.mxu0 0.0
        %447 = vmatprep.subr.mxu0 0.0
        %448 = vmatpush1.msra.mxu0 0.0
        %449 = vmatprep.subr.mxu0 0.0
        %450 = vmatpush1.msra.mxu0 0.0
        %451 = vmatprep.subr.mxu0 0.0
        %452 = vmatpush1.msra.mxu0 0.0
        %453 = vmatprep.subr.mxu0 0.0
        %454 = vmatpush1.msra.mxu0 0.0
        %455 = vmatprep.subr.mxu0 0.0
        %456 = vmatpush1.msra.mxu0 0.0
        %457 = vmatprep.subr.mxu0 0.0
        %458 = vmatpush1.msra.mxu0 0.0
        %459 = vmatprep.subr.mxu0 0.0
        %460 = vmatpush1.msra.mxu0 0.0
        %461 = vmatprep.subr.mxu0 0.0
        %462 = vmatpush1.msra.mxu0 0.0
        %463 = vmatprep.subr.mxu0 0.0
        %464 = vmatpush1.msra.mxu0 0.0
        %465 = vmatprep.subr.mxu0 0.0
        %466 = vmatpush1.msra.mxu0 0.0
        %467 = vmatprep.subr.mxu0 0.0
        %468 = vmatpush1.msra.mxu0 0.0
        %469 = vmatprep.subr.mxu0 0.0
        %470 = vmatpush1.msra.mxu0 0.0
        %471 = vmatprep.subr.mxu0 0.0
        %472 = vmatpush1.msra.mxu0 0.0
        %473 = vmatprep.subr.mxu0 0.0
        %474 = vmatpush1.msra.mxu0 0.0
        %475 = vmatprep.subr.mxu0 0.0
        %476 = vmatpush1.msra.mxu0 0.0
        %477 = vmatprep.subr.mxu0 0.0
        %478 = vmatpush1.msra.mxu0 0.0
        %479 = vmatprep.subr.mxu0 0.0
        %480 = vmatpush1.msra.mxu0 0.0
        %481 = vmatprep.subr.mxu0 0.0
        %482 = vmatpush1.msra.mxu0 0.0
        %483 = vmatprep.subr.mxu0 0.0
        %484 = vmatpush1.msra.mxu0 0.0
        %485 = vmatprep.subr.mxu0 0.0
        %486 = vmatpush1.msra.mxu0 0.0
        %487 = vmatprep.subr.mxu0 0.0
        %488 = vmatpush1.msra.mxu0 0.0
        %489 = vmatprep.subr.mxu0 0.0
        %490 = vmatpush1.msra.mxu0 0.0
        %491 = vmatprep.subr.mxu0 0.0
        %492 = vmatpush1.msra.mxu0 0.0
        %493 = vmatprep.mubr.f32.mxu0 0.0
        %494 = vmatmul.mubr.f32.gmra.mrb[0].mxu0 %v406
        %v495 = vpop.f32.mrb[0].mxu0
        %v496 = vadd.f32 0.0, %v495
        %v497 = vpop.f32.mrb[0].mxu0
        %498 = vmatprep.mubr.f32.mxu0 0.0
        %499 = vmatmul.mubr.f32.gmra.mrb[0].mxu0 %v409
        %v500 = vpop.f32.mrb[0].mxu0
        %v501 = vadd.f32 0.0, %v500
        %v502 = vpop.f32.mrb[0].mxu0
        %503 = vmatprep.mubr.f32.mxu0 0.0
        %504 = vmatmul.mubr.f32.gmra.mrb[0].mxu0 %v412
        %v505 = vpop.f32.mrb[0].mxu0
        %v506 = vadd.f32 0.0, %v505
        %v507 = vpop.f32.mrb[0].mxu0
        %508 = vmatprep.mubr.f32.mxu0 0.0
        %509 = vmatmul.mubr.f32.gmra.mrb[0].mxu0 %v415
        %v510 = vpop.f32.mrb[0].mxu0
        %v511 = vadd.f32 0.0, %v510
        %v512 = vpop.f32.mrb[0].mxu0
        %513 = vmatprep.mubr.f32.mxu0 0.0
        %514 = vmatmul.mubr.f32.gmra.mrb[0].mxu0 %v418
        %v515 = vpop.f32.mrb[0].mxu0
        %v516 = vadd.f32 0.0, %v515
        %v517 = vpop.f32.mrb[0].mxu0
        %518 = vmatprep.mubr.f32.mxu0 0.0
        %519 = vmatmul.mubr.f32.gmra.mrb[0].mxu0 %v421
        %v520 = vpop.f32.mrb[0].mxu0
        %v521 = vadd.f32 0.0, %v520
        %v522 = vpop.f32.mrb[0].mxu0
        %523 = vmatprep.mubr.f32.mxu0 0.0
        %524 = vmatmul.mubr.f32.gmra.mrb[0].mxu0 %v424
        %v525 = vpop.f32.mrb[0].mxu0
        %v526 = vadd.f32 0.0, %v525
        %v527 = vpop.f32.mrb[0].mxu0
        %528 = vmatprep.mubr.f32.mxu0 0.0
        %529 = vmatmul.mubr.f32.gmra.mrb[0].mxu0 %v427
        %v530 = vpop.f32.mrb[0].mxu0
        %v531 = vadd.f32 0.0, %v530
        %v532 = vpop.f32.mrb[0].mxu0
        %533 = vdwg.mxu0
        %v535 = vsel %vm404, %v376, 0
        %v538 = vsel %vm404, %v377, 0
        %540 = vmatprep.subr.mxu0 0.0
        %541 = vmatpush1.msra.mxu0 %v496
        %542 = vmatprep.subr.mxu0 0.0
        %543 = vmatpush1.msra.mxu0 %v501
        %544 = vmatprep.subr.mxu0 0.0
        %545 = vmatpush1.msra.mxu0 0.0
        %546 = vmatprep.subr.mxu0 0.0
        %547 = vmatpush1.msra.mxu0 0.0
        %548 = vmatprep.subr.mxu0 0.0
        %549 = vmatpush1.msra.mxu0 0.0
        %550 = vmatprep.subr.mxu0 0.0
        %551 = vmatpush1.msra.mxu0 0.0
        %552 = vmatprep.subr.mxu0 0.0
        %553 = vmatpush1.msra.mxu0 0.0
        %554 = vmatprep.subr.mxu0 0.0
        %555 = vmatpush1.msra.mxu0 0.0
        %556 = vmatprep.subr.mxu0 0.0
        %557 = vmatpush1.msra.mxu0 0.0
        %558 = vmatprep.subr.mxu0 0.0
        %559 = vmatpush1.msra.mxu0 0.0
        %560 = vmatprep.subr.mxu0 0.0
        %561 = vmatpush1.msra.mxu0 0.0
        %562 = vmatprep.subr.mxu0 0.0
        %563 = vmatpush1.msra.mxu0 0.0
        %564 = vmatprep.subr.mxu0 0.0
        %565 = vmatpush1.msra.mxu0 0.0
        %566 = vmatprep.subr.mxu0 0.0
        %567 = vmatpush1.msra.mxu0 0.0
        %568 = vmatprep.subr.mxu0 0.0
        %569 = vmatpush1.msra.mxu0 0.0
        %570 = vmatprep.subr.mxu0 0.0
        %571 = vmatpush1.msra.mxu0 0.0
        %572 = vmatprep.subr.mxu0 0.0
        %573 = vmatpush1.msra.mxu0 0.0
        %574 = vmatprep.subr.mxu0 0.0
        %575 = vmatpush1.msra.mxu0 0.0
        %576 = vmatprep.subr.mxu0 0.0
        %577 = vmatpush1.msra.mxu0 0.0
        %578 = vmatprep.subr.mxu0 0.0
        %579 = vmatpush1.msra.mxu0 0.0
        %580 = vmatprep.subr.mxu0 0.0
        %581 = vmatpush1.msra.mxu0 0.0
        %582 = vmatprep.subr.mxu0 0.0
        %583 = vmatpush1.msra.mxu0 0.0
        %584 = vmatprep.subr.mxu0 0.0
        %585 = vmatpush1.msra.mxu0 0.0
        %586 = vmatprep.subr.mxu0 0.0
        %587 = vmatpush1.msra.mxu0 0.0
        %588 = vmatprep.subr.mxu0 0.0
        %589 = vmatpush1.msra.mxu0 0.0
        %590 = vmatprep.subr.mxu0 0.0
        %591 = vmatpush1.msra.mxu0 0.0
        %592 = vmatprep.subr.mxu0 0.0
        %593 = vmatpush1.msra.mxu0 0.0
        %594 = vmatprep.subr.mxu0 0.0
        %595 = vmatpush1.msra.mxu0 0.0
        %596 = vmatprep.subr.mxu0 0.0
        %597 = vmatpush1.msra.mxu0 0.0
        %598 = vmatprep.subr.mxu0 0.0
        %599 = vmatpush1.msra.mxu0 0.0
        %600 = vmatprep.subr.mxu0 0.0
        %601 = vmatpush1.msra.mxu0 0.0
        %602 = vmatprep.subr.mxu0 0.0
        %603 = vmatpush1.msra.mxu0 0.0
        %604 = vmatprep.mubr.f32.mxu0 0.0
        %605 = vmatmul.mubr.f32.gmra.mrb[0].mxu0 %v535
        %v606 = vpop.f32.mrb[0].mxu0
        %v607 = vadd.f32 0.0, %v606
        %v608 = vpop.f32.mrb[0].mxu0
        %609 = vmatprep.mubr.f32.mxu0 0.0
        %610 = vmatmul.mubr.f32.gmra.mrb[0].mxu0 %v538
        %v611 = vpop.f32.mrb[0].mxu0
        %v612 = vadd.f32 0.0, %v611
        %v613 = vpop.f32.mrb[0].mxu0
        %614 = vdwg.mxu0
        %v616 = vsel %vm404, %v378, 0
        %v619 = vsel %vm404, %v379, 0
        %621 = vmatprep.subr.mxu0 0.0
        %622 = vmatpush1.msra.mxu0 %v506
        %623 = vmatprep.subr.mxu0 0.0
        %624 = vmatpush1.msra.mxu0 %v511
        %625 = vmatprep.subr.mxu0 0.0
        %626 = vmatpush1.msra.mxu0 0.0
        %627 = vmatprep.subr.mxu0 0.0
        %628 = vmatpush1.msra.mxu0 0.0
        %629 = vmatprep.subr.mxu0 0.0
        %630 = vmatpush1.msra.mxu0 0.0
        %631 = vmatprep.subr.mxu0 0.0
        %632 = vmatpush1.msra.mxu0 0.0
        %633 = vmatprep.subr.mxu0 0.0
        %634 = vmatpush1.msra.mxu0 0.0
        %635 = vmatprep.subr.mxu0 0.0
        %636 = vmatpush1.msra.mxu0 0.0
        %637 = vmatprep.subr.mxu0 0.0
        %638 = vmatpush1.msra.mxu0 0.0
        %639 = vmatprep.subr.mxu0 0.0
        %640 = vmatpush1.msra.mxu0 0.0
        %641 = vmatprep.subr.mxu0 0.0
        %642 = vmatpush1.msra.mxu0 0.0
        %643 = vmatprep.subr.mxu0 0.0
        %644 = vmatpush1.msra.mxu0 0.0
        %645 = vmatprep.subr.mxu0 0.0
        %646 = vmatpush1.msra.mxu0 0.0
        %647 = vmatprep.subr.mxu0 0.0
        %648 = vmatpush1.msra.mxu0 0.0
        %649 = vmatprep.subr.mxu0 0.0
        %650 = vmatpush1.msra.mxu0 0.0
        %651 = vmatprep.subr.mxu0 0.0
        %652 = vmatpush1.msra.mxu0 0.0
        %653 = vmatprep.subr.mxu0 0.0
        %654 = vmatpush1.msra.mxu0 0.0
        %655 = vmatprep.subr.mxu0 0.0
        %656 = vmatpush1.msra.mxu0 0.0
        %657 = vmatprep.subr.mxu0 0.0
        %658 = vmatpush1.msra.mxu0 0.0
        %659 = vmatprep.subr.mxu0 0.0
        %660 = vmatpush1.msra.mxu0 0.0
        %661 = vmatprep.subr.mxu0 0.0
        %662 = vmatpush1.msra.mxu0 0.0
        %663 = vmatprep.subr.mxu0 0.0
        %664 = vmatpush1.msra.mxu0 0.0
        %665 = vmatprep.subr.mxu0 0.0
        %666 = vmatpush1.msra.mxu0 0.0
        %667 = vmatprep.subr.mxu0 0.0
        %668 = vmatpush1.msra.mxu0 0.0
        %669 = vmatprep.subr.mxu0 0.0
        %670 = vmatpush1.msra.mxu0 0.0
        %671 = vmatprep.subr.mxu0 0.0
        %672 = vmatpush1.msra.mxu0 0.0
        %673 = vmatprep.subr.mxu0 0.0
        %674 = vmatpush1.msra.mxu0 0.0
        %675 = vmatprep.subr.mxu0 0.0
        %676 = vmatpush1.msra.mxu0 0.0
        %677 = vmatprep.subr.mxu0 0.0
        %678 = vmatpush1.msra.mxu0 0.0
        %679 = vmatprep.subr.mxu0 0.0
        %680 = vmatpush1.msra.mxu0 0.0
        %681 = vmatprep.subr.mxu0 0.0
        %682 = vmatpush1.msra.mxu0 0.0
        %683 = vmatprep.subr.mxu0 0.0
        %684 = vmatpush1.msra.mxu0 0.0
        %685 = vmatprep.mubr.f32.mxu0 0.0
        %686 = vmatmul.mubr.f32.gmra.mrb[0].mxu0 %v616
        %v687 = vpop.f32.mrb[0].mxu0
        %v688 = vadd.f32 0.0, %v687
        %v689 = vpop.f32.mrb[0].mxu0
        %690 = vmatprep.mubr.f32.mxu0 0.0
        %691 = vmatmul.mubr.f32.gmra.mrb[0].mxu0 %v619
        %v692 = vpop.f32.mrb[0].mxu0
        %v693 = vadd.f32 0.0, %v692
        %v694 = vpop.f32.mrb[0].mxu0
        %695 = vdwg.mxu0
        %v697 = vsel %vm404, %v380, 0
        %v700 = vsel %vm404, %v381, 0
        %702 = vmatprep.subr.mxu0 0.0
        %703 = vmatpush1.msra.mxu0 %v516
        %704 = vmatprep.subr.mxu0 0.0
        %705 = vmatpush1.msra.mxu0 %v521
        %706 = vmatprep.subr.mxu0 0.0
        %707 = vmatpush1.msra.mxu0 0.0
        %708 = vmatprep.subr.mxu0 0.0
        %709 = vmatpush1.msra.mxu0 0.0
        %710 = vmatprep.subr.mxu0 0.0
        %711 = vmatpush1.msra.mxu0 0.0
        %712 = vmatprep.subr.mxu0 0.0
        %713 = vmatpush1.msra.mxu0 0.0
        %714 = vmatprep.subr.mxu0 0.0
        %715 = vmatpush1.msra.mxu0 0.0
        %716 = vmatprep.subr.mxu0 0.0
        %717 = vmatpush1.msra.mxu0 0.0
        %718 = vmatprep.subr.mxu0 0.0
        %719 = vmatpush1.msra.mxu0 0.0
        %720 = vmatprep.subr.mxu0 0.0
        %721 = vmatpush1.msra.mxu0 0.0
        %722 = vmatprep.subr.mxu0 0.0
        %723 = vmatpush1.msra.mxu0 0.0
        %724 = vmatprep.subr.mxu0 0.0
        %725 = vmatpush1.msra.mxu0 0.0
        %726 = vmatprep.subr.mxu0 0.0
        %727 = vmatpush1.msra.mxu0 0.0
        %728 = vmatprep.subr.mxu0 0.0
        %729 = vmatpush1.msra.mxu0 0.0
        %730 = vmatprep.subr.mxu0 0.0
        %731 = vmatpush1.msra.mxu0 0.0
        %732 = vmatprep.subr.mxu0 0.0
        %733 = vmatpush1.msra.mxu0 0.0
        %734 = vmatprep.subr.mxu0 0.0
        %735 = vmatpush1.msra.mxu0 0.0
        %736 = vmatprep.subr.mxu0 0.0
        %737 = vmatpush1.msra.mxu0 0.0
        %738 = vmatprep.subr.mxu0 0.0
        %739 = vmatpush1.msra.mxu0 0.0
        %740 = vmatprep.subr.mxu0 0.0
        %741 = vmatpush1.msra.mxu0 0.0
        %742 = vmatprep.subr.mxu0 0.0
        %743 = vmatpush1.msra.mxu0 0.0
        %744 = vmatprep.subr.mxu0 0.0
        %745 = vmatpush1.msra.mxu0 0.0
        %746 = vmatprep.subr.mxu0 0.0
        %747 = vmatpush1.msra.mxu0 0.0
        %748 = vmatprep.subr.mxu0 0.0
        %749 = vmatpush1.msra.mxu0 0.0
        %750 = vmatprep.subr.mxu0 0.0
        %751 = vmatpush1.msra.mxu0 0.0
        %752 = vmatprep.subr.mxu0 0.0
        %753 = vmatpush1.msra.mxu0 0.0
        %754 = vmatprep.subr.mxu0 0.0
        %755 = vmatpush1.msra.mxu0 0.0
        %756 = vmatprep.subr.mxu0 0.0
        %757 = vmatpush1.msra.mxu0 0.0
        %758 = vmatprep.subr.mxu0 0.0
        %759 = vmatpush1.msra.mxu0 0.0
        %760 = vmatprep.subr.mxu0 0.0
        %761 = vmatpush1.msra.mxu0 0.0
        %762 = vmatprep.subr.mxu0 0.0
        %763 = vmatpush1.msra.mxu0 0.0
        %764 = vmatprep.subr.mxu0 0.0
        %765 = vmatpush1.msra.mxu0 0.0
        %766 = vmatprep.mubr.f32.mxu0 0.0
        %767 = vmatmul.mubr.f32.gmra.mrb[0].mxu0 %v697
        %v768 = vpop.f32.mrb[0].mxu0
        %v769 = vadd.f32 0.0, %v768
        %v770 = vpop.f32.mrb[0].mxu0
        %771 = vmatprep.mubr.f32.mxu0 0.0
        %772 = vmatmul.mubr.f32.gmra.mrb[0].mxu0 %v700
        %v773 = vpop.f32.mrb[0].mxu0
        %v774 = vadd.f32 0.0, %v773
        %v775 = vpop.f32.mrb[0].mxu0
        %776 = vdwg.mxu0
        %v778 = vsel %vm404, %v382, 0
        %v781 = vsel %vm404, %v383, 0
        %783 = vmatprep.subr.mxu0 0.0
        %784 = vmatpush1.msra.mxu0 %v526
        %785 = vmatprep.subr.mxu0 0.0
        %786 = vmatpush1.msra.mxu0 %v531
        %787 = vmatprep.subr.mxu0 0.0
        %788 = vmatpush1.msra.mxu0 0.0
        %789 = vmatprep.subr.mxu0 0.0
        %790 = vmatpush1.msra.mxu0 0.0
        %791 = vmatprep.subr.mxu0 0.0
        %792 = vmatpush1.msra.mxu0 0.0
        %793 = vmatprep.subr.mxu0 0.0
        %794 = vmatpush1.msra.mxu0 0.0
        %795 = vmatprep.subr.mxu0 0.0
        %796 = vmatpush1.msra.mxu0 0.0
        %797 = vmatprep.subr.mxu0 0.0
        %798 = vmatpush1.msra.mxu0 0.0
        %799 = vmatprep.subr.mxu0 0.0
        %800 = vmatpush1.msra.mxu0 0.0
        %801 = vmatprep.subr.mxu0 0.0
        %802 = vmatpush1.msra.mxu0 0.0
        %803 = vmatprep.subr.mxu0 0.0
        %804 = vmatpush1.msra.mxu0 0.0
        %805 = vmatprep.subr.mxu0 0.0
        %806 = vmatpush1.msra.mxu0 0.0
        %807 = vmatprep.subr.mxu0 0.0
        %808 = vmatpush1.msra.mxu0 0.0
        %809 = vmatprep.subr.mxu0 0.0
        %810 = vmatpush1.msra.mxu0 0.0
        %811 = vmatprep.subr.mxu0 0.0
        %812 = vmatpush1.msra.mxu0 0.0
        %813 = vmatprep.subr.mxu0 0.0
        %814 = vmatpush1.msra.mxu0 0.0
        %815 = vmatprep.subr.mxu0 0.0
        %816 = vmatpush1.msra.mxu0 0.0
        %817 = vmatprep.subr.mxu0 0.0
        %818 = vmatpush1.msra.mxu0 0.0
        %819 = vmatprep.subr.mxu0 0.0
        %820 = vmatpush1.msra.mxu0 0.0
        %821 = vmatprep.subr.mxu0 0.0
        %822 = vmatpush1.msra.mxu0 0.0
        %823 = vmatprep.subr.mxu0 0.0
        %824 = vmatpush1.msra.mxu0 0.0
        %825 = vmatprep.subr.mxu0 0.0
        %826 = vmatpush1.msra.mxu0 0.0
        %827 = vmatprep.subr.mxu0 0.0
        %828 = vmatpush1.msra.mxu0 0.0
        %829 = vmatprep.subr.mxu0 0.0
        %830 = vmatpush1.msra.mxu0 0.0
        %831 = vmatprep.subr.mxu0 0.0
        %832 = vmatpush1.msra.mxu0 0.0
        %833 = vmatprep.subr.mxu0 0.0
        %834 = vmatpush1.msra.mxu0 0.0
        %835 = vmatprep.subr.mxu0 0.0
        %836 = vmatpush1.msra.mxu0 0.0
        %837 = vmatprep.subr.mxu0 0.0
        %838 = vmatpush1.msra.mxu0 0.0
        %839 = vmatprep.subr.mxu0 0.0
        %840 = vmatpush1.msra.mxu0 0.0
        %841 = vmatprep.subr.mxu0 0.0
        %842 = vmatpush1.msra.mxu0 0.0
        %843 = vmatprep.subr.mxu0 0.0
        %844 = vmatpush1.msra.mxu0 0.0
        %845 = vmatprep.subr.mxu0 0.0
        %846 = vmatpush1.msra.mxu0 0.0
        %847 = vmatprep.mubr.f32.mxu0 0.0
        %848 = vmatmul.mubr.f32.gmra.mrb[0].mxu0 %v778
        %v849 = vpop.f32.mrb[0].mxu0
        %v850 = vadd.f32 0.0, %v849
        %v851 = vpop.f32.mrb[0].mxu0
        %852 = vmatprep.mubr.f32.mxu0 0.0
        %853 = vmatmul.mubr.f32.gmra.mrb[0].mxu0 %v781
        %v854 = vpop.f32.mrb[0].mxu0
        %v855 = vadd.f32 0.0, %v854
        %v856 = vpop.f32.mrb[0].mxu0
        %857 = vdwg.mxu0
        %v858 = vmul.f32 %v400, %v607
        %v859 = vmul.f32 %v401, %v612
        %v860 = vmul.f32 %v400, %v688
        %v861 = vmul.f32 %v401, %v693
        %v862 = vmul.f32 %v400, %v769
        %v863 = vmul.f32 %v401, %v774
        %v864 = vmul.f32 %v400, %v850
        %v865 = vmul.f32 %v401, %v855
        %v866 = vmul.f32 %v402, %v607
        %v867 = vmul.f32 %v403, %v612
        %v868 = vmul.f32 %v402, %v688
        %v869 = vmul.f32 %v403, %v693
        %v870 = vmul.f32 %v402, %v769
        %v871 = vmul.f32 %v403, %v774
        %v872 = vmul.f32 %v402, %v850
        %v873 = vmul.f32 %v403, %v855
        %v875 = vsel %vm404, %v384, 0
        %v878 = vsel %vm404, %v385, 0
        %880 = vmatprep.subr.mxu0 0.0
        %881 = vmatpush1.msra.mxu0 %v858
        %882 = vmatprep.subr.mxu0 0.0
        %883 = vmatpush1.msra.mxu0 %v859
        %884 = vmatprep.subr.mxu0 0.0
        %885 = vmatpush1.msra.mxu0 0.0
        %886 = vmatprep.subr.mxu0 0.0
        %887 = vmatpush1.msra.mxu0 0.0
        %888 = vmatprep.subr.mxu0 0.0
        %889 = vmatpush1.msra.mxu0 0.0
        %890 = vmatprep.subr.mxu0 0.0
        %891 = vmatpush1.msra.mxu0 0.0
        %892 = vmatprep.subr.mxu0 0.0
        %893 = vmatpush1.msra.mxu0 0.0
        %894 = vmatprep.subr.mxu0 0.0
        %895 = vmatpush1.msra.mxu0 0.0
        %896 = vmatprep.subr.mxu0 0.0
        %897 = vmatpush1.msra.mxu0 0.0
        %898 = vmatprep.subr.mxu0 0.0
        %899 = vmatpush1.msra.mxu0 0.0
        %900 = vmatprep.subr.mxu0 0.0
        %901 = vmatpush1.msra.mxu0 0.0
        %902 = vmatprep.subr.mxu0 0.0
        %903 = vmatpush1.msra.mxu0 0.0
        %904 = vmatprep.subr.mxu0 0.0
        %905 = vmatpush1.msra.mxu0 0.0
        %906 = vmatprep.subr.mxu0 0.0
        %907 = vmatpush1.msra.mxu0 0.0
        %908 = vmatprep.subr.mxu0 0.0
        %909 = vmatpush1.msra.mxu0 0.0
        %910 = vmatprep.subr.mxu0 0.0
        %911 = vmatpush1.msra.mxu0 0.0
        %912 = vmatprep.subr.mxu0 0.0
        %913 = vmatpush1.msra.mxu0 0.0
        %914 = vmatprep.subr.mxu0 0.0
        %915 = vmatpush1.msra.mxu0 0.0
        %916 = vmatprep.subr.mxu0 0.0
        %917 = vmatpush1.msra.mxu0 0.0
        %918 = vmatprep.subr.mxu0 0.0
        %919 = vmatpush1.msra.mxu0 0.0
        %920 = vmatprep.subr.mxu0 0.0
        %921 = vmatpush1.msra.mxu0 0.0
        %922 = vmatprep.subr.mxu0 0.0
        %923 = vmatpush1.msra.mxu0 0.0
        %924 = vmatprep.subr.mxu0 0.0
        %925 = vmatpush1.msra.mxu0 0.0
        %926 = vmatprep.subr.mxu0 0.0
        %927 = vmatpush1.msra.mxu0 0.0
        %928 = vmatprep.subr.mxu0 0.0
        %929 = vmatpush1.msra.mxu0 0.0
        %930 = vmatprep.subr.mxu0 0.0
        %931 = vmatpush1.msra.mxu0 0.0
        %932 = vmatprep.subr.mxu0 0.0
        %933 = vmatpush1.msra.mxu0 0.0
        %934 = vmatprep.subr.mxu0 0.0
        %935 = vmatpush1.msra.mxu0 0.0
        %936 = vmatprep.subr.mxu0 0.0
        %937 = vmatpush1.msra.mxu0 0.0
        %938 = vmatprep.subr.mxu0 0.0
        %939 = vmatpush1.msra.mxu0 0.0
        %940 = vmatprep.subr.mxu0 0.0
        %941 = vmatpush1.msra.mxu0 0.0
        %942 = vmatprep.subr.mxu0 0.0
        %943 = vmatpush1.msra.mxu0 0.0
        %944 = vmatprep.mubr.f32.mxu0 0.0
        %945 = vmatmul.mubr.f32.gmra.mrb[0].mxu0 %v875
        %v946 = vpop.f32.mrb[0].mxu0
        %v947 = vadd.f32 0.0, %v946
        %v948 = vpop.f32.mrb[0].mxu0
        %949 = vmatprep.mubr.f32.mxu0 0.0
        %950 = vmatmul.mubr.f32.gmra.mrb[0].mxu0 %v878
        %v951 = vpop.f32.mrb[0].mxu0
        %v952 = vadd.f32 0.0, %v951
        %v953 = vpop.f32.mrb[0].mxu0
        %954 = vdwg.mxu0
        %v956 = vsel %vm404, %v386, 0
        %v959 = vsel %vm404, %v387, 0
        %961 = vmatprep.subr.mxu0 0.0
        %962 = vmatpush1.msra.mxu0 %v860
        %963 = vmatprep.subr.mxu0 0.0
        %964 = vmatpush1.msra.mxu0 %v861
        %965 = vmatprep.subr.mxu0 0.0
        %966 = vmatpush1.msra.mxu0 0.0
        %967 = vmatprep.subr.mxu0 0.0
        %968 = vmatpush1.msra.mxu0 0.0
        %969 = vmatprep.subr.mxu0 0.0
        %970 = vmatpush1.msra.mxu0 0.0
        %971 = vmatprep.subr.mxu0 0.0
        %972 = vmatpush1.msra.mxu0 0.0
        %973 = vmatprep.subr.mxu0 0.0
        %974 = vmatpush1.msra.mxu0 0.0
        %975 = vmatprep.subr.mxu0 0.0
        %976 = vmatpush1.msra.mxu0 0.0
        %977 = vmatprep.subr.mxu0 0.0
        %978 = vmatpush1.msra.mxu0 0.0
        %979 = vmatprep.subr.mxu0 0.0
        %980 = vmatpush1.msra.mxu0 0.0
        %981 = vmatprep.subr.mxu0 0.0
        %982 = vmatpush1.msra.mxu0 0.0
        %983 = vmatprep.subr.mxu0 0.0
        %984 = vmatpush1.msra.mxu0 0.0
        %985 = vmatprep.subr.mxu0 0.0
        %986 = vmatpush1.msra.mxu0 0.0
        %987 = vmatprep.subr.mxu0 0.0
        %988 = vmatpush1.msra.mxu0 0.0
        %989 = vmatprep.subr.mxu0 0.0
        %990 = vmatpush1.msra.mxu0 0.0
        %991 = vmatprep.subr.mxu0 0.0
        %992 = vmatpush1.msra.mxu0 0.0
        %993 = vmatprep.subr.mxu0 0.0
        %994 = vmatpush1.msra.mxu0 0.0
        %995 = vmatprep.subr.mxu0 0.0
        %996 = vmatpush1.msra.mxu0 0.0
        %997 = vmatprep.subr.mxu0 0.0
        %998 = vmatpush1.msra.mxu0 0.0
        %999 = vmatprep.subr.mxu0 0.0
        %1000 = vmatpush1.msra.mxu0 0.0
        %1001 = vmatprep.subr.mxu0 0.0
        %1002 = vmatpush1.msra.mxu0 0.0
        %1003 = vmatprep.subr.mxu0 0.0
        %1004 = vmatpush1.msra.mxu0 0.0
        %1005 = vmatprep.subr.mxu0 0.0
        %1006 = vmatpush1.msra.mxu0 0.0
        %1007 = vmatprep.subr.mxu0 0.0
        %1008 = vmatpush1.msra.mxu0 0.0
        %1009 = vmatprep.subr.mxu0 0.0
        %1010 = vmatpush1.msra.mxu0 0.0
        %1011 = vmatprep.subr.mxu0 0.0
        %1012 = vmatpush1.msra.mxu0 0.0
        %1013 = vmatprep.subr.mxu0 0.0
        %1014 = vmatpush1.msra.mxu0 0.0
        %1015 = vmatprep.subr.mxu0 0.0
        %1016 = vmatpush1.msra.mxu0 0.0
        %1017 = vmatprep.subr.mxu0 0.0
        %1018 = vmatpush1.msra.mxu0 0.0
        %1019 = vmatprep.subr.mxu0 0.0
        %1020 = vmatpush1.msra.mxu0 0.0
        %1021 = vmatprep.subr.mxu0 0.0
        %1022 = vmatpush1.msra.mxu0 0.0
        %1023 = vmatprep.subr.mxu0 0.0
        %1024 = vmatpush1.msra.mxu0 0.0
        %1025 = vmatprep.mubr.f32.mxu0 0.0
        %1026 = vmatmul.mubr.f32.gmra.mrb[0].mxu0 %v956
        %v1027 = vpop.f32.mrb[0].mxu0
        %v1028 = vadd.f32 0.0, %v1027
        %v1029 = vpop.f32.mrb[0].mxu0
        %1030 = vmatprep.mubr.f32.mxu0 0.0
        %1031 = vmatmul.mubr.f32.gmra.mrb[0].mxu0 %v959
        %v1032 = vpop.f32.mrb[0].mxu0
        %v1033 = vadd.f32 0.0, %v1032
        %v1034 = vpop.f32.mrb[0].mxu0
        %1035 = vdwg.mxu0
        %v1037 = vsel %vm404, %v388, 0
        %v1040 = vsel %vm404, %v389, 0
        %1042 = vmatprep.subr.mxu0 0.0
        %1043 = vmatpush1.msra.mxu0 %v862
        %1044 = vmatprep.subr.mxu0 0.0
        %1045 = vmatpush1.msra.mxu0 %v863
        %1046 = vmatprep.subr.mxu0 0.0
        %1047 = vmatpush1.msra.mxu0 0.0
        %1048 = vmatprep.subr.mxu0 0.0
        %1049 = vmatpush1.msra.mxu0 0.0
        %1050 = vmatprep.subr.mxu0 0.0
        %1051 = vmatpush1.msra.mxu0 0.0
        %1052 = vmatprep.subr.mxu0 0.0
        %1053 = vmatpush1.msra.mxu0 0.0
        %1054 = vmatprep.subr.mxu0 0.0
        %1055 = vmatpush1.msra.mxu0 0.0
        %1056 = vmatprep.subr.mxu0 0.0
        %1057 = vmatpush1.msra.mxu0 0.0
        %1058 = vmatprep.subr.mxu0 0.0
        %1059 = vmatpush1.msra.mxu0 0.0
        %1060 = vmatprep.subr.mxu0 0.0
        %1061 = vmatpush1.msra.mxu0 0.0
        %1062 = vmatprep.subr.mxu0 0.0
        %1063 = vmatpush1.msra.mxu0 0.0
        %1064 = vmatprep.subr.mxu0 0.0
        %1065 = vmatpush1.msra.mxu0 0.0
        %1066 = vmatprep.subr.mxu0 0.0
        %1067 = vmatpush1.msra.mxu0 0.0
        %1068 = vmatprep.subr.mxu0 0.0
        %1069 = vmatpush1.msra.mxu0 0.0
        %1070 = vmatprep.subr.mxu0 0.0
        %1071 = vmatpush1.msra.mxu0 0.0
        %1072 = vmatprep.subr.mxu0 0.0
        %1073 = vmatpush1.msra.mxu0 0.0
        %1074 = vmatprep.subr.mxu0 0.0
        %1075 = vmatpush1.msra.mxu0 0.0
        %1076 = vmatprep.subr.mxu0 0.0
        %1077 = vmatpush1.msra.mxu0 0.0
        %1078 = vmatprep.subr.mxu0 0.0
        %1079 = vmatpush1.msra.mxu0 0.0
        %1080 = vmatprep.subr.mxu0 0.0
        %1081 = vmatpush1.msra.mxu0 0.0
        %1082 = vmatprep.subr.mxu0 0.0
        %1083 = vmatpush1.msra.mxu0 0.0
        %1084 = vmatprep.subr.mxu0 0.0
        %1085 = vmatpush1.msra.mxu0 0.0
        %1086 = vmatprep.subr.mxu0 0.0
        %1087 = vmatpush1.msra.mxu0 0.0
        %1088 = vmatprep.subr.mxu0 0.0
        %1089 = vmatpush1.msra.mxu0 0.0
        %1090 = vmatprep.subr.mxu0 0.0
        %1091 = vmatpush1.msra.mxu0 0.0
        %1092 = vmatprep.subr.mxu0 0.0
        %1093 = vmatpush1.msra.mxu0 0.0
        %1094 = vmatprep.subr.mxu0 0.0
        %1095 = vmatpush1.msra.mxu0 0.0
        %1096 = vmatprep.subr.mxu0 0.0
        %1097 = vmatpush1.msra.mxu0 0.0
        %1098 = vmatprep.subr.mxu0 0.0
        %1099 = vmatpush1.msra.mxu0 0.0
        %1100 = vmatprep.subr.mxu0 0.0
        %1101 = vmatpush1.msra.mxu0 0.0
        %1102 = vmatprep.subr.mxu0 0.0
        %1103 = vmatpush1.msra.mxu0 0.0
        %1104 = vmatprep.subr.mxu0 0.0
        %1105 = vmatpush1.msra.mxu0 0.0
        %1106 = vmatprep.mubr.f32.mxu0 0.0
        %1107 = vmatmul.mubr.f32.gmra.mrb[0].mxu0 %v1037
        %v1108 = vpop.f32.mrb[0].mxu0
        %v1109 = vadd.f32 0.0, %v1108
        %v1110 = vpop.f32.mrb[0].mxu0
        %1111 = vmatprep.mubr.f32.mxu0 0.0
        %1112 = vmatmul.mubr.f32.gmra.mrb[0].mxu0 %v1040
        %v1113 = vpop.f32.mrb[0].mxu0
        %v1114 = vadd.f32 0.0, %v1113
        %v1115 = vpop.f32.mrb[0].mxu0
        %1116 = vdwg.mxu0
        %v1118 = vsel %vm404, %v390, 0
        %v1121 = vsel %vm404, %v391, 0
        %1123 = vmatprep.subr.mxu0 0.0
        %1124 = vmatpush1.msra.mxu0 %v864
        %1125 = vmatprep.subr.mxu0 0.0
        %1126 = vmatpush1.msra.mxu0 %v865
        %1127 = vmatprep.subr.mxu0 0.0
        %1128 = vmatpush1.msra.mxu0 0.0
        %1129 = vmatprep.subr.mxu0 0.0
        %1130 = vmatpush1.msra.mxu0 0.0
        %1131 = vmatprep.subr.mxu0 0.0
        %1132 = vmatpush1.msra.mxu0 0.0
        %1133 = vmatprep.subr.mxu0 0.0
        %1134 = vmatpush1.msra.mxu0 0.0
        %1135 = vmatprep.subr.mxu0 0.0
        %1136 = vmatpush1.msra.mxu0 0.0
        %1137 = vmatprep.subr.mxu0 0.0
        %1138 = vmatpush1.msra.mxu0 0.0
        %1139 = vmatprep.subr.mxu0 0.0
        %1140 = vmatpush1.msra.mxu0 0.0
        %1141 = vmatprep.subr.mxu0 0.0
        %1142 = vmatpush1.msra.mxu0 0.0
        %1143 = vmatprep.subr.mxu0 0.0
        %1144 = vmatpush1.msra.mxu0 0.0
        %1145 = vmatprep.subr.mxu0 0.0
        %1146 = vmatpush1.msra.mxu0 0.0
        %1147 = vmatprep.subr.mxu0 0.0
        %1148 = vmatpush1.msra.mxu0 0.0
        %1149 = vmatprep.subr.mxu0 0.0
        %1150 = vmatpush1.msra.mxu0 0.0
        %1151 = vmatprep.subr.mxu0 0.0
        %1152 = vmatpush1.msra.mxu0 0.0
        %1153 = vmatprep.subr.mxu0 0.0
        %1154 = vmatpush1.msra.mxu0 0.0
        %1155 = vmatprep.subr.mxu0 0.0
        %1156 = vmatpush1.msra.mxu0 0.0
        %1157 = vmatprep.subr.mxu0 0.0
        %1158 = vmatpush1.msra.mxu0 0.0
        %1159 = vmatprep.subr.mxu0 0.0
        %1160 = vmatpush1.msra.mxu0 0.0
        %1161 = vmatprep.subr.mxu0 0.0
        %1162 = vmatpush1.msra.mxu0 0.0
        %1163 = vmatprep.subr.mxu0 0.0
        %1164 = vmatpush1.msra.mxu0 0.0
        %1165 = vmatprep.subr.mxu0 0.0
        %1166 = vmatpush1.msra.mxu0 0.0
        %1167 = vmatprep.subr.mxu0 0.0
        %1168 = vmatpush1.msra.mxu0 0.0
        %1169 = vmatprep.subr.mxu0 0.0
        %1170 = vmatpush1.msra.mxu0 0.0
        %1171 = vmatprep.subr.mxu0 0.0
        %1172 = vmatpush1.msra.mxu0 0.0
        %1173 = vmatprep.subr.mxu0 0.0
        %1174 = vmatpush1.msra.mxu0 0.0
        %1175 = vmatprep.subr.mxu0 0.0
        %1176 = vmatpush1.msra.mxu0 0.0
        %1177 = vmatprep.subr.mxu0 0.0
        %1178 = vmatpush1.msra.mxu0 0.0
        %1179 = vmatprep.subr.mxu0 0.0
        %1180 = vmatpush1.msra.mxu0 0.0
        %1181 = vmatprep.subr.mxu0 0.0
        %1182 = vmatpush1.msra.mxu0 0.0
        %1183 = vmatprep.subr.mxu0 0.0
        %1184 = vmatpush1.msra.mxu0 0.0
        %1185 = vmatprep.subr.mxu0 0.0
        %1186 = vmatpush1.msra.mxu0 0.0
        %1187 = vmatprep.mubr.f32.mxu0 0.0
        %1188 = vmatmul.mubr.f32.gmra.mrb[0].mxu0 %v1118
        %v1189 = vpop.f32.mrb[0].mxu0
        %v1190 = vadd.f32 0.0, %v1189
        %v1191 = vpop.f32.mrb[0].mxu0
        %1192 = vmatprep.mubr.f32.mxu0 0.0
        %1193 = vmatmul.mubr.f32.gmra.mrb[0].mxu0 %v1121
        %v1194 = vpop.f32.mrb[0].mxu0
        %v1195 = vadd.f32 0.0, %v1194
        %v1196 = vpop.f32.mrb[0].mxu0
        %1197 = vdwg.mxu0
        %v1199 = vsel %vm404, %v392, 0
        %v1202 = vsel %vm404, %v393, 0
        %1204 = vmatprep.subr.mxu0 0.0
        %1205 = vmatpush1.msra.mxu0 %v866
        %1206 = vmatprep.subr.mxu0 0.0
        %1207 = vmatpush1.msra.mxu0 %v867
        %1208 = vmatprep.subr.mxu0 0.0
        %1209 = vmatpush1.msra.mxu0 0.0
        %1210 = vmatprep.subr.mxu0 0.0
        %1211 = vmatpush1.msra.mxu0 0.0
        %1212 = vmatprep.subr.mxu0 0.0
        %1213 = vmatpush1.msra.mxu0 0.0
        %1214 = vmatprep.subr.mxu0 0.0
        %1215 = vmatpush1.msra.mxu0 0.0
        %1216 = vmatprep.subr.mxu0 0.0
        %1217 = vmatpush1.msra.mxu0 0.0
        %1218 = vmatprep.subr.mxu0 0.0
        %1219 = vmatpush1.msra.mxu0 0.0
        %1220 = vmatprep.subr.mxu0 0.0
        %1221 = vmatpush1.msra.mxu0 0.0
        %1222 = vmatprep.subr.mxu0 0.0
        %1223 = vmatpush1.msra.mxu0 0.0
        %1224 = vmatprep.subr.mxu0 0.0
        %1225 = vmatpush1.msra.mxu0 0.0
        %1226 = vmatprep.subr.mxu0 0.0
        %1227 = vmatpush1.msra.mxu0 0.0
        %1228 = vmatprep.subr.mxu0 0.0
        %1229 = vmatpush1.msra.mxu0 0.0
        %1230 = vmatprep.subr.mxu0 0.0
        %1231 = vmatpush1.msra.mxu0 0.0
        %1232 = vmatprep.subr.mxu0 0.0
        %1233 = vmatpush1.msra.mxu0 0.0
        %1234 = vmatprep.subr.mxu0 0.0
        %1235 = vmatpush1.msra.mxu0 0.0
        %1236 = vmatprep.subr.mxu0 0.0
        %1237 = vmatpush1.msra.mxu0 0.0
        %1238 = vmatprep.subr.mxu0 0.0
        %1239 = vmatpush1.msra.mxu0 0.0
        %1240 = vmatprep.subr.mxu0 0.0
        %1241 = vmatpush1.msra.mxu0 0.0
        %1242 = vmatprep.subr.mxu0 0.0
        %1243 = vmatpush1.msra.mxu0 0.0
        %1244 = vmatprep.subr.mxu0 0.0
        %1245 = vmatpush1.msra.mxu0 0.0
        %1246 = vmatprep.subr.mxu0 0.0
        %1247 = vmatpush1.msra.mxu0 0.0
        %1248 = vmatprep.subr.mxu0 0.0
        %1249 = vmatpush1.msra.mxu0 0.0
        %1250 = vmatprep.subr.mxu0 0.0
        %1251 = vmatpush1.msra.mxu0 0.0
        %1252 = vmatprep.subr.mxu0 0.0
        %1253 = vmatpush1.msra.mxu0 0.0
        %1254 = vmatprep.subr.mxu0 0.0
        %1255 = vmatpush1.msra.mxu0 0.0
        %1256 = vmatprep.subr.mxu0 0.0
        %1257 = vmatpush1.msra.mxu0 0.0
        %1258 = vmatprep.subr.mxu0 0.0
        %1259 = vmatpush1.msra.mxu0 0.0
        %1260 = vmatprep.subr.mxu0 0.0
        %1261 = vmatpush1.msra.mxu0 0.0
        %1262 = vmatprep.subr.mxu0 0.0
        %1263 = vmatpush1.msra.mxu0 0.0
        %1264 = vmatprep.subr.mxu0 0.0
        %1265 = vmatpush1.msra.mxu0 0.0
        %1266 = vmatprep.subr.mxu0 0.0
        %1267 = vmatpush1.msra.mxu0 0.0
        %1268 = vmatprep.mubr.f32.mxu0 0.0
        %1269 = vmatmul.mubr.f32.gmra.mrb[0].mxu0 %v1199
        %v1270 = vpop.f32.mrb[0].mxu0
        %v1271 = vadd.f32 0.0, %v1270
        %v1272 = vpop.f32.mrb[0].mxu0
        %1273 = vmatprep.mubr.f32.mxu0 0.0
        %1274 = vmatmul.mubr.f32.gmra.mrb[0].mxu0 %v1202
        %v1275 = vpop.f32.mrb[0].mxu0
        %v1276 = vadd.f32 0.0, %v1275
        %v1277 = vpop.f32.mrb[0].mxu0
        %1278 = vdwg.mxu0
        %v1280 = vsel %vm404, %v394, 0
        %v1283 = vsel %vm404, %v395, 0
        %1285 = vmatprep.subr.mxu0 0.0
        %1286 = vmatpush1.msra.mxu0 %v868
        %1287 = vmatprep.subr.mxu0 0.0
        %1288 = vmatpush1.msra.mxu0 %v869
        %1289 = vmatprep.subr.mxu0 0.0
        %1290 = vmatpush1.msra.mxu0 0.0
        %1291 = vmatprep.subr.mxu0 0.0
        %1292 = vmatpush1.msra.mxu0 0.0
        %1293 = vmatprep.subr.mxu0 0.0
        %1294 = vmatpush1.msra.mxu0 0.0
        %1295 = vmatprep.subr.mxu0 0.0
        %1296 = vmatpush1.msra.mxu0 0.0
        %1297 = vmatprep.subr.mxu0 0.0
        %1298 = vmatpush1.msra.mxu0 0.0
        %1299 = vmatprep.subr.mxu0 0.0
        %1300 = vmatpush1.msra.mxu0 0.0
        %1301 = vmatprep.subr.mxu0 0.0
        %1302 = vmatpush1.msra.mxu0 0.0
        %1303 = vmatprep.subr.mxu0 0.0
        %1304 = vmatpush1.msra.mxu0 0.0
        %1305 = vmatprep.subr.mxu0 0.0
        %1306 = vmatpush1.msra.mxu0 0.0
        %1307 = vmatprep.subr.mxu0 0.0
        %1308 = vmatpush1.msra.mxu0 0.0
        %1309 = vmatprep.subr.mxu0 0.0
        %1310 = vmatpush1.msra.mxu0 0.0
        %1311 = vmatprep.subr.mxu0 0.0
        %1312 = vmatpush1.msra.mxu0 0.0
        %1313 = vmatprep.subr.mxu0 0.0
        %1314 = vmatpush1.msra.mxu0 0.0
        %1315 = vmatprep.subr.mxu0 0.0
        %1316 = vmatpush1.msra.mxu0 0.0
        %1317 = vmatprep.subr.mxu0 0.0
        %1318 = vmatpush1.msra.mxu0 0.0
        %1319 = vmatprep.subr.mxu0 0.0
        %1320 = vmatpush1.msra.mxu0 0.0
        %1321 = vmatprep.subr.mxu0 0.0
        %1322 = vmatpush1.msra.mxu0 0.0
        %1323 = vmatprep.subr.mxu0 0.0
        %1324 = vmatpush1.msra.mxu0 0.0
        %1325 = vmatprep.subr.mxu0 0.0
        %1326 = vmatpush1.msra.mxu0 0.0
        %1327 = vmatprep.subr.mxu0 0.0
        %1328 = vmatpush1.msra.mxu0 0.0
        %1329 = vmatprep.subr.mxu0 0.0
        %1330 = vmatpush1.msra.mxu0 0.0
        %1331 = vmatprep.subr.mxu0 0.0
        %1332 = vmatpush1.msra.mxu0 0.0
        %1333 = vmatprep.subr.mxu0 0.0
        %1334 = vmatpush1.msra.mxu0 0.0
        %1335 = vmatprep.subr.mxu0 0.0
        %1336 = vmatpush1.msra.mxu0 0.0
        %1337 = vmatprep.subr.mxu0 0.0
        %1338 = vmatpush1.msra.mxu0 0.0
        %1339 = vmatprep.subr.mxu0 0.0
        %1340 = vmatpush1.msra.mxu0 0.0
        %1341 = vmatprep.subr.mxu0 0.0
        %1342 = vmatpush1.msra.mxu0 0.0
        %1343 = vmatprep.subr.mxu0 0.0
        %1344 = vmatpush1.msra.mxu0 0.0
        %1345 = vmatprep.subr.mxu0 0.0
        %1346 = vmatpush1.msra.mxu0 0.0
        %1347 = vmatprep.subr.mxu0 0.0
        %1348 = vmatpush1.msra.mxu0 0.0
        %1349 = vmatprep.mubr.f32.mxu0 0.0
        %1350 = vmatmul.mubr.f32.gmra.mrb[0].mxu0 %v1280
        %v1351 = vpop.f32.mrb[0].mxu0
        %v1352 = vadd.f32 0.0, %v1351
        %v1353 = vpop.f32.mrb[0].mxu0
        %1354 = vmatprep.mubr.f32.mxu0 0.0
        %1355 = vmatmul.mubr.f32.gmra.mrb[0].mxu0 %v1283
        %v1356 = vpop.f32.mrb[0].mxu0
        %v1357 = vadd.f32 0.0, %v1356
        %v1358 = vpop.f32.mrb[0].mxu0
        %1359 = vdwg.mxu0
        %v1361 = vsel %vm404, %v396, 0
        %v1364 = vsel %vm404, %v397, 0
        %1366 = vmatprep.subr.mxu0 0.0
        %1367 = vmatpush1.msra.mxu0 %v870
        %1368 = vmatprep.subr.mxu0 0.0
        %1369 = vmatpush1.msra.mxu0 %v871
        %1370 = vmatprep.subr.mxu0 0.0
        %1371 = vmatpush1.msra.mxu0 0.0
        %1372 = vmatprep.subr.mxu0 0.0
        %1373 = vmatpush1.msra.mxu0 0.0
        %1374 = vmatprep.subr.mxu0 0.0
        %1375 = vmatpush1.msra.mxu0 0.0
        %1376 = vmatprep.subr.mxu0 0.0
        %1377 = vmatpush1.msra.mxu0 0.0
        %1378 = vmatprep.subr.mxu0 0.0
        %1379 = vmatpush1.msra.mxu0 0.0
        %1380 = vmatprep.subr.mxu0 0.0
        %1381 = vmatpush1.msra.mxu0 0.0
        %1382 = vmatprep.subr.mxu0 0.0
        %1383 = vmatpush1.msra.mxu0 0.0
        %1384 = vmatprep.subr.mxu0 0.0
        %1385 = vmatpush1.msra.mxu0 0.0
        %1386 = vmatprep.subr.mxu0 0.0
        %1387 = vmatpush1.msra.mxu0 0.0
        %1388 = vmatprep.subr.mxu0 0.0
        %1389 = vmatpush1.msra.mxu0 0.0
        %1390 = vmatprep.subr.mxu0 0.0
        %1391 = vmatpush1.msra.mxu0 0.0
        %1392 = vmatprep.subr.mxu0 0.0
        %1393 = vmatpush1.msra.mxu0 0.0
        %1394 = vmatprep.subr.mxu0 0.0
        %1395 = vmatpush1.msra.mxu0 0.0
        %1396 = vmatprep.subr.mxu0 0.0
        %1397 = vmatpush1.msra.mxu0 0.0
        %1398 = vmatprep.subr.mxu0 0.0
        %1399 = vmatpush1.msra.mxu0 0.0
        %1400 = vmatprep.subr.mxu0 0.0
        %1401 = vmatpush1.msra.mxu0 0.0
        %1402 = vmatprep.subr.mxu0 0.0
        %1403 = vmatpush1.msra.mxu0 0.0
        %1404 = vmatprep.subr.mxu0 0.0
        %1405 = vmatpush1.msra.mxu0 0.0
        %1406 = vmatprep.subr.mxu0 0.0
        %1407 = vmatpush1.msra.mxu0 0.0
        %1408 = vmatprep.subr.mxu0 0.0
        %1409 = vmatpush1.msra.mxu0 0.0
        %1410 = vmatprep.subr.mxu0 0.0
        %1411 = vmatpush1.msra.mxu0 0.0
        %1412 = vmatprep.subr.mxu0 0.0
        %1413 = vmatpush1.msra.mxu0 0.0
        %1414 = vmatprep.subr.mxu0 0.0
        %1415 = vmatpush1.msra.mxu0 0.0
        %1416 = vmatprep.subr.mxu0 0.0
        %1417 = vmatpush1.msra.mxu0 0.0
        %1418 = vmatprep.subr.mxu0 0.0
        %1419 = vmatpush1.msra.mxu0 0.0
        %1420 = vmatprep.subr.mxu0 0.0
        %1421 = vmatpush1.msra.mxu0 0.0
        %1422 = vmatprep.subr.mxu0 0.0
        %1423 = vmatpush1.msra.mxu0 0.0
        %1424 = vmatprep.subr.mxu0 0.0
        %1425 = vmatpush1.msra.mxu0 0.0
        %1426 = vmatprep.subr.mxu0 0.0
        %1427 = vmatpush1.msra.mxu0 0.0
        %1428 = vmatprep.subr.mxu0 0.0
        %1429 = vmatpush1.msra.mxu0 0.0
        %1430 = vmatprep.mubr.f32.mxu0 0.0
        %1431 = vmatmul.mubr.f32.gmra.mrb[0].mxu0 %v1361
        %v1432 = vpop.f32.mrb[0].mxu0
        %v1433 = vadd.f32 0.0, %v1432
        %v1434 = vpop.f32.mrb[0].mxu0
        %1435 = vmatprep.mubr.f32.mxu0 0.0
        %1436 = vmatmul.mubr.f32.gmra.mrb[0].mxu0 %v1364
        %v1437 = vpop.f32.mrb[0].mxu0
        %v1438 = vadd.f32 0.0, %v1437
        %v1439 = vpop.f32.mrb[0].mxu0
        %1440 = vdwg.mxu0
        %v1442 = vsel %vm404, %v398, 0
        %v1445 = vsel %vm404, %v399, 0
        %1447 = vmatprep.subr.mxu0 0.0
        %1448 = vmatpush1.msra.mxu0 %v872
        %1449 = vmatprep.subr.mxu0 0.0
        %1450 = vmatpush1.msra.mxu0 %v873
        %1451 = vmatprep.subr.mxu0 0.0
        %1452 = vmatpush1.msra.mxu0 0.0
        %1453 = vmatprep.subr.mxu0 0.0
        %1454 = vmatpush1.msra.mxu0 0.0
        %1455 = vmatprep.subr.mxu0 0.0
        %1456 = vmatpush1.msra.mxu0 0.0
        %1457 = vmatprep.subr.mxu0 0.0
        %1458 = vmatpush1.msra.mxu0 0.0
        %1459 = vmatprep.subr.mxu0 0.0
        %1460 = vmatpush1.msra.mxu0 0.0
        %1461 = vmatprep.subr.mxu0 0.0
        %1462 = vmatpush1.msra.mxu0 0.0
        %1463 = vmatprep.subr.mxu0 0.0
        %1464 = vmatpush1.msra.mxu0 0.0
        %1465 = vmatprep.subr.mxu0 0.0
        %1466 = vmatpush1.msra.mxu0 0.0
        %1467 = vmatprep.subr.mxu0 0.0
        %1468 = vmatpush1.msra.mxu0 0.0
        %1469 = vmatprep.subr.mxu0 0.0
        %1470 = vmatpush1.msra.mxu0 0.0
        %1471 = vmatprep.subr.mxu0 0.0
        %1472 = vmatpush1.msra.mxu0 0.0
        %1473 = vmatprep.subr.mxu0 0.0
        %1474 = vmatpush1.msra.mxu0 0.0
        %1475 = vmatprep.subr.mxu0 0.0
        %1476 = vmatpush1.msra.mxu0 0.0
        %1477 = vmatprep.subr.mxu0 0.0
        %1478 = vmatpush1.msra.mxu0 0.0
        %1479 = vmatprep.subr.mxu0 0.0
        %1480 = vmatpush1.msra.mxu0 0.0
        %1481 = vmatprep.subr.mxu0 0.0
        %1482 = vmatpush1.msra.mxu0 0.0
        %1483 = vmatprep.subr.mxu0 0.0
        %1484 = vmatpush1.msra.mxu0 0.0
        %1485 = vmatprep.subr.mxu0 0.0
        %1486 = vmatpush1.msra.mxu0 0.0
        %1487 = vmatprep.subr.mxu0 0.0
        %1488 = vmatpush1.msra.mxu0 0.0
        %1489 = vmatprep.subr.mxu0 0.0
        %1490 = vmatpush1.msra.mxu0 0.0
        %1491 = vmatprep.subr.mxu0 0.0
        %1492 = vmatpush1.msra.mxu0 0.0
        %1493 = vmatprep.subr.mxu0 0.0
        %1494 = vmatpush1.msra.mxu0 0.0
        %1495 = vmatprep.subr.mxu0 0.0
        %1496 = vmatpush1.msra.mxu0 0.0
        %1497 = vmatprep.subr.mxu0 0.0
        %1498 = vmatpush1.msra.mxu0 0.0
        %1499 = vmatprep.subr.mxu0 0.0
        %1500 = vmatpush1.msra.mxu0 0.0
        %1501 = vmatprep.subr.mxu0 0.0
        %1502 = vmatpush1.msra.mxu0 0.0
        %1503 = vmatprep.subr.mxu0 0.0
        %1504 = vmatpush1.msra.mxu0 0.0
        %1505 = vmatprep.subr.mxu0 0.0
        %1506 = vmatpush1.msra.mxu0 0.0
        %1507 = vmatprep.subr.mxu0 0.0
        %1508 = vmatpush1.msra.mxu0 0.0
        %1509 = vmatprep.subr.mxu0 0.0
        %1510 = vmatpush1.msra.mxu0 0.0
        %1511 = vmatprep.mubr.f32.mxu0 0.0
        %1512 = vmatmul.mubr.f32.gmra.mrb[0].mxu0 %v1442
        %v1513 = vpop.f32.mrb[0].mxu0
        %v1514 = vadd.f32 0.0, %v1513
        %v1515 = vpop.f32.mrb[0].mxu0
        %1516 = vmatprep.mubr.f32.mxu0 0.0
        %1517 = vmatmul.mubr.f32.gmra.mrb[0].mxu0 %v1445
        %v1518 = vpop.f32.mrb[0].mxu0
        %v1519 = vadd.f32 0.0, %v1518
        %v1520 = vpop.f32.mrb[0].mxu0
        %1521 = vdwg.mxu0
        %v1523 = vsel %vm404, %v947, 0
        %v1526 = vsel %vm404, %v952, 0
        %v1529 = vsel %vm404, %v1028, 0
        %v1532 = vsel %vm404, %v1033, 0
        %v1535 = vsel %vm404, %v1109, 0
        %v1538 = vsel %vm404, %v1114, 0
        %v1541 = vsel %vm404, %v1190, 0
        %v1544 = vsel %vm404, %v1195, 0
        %v1547 = vsel %vm404, %v1271, 0
        %v1550 = vsel %vm404, %v1276, 0
        %v1553 = vsel %vm404, %v1352, 0
        %v1556 = vsel %vm404, %v1357, 0
        %v1559 = vsel %vm404, %v1433, 0
        %v1562 = vsel %vm404, %v1438, 0
        %v1565 = vsel %vm404, %v1514, 0
        %v1568 = vsel %vm404, %v1519, 0
        %1570 = vmatprep.subr.mxu0 0.0
        %1571 = vmatpush1.msra.mxu0 %v372
        %1572 = vmatprep.subr.mxu0 0.0
        %1573 = vmatpush1.msra.mxu0 %v373
        %1574 = vmatprep.subr.mxu0 0.0
        %1575 = vmatpush1.msra.mxu0 0.0
        %1576 = vmatprep.subr.mxu0 0.0
        %1577 = vmatpush1.msra.mxu0 0.0
        %1578 = vmatprep.subr.mxu0 0.0
        %1579 = vmatpush1.msra.mxu0 0.0
        %1580 = vmatprep.subr.mxu0 0.0
        %1581 = vmatpush1.msra.mxu0 0.0
        %1582 = vmatprep.subr.mxu0 0.0
        %1583 = vmatpush1.msra.mxu0 0.0
        %1584 = vmatprep.subr.mxu0 0.0
        %1585 = vmatpush1.msra.mxu0 0.0
        %1586 = vmatprep.subr.mxu0 0.0
        %1587 = vmatpush1.msra.mxu0 0.0
        %1588 = vmatprep.subr.mxu0 0.0
        %1589 = vmatpush1.msra.mxu0 0.0
        %1590 = vmatprep.subr.mxu0 0.0
        %1591 = vmatpush1.msra.mxu0 0.0
        %1592 = vmatprep.subr.mxu0 0.0
        %1593 = vmatpush1.msra.mxu0 0.0
        %1594 = vmatprep.subr.mxu0 0.0
        %1595 = vmatpush1.msra.mxu0 0.0
        %1596 = vmatprep.subr.mxu0 0.0
        %1597 = vmatpush1.msra.mxu0 0.0
        %1598 = vmatprep.subr.mxu0 0.0
        %1599 = vmatpush1.msra.mxu0 0.0
        %1600 = vmatprep.subr.mxu0 0.0
        %1601 = vmatpush1.msra.mxu0 0.0
        %1602 = vmatprep.subr.mxu0 0.0
        %1603 = vmatpush1.msra.mxu0 0.0
        %1604 = vmatprep.subr.mxu0 0.0
        %1605 = vmatpush1.msra.mxu0 0.0
        %1606 = vmatprep.subr.mxu0 0.0
        %1607 = vmatpush1.msra.mxu0 0.0
        %1608 = vmatprep.subr.mxu0 0.0
        %1609 = vmatpush1.msra.mxu0 0.0
        %1610 = vmatprep.subr.mxu0 0.0
        %1611 = vmatpush1.msra.mxu0 0.0
        %1612 = vmatprep.subr.mxu0 0.0
        %1613 = vmatpush1.msra.mxu0 0.0
        %1614 = vmatprep.subr.mxu0 0.0
        %1615 = vmatpush1.msra.mxu0 0.0
        %1616 = vmatprep.subr.mxu0 0.0
        %1617 = vmatpush1.msra.mxu0 0.0
        %1618 = vmatprep.subr.mxu0 0.0
        %1619 = vmatpush1.msra.mxu0 0.0
        %1620 = vmatprep.subr.mxu0 0.0
        %1621 = vmatpush1.msra.mxu0 0.0
        %1622 = vmatprep.subr.mxu0 0.0
        %1623 = vmatpush1.msra.mxu0 0.0
        %1624 = vmatprep.subr.mxu0 0.0
        %1625 = vmatpush1.msra.mxu0 0.0
        %1626 = vmatprep.subr.mxu0 0.0
        %1627 = vmatpush1.msra.mxu0 0.0
        %1628 = vmatprep.subr.mxu0 0.0
        %1629 = vmatpush1.msra.mxu0 0.0
        %1630 = vmatprep.subr.mxu0 0.0
        %1631 = vmatpush1.msra.mxu0 0.0
        %1632 = vmatprep.subr.mxu0 0.0
        %1633 = vmatpush1.msra.mxu0 0.0
        %1634 = vmatprep.mubr.f32.mxu0 0.0
        %1635 = vmatmul.mubr.f32.gmra.mrb[0].mxu0 %v1523
        %v1636 = vpop.f32.mrb[0].mxu0
        %v1637 = vadd.f32 0.0, %v1636
        %v1638 = vpop.f32.mrb[0].mxu0
        %1639 = vmatprep.mubr.f32.mxu0 0.0
        %1640 = vmatmul.mubr.f32.gmra.mrb[0].mxu0 %v1526
        %v1641 = vpop.f32.mrb[0].mxu0
        %v1642 = vadd.f32 0.0, %v1641
        %v1643 = vpop.f32.mrb[0].mxu0
        %1644 = vmatprep.mubr.f32.mxu0 0.0
        %1645 = vmatmul.mubr.f32.gmra.mrb[0].mxu0 %v1529
        %v1646 = vpop.f32.mrb[0].mxu0
        %v1647 = vadd.f32 0.0, %v1646
        %v1648 = vpop.f32.mrb[0].mxu0
        %1649 = vmatprep.mubr.f32.mxu0 0.0
        %1650 = vmatmul.mubr.f32.gmra.mrb[0].mxu0 %v1532
        %v1651 = vpop.f32.mrb[0].mxu0
        %v1652 = vadd.f32 0.0, %v1651
        %v1653 = vpop.f32.mrb[0].mxu0
        %1654 = vmatprep.mubr.f32.mxu0 0.0
        %1655 = vmatmul.mubr.f32.gmra.mrb[0].mxu0 %v1535
        %v1656 = vpop.f32.mrb[0].mxu0
        %v1657 = vadd.f32 0.0, %v1656
        %v1658 = vpop.f32.mrb[0].mxu0
        %1659 = vmatprep.mubr.f32.mxu0 0.0
        %1660 = vmatmul.mubr.f32.gmra.mrb[0].mxu0 %v1538
        %v1661 = vpop.f32.mrb[0].mxu0
        %v1662 = vadd.f32 0.0, %v1661
        %v1663 = vpop.f32.mrb[0].mxu0
        %1664 = vmatprep.mubr.f32.mxu0 0.0
        %1665 = vmatmul.mubr.f32.gmra.mrb[0].mxu0 %v1541
        %v1666 = vpop.f32.mrb[0].mxu0
        %v1667 = vadd.f32 0.0, %v1666
        %v1668 = vpop.f32.mrb[0].mxu0
        %1669 = vmatprep.mubr.f32.mxu0 0.0
        %1670 = vmatmul.mubr.f32.gmra.mrb[0].mxu0 %v1544
        %v1671 = vpop.f32.mrb[0].mxu0
        %v1672 = vadd.f32 0.0, %v1671
        %v1673 = vpop.f32.mrb[0].mxu0
        %1674 = vmatprep.mubr.f32.mxu0 0.0
        %1675 = vmatmul.mubr.f32.gmra.mrb[0].mxu0 %v1547
        %v1676 = vpop.f32.mrb[0].mxu0
        %v1677 = vadd.f32 0.0, %v1676
        %v1678 = vpop.f32.mrb[0].mxu0
        %1679 = vmatprep.mubr.f32.mxu0 0.0
        %1680 = vmatmul.mubr.f32.gmra.mrb[0].mxu0 %v1550
        %v1681 = vpop.f32.mrb[0].mxu0
        %v1682 = vadd.f32 0.0, %v1681
        %v1683 = vpop.f32.mrb[0].mxu0
        %1684 = vmatprep.mubr.f32.mxu0 0.0
        %1685 = vmatmul.mubr.f32.gmra.mrb[0].mxu0 %v1553
        %v1686 = vpop.f32.mrb[0].mxu0
        %v1687 = vadd.f32 0.0, %v1686
        %v1688 = vpop.f32.mrb[0].mxu0
        %1689 = vmatprep.mubr.f32.mxu0 0.0
        %1690 = vmatmul.mubr.f32.gmra.mrb[0].mxu0 %v1556
        %v1691 = vpop.f32.mrb[0].mxu0
        %v1692 = vadd.f32 0.0, %v1691
        %v1693 = vpop.f32.mrb[0].mxu0
        %1694 = vmatprep.mubr.f32.mxu0 0.0
        %1695 = vmatmul.mubr.f32.gmra.mrb[0].mxu0 %v1559
        %v1696 = vpop.f32.mrb[0].mxu0
        %v1697 = vadd.f32 0.0, %v1696
        %v1698 = vpop.f32.mrb[0].mxu0
        %1699 = vmatprep.mubr.f32.mxu0 0.0
        %1700 = vmatmul.mubr.f32.gmra.mrb[0].mxu0 %v1562
        %v1701 = vpop.f32.mrb[0].mxu0
        %v1702 = vadd.f32 0.0, %v1701
        %v1703 = vpop.f32.mrb[0].mxu0
        %1704 = vmatprep.mubr.f32.mxu0 0.0
        %1705 = vmatmul.mubr.f32.gmra.mrb[0].mxu0 %v1565
        %v1706 = vpop.f32.mrb[0].mxu0
        %v1707 = vadd.f32 0.0, %v1706
        %v1708 = vpop.f32.mrb[0].mxu0
        %1709 = vmatprep.mubr.f32.mxu0 0.0
        %1710 = vmatmul.mubr.f32.gmra.mrb[0].mxu0 %v1568
        %v1711 = vpop.f32.mrb[0].mxu0
        %v1712 = vadd.f32 0.0, %v1711
        %v1713 = vpop.f32.mrb[0].mxu0
        %1714 = vdwg.mxu0
        %1715 = vst.msk [vmem:[%s361] sm:$0xff] %vm404, %v1637
        %1716 = vst.msk [vmem:[%s361 + $0x8] sm:$0xff] %vm404, %v1642
        %1717 = vst.msk [vmem:[%s361 + $0x10] sm:$0xff] %vm404, %v1647
        %1718 = vst.msk [vmem:[%s361 + $0x18] sm:$0xff] %vm404, %v1652
        %1719 = vst.msk [vmem:[%s361 + $0x20] sm:$0xff] %vm404, %v1657
        %1720 = vst.msk [vmem:[%s361 + $0x28] sm:$0xff] %vm404, %v1662
        %1721 = vst.msk [vmem:[%s361 + $0x30] sm:$0xff] %vm404, %v1667
        %1722 = vst.msk [vmem:[%s361 + $0x38] sm:$0xff] %vm404, %v1672
        %s1723 = scalar_lea.vmem %s361, 64 [#allocation13]
        %1724 = vst.msk [vmem:[%s1723] sm:$0xff] %vm404, %v1677
        %1725 = vst.msk [vmem:[%s1723 + $0x8] sm:$0xff] %vm404, %v1682
        %1726 = vst.msk [vmem:[%s1723 + $0x10] sm:$0xff] %vm404, %v1687
        %1727 = vst.msk [vmem:[%s1723 + $0x18] sm:$0xff] %vm404, %v1692
        %1728 = vst.msk [vmem:[%s1723 + $0x20] sm:$0xff] %vm404, %v1697
        %1729 = vst.msk [vmem:[%s1723 + $0x28] sm:$0xff] %vm404, %v1702
        %1730 = vst.msk [vmem:[%s1723 + $0x30] sm:$0xff] %vm404, %v1707
        %1731 = vst.msk [vmem:[%s1723 + $0x38] sm:$0xff] %vm404, %v1712
        %s1732 = sand.u32 %s181, 1
        %s1733 = scalar_lea.sflag [#allocation4], %s1732
        %s1734 = sand.u32 %s181, 1
        %s1735 = smul.addr %s1734, 128
        %s1736 = scalar_lea.vmem [#allocation13], %s1735
        // Predicated region
        $region69: #{tpu_custom_call.1} parent=43 // pred_check
          %p1737 = pneg %p191
        $region70: #{tpu_custom_call.1} parent=43 // pred_check_branch
          %1739 = sbr.rel (%p1737) target = $region72
        $region71: #{tpu_custom_call.1} parent=43 // pred_region
          %s1740 = smul.u32 4, %s31
          %s1742 = ssub.s32 2048, 2048
          %1743 = vsyncadd %s1733, %s1742
          %s1744 = smul.addr %s1740, 2
          %s1745 = smul.addr %s30, 16
          %s1746 = sadd.s32 %s1744, %s1745
          %s1747 = smul.addr %s1746, 128
          %s1748 = scalar_lea.hbm %s6, %s1747
          %s1749 = sshll.u32 %s1736, 4
          %s1750 = int_to_ptr.vmem [resolvable:$true] %s1749
          %1755 = dma.vmem_to_hbm [thread:$0]  %s1750, 2048, %s1748, %s1733, 128, 128, 8
        $region72: #{tpu_custom_call.1} parent=43 // pred_fallthru
          _
      $region44: #{tpu_custom_call.1} parent=5 // pred_fallthru
        _
      %p1756 = scmp.le.s32.totalorder 2, %s21
      // Predicated region
      $region73: #{tpu_custom_call.1} parent=5 // pred_check
        %p1757 = pneg %p1756
      $region74: #{tpu_custom_call.1} parent=5 // pred_check_branch
        %1759 = sbr.rel (%p1757) target = $region76
      $region75: #{tpu_custom_call.1} parent=5 // pred_region
        %s1760 = ssub.s32 %s21, 2
        // Predicated region
        $region77: #{tpu_custom_call.1} parent=75 // pred_check
          %p1761 = pneg %p197
        $region78: #{tpu_custom_call.1} parent=75 // pred_check_branch
          %1763 = sbr.rel (%p1761) target = $region80
        $region79: #{tpu_custom_call.1} parent=75 // pred_region
          %s1764 = sand.u32 %s182, 1
          %s1765 = scalar_lea.sflag [#allocation4], %s1764
          %s1766 = sand.u32 %s182, 1
          %s1767 = smul.addr %s1766, 128
          %s1768 = scalar_lea.vmem [#allocation13], %s1767
          %1769 = dma.done %s1765, 2048
        $region80: #{tpu_custom_call.1} parent=75 // pred_fallthru
          _
      $region76: #{tpu_custom_call.1} parent=5 // pred_fallthru
        _
    $region6: #{tpu_custom_call.1} parent=1 // loop_footer
      %s25 = sadd.s32 1, %s21
    $region7: #{tpu_custom_call.1} parent=1 // loop_footer_branch
      %20 = sbr.rel target = $region3
    $region8: #{tpu_custom_call.1} parent=1 // loop_exit
      _
    %1770 = vsyncpa [#allocation3], 1
    %s1771 = scalar_lea.sflag [#allocation3], 1
    %1772 = vsyncpa %s1771, 1
    %1773 = vsyncpa [#allocation6], 1
    %1774 = vsyncpa [#allocation9], 1
    %1775 = vsyncpa [#allocation12], 1
    %1776 = vsyncpa [#allocation4], 1
    %s1777 = scalar_lea.sflag [#allocation4], 1
    %1778 = vsyncpa %s1777, 1

</llo_original>
